<compile_context>
chip_gen: v5e
topology: v5e:2x2
jax: 0.10.0
libtpu: 0.0.40
codegen_flags: <defaults>
</compile_context>

<pallas_src>
import functools
import math

import jax
import jax.numpy as jnp
from jax.experimental import pallas as pl
from jax.experimental.pallas import tpu as pltpu


# -------------------- math helpers --------------------

def _gelu_tanh(x):
    # torch.nn.GELU(approximate='tanh')
    c = math.sqrt(2.0 / math.pi)
    return 0.5 * x * (1.0 + jnp.tanh(c * (x + 0.044715 * x * x * x)))


def _round_up(x, m):
    return ((x + m - 1) // m) * m


# -------------------- Pallas kernel --------------------

def _network_kernel(x_ref, e_ref, f0_ref, bias_ef_s_ref,
                    wpre_ref, we1_ref, wf1_ref, we2_ref, wf2_ref,
                    wp1_ref, wp2_ref, bias_ref,
                    out_ref, *, D, H4, Da):
    f32 = jnp.float32

    x_in = x_ref[0]      # [Cl, TT]
    e_in = e_ref[0]      # [Ce, TT]
    f0 = f0_ref[0]       # [1,  TT]

    # Packed bias columns: [b_pre; b_e1; b_f1; b_p1; b_p2]  (static slices)
    b_pre = bias_ref[0:D]
    b_e1 = bias_ref[D:D + H4]
    b_f1 = bias_ref[D + H4:D + 2 * H4]
    b_p1 = bias_ref[D + 2 * H4:2 * D + 2 * H4]
    b_p2 = bias_ref[2 * D + 2 * H4:2 * D + 2 * H4 + Da]

    # prenet: Conv1d(k=1) + GELU(tanh)        -> [D, TT]
    h = _gelu_tanh(
        jnp.dot(wpre_ref[...], x_in, preferred_element_type=f32) + b_pre)

    # encoding_ffn hidden: Conv1d + GELU       -> [H4, TT]
    eh = _gelu_tanh(
        jnp.dot(we1_ref[...], e_in, preferred_element_type=f32) + b_e1)

    # f0_ffn hidden: Linear(1 -> H4) is an outer product, then GELU -> [H4, TT]
    fh = _gelu_tanh(wf1_ref[...] * f0 + b_f1)

    # H4->D projections for encoding_ffn / f0_ffn as two accumulating dots
    # (no sublane concat / materialized [2*H4, TT] copy).  bias_ef_s already
    # contains b_e2 + b_f2 + step_ffn(diffusion_step) for this batch element.
    h = h + jnp.dot(we2_ref[...], eh, preferred_element_type=f32)
    h = h + jnp.dot(wf2_ref[...], fh, preferred_element_type=f32)
    h = h + bias_ef_s_ref[0]

    # TODO(synk): FFT_Block stack skipped (definition not provided).

    # projection: Conv1d -> GELU -> Conv1d     -> [Da, TT]
    p = _gelu_tanh(
        jnp.dot(wp1_ref[...], h, preferred_element_type=f32) + b_p1)
    out_ref[0] = (
        jnp.dot(wp2_ref[...], p, preferred_element_type=f32) + b_p2)


# -------------------- wrapper --------------------

def network_forward(params, noised_latents, encodings, f0s, diffusion_steps,
                    *, time_tile=2048):
    """noised_latents: [B, Latent_d, T], encodings: [B, Enc_d, T],
       f0s: [B, T], diffusion_steps: [B].  Returns ([B, Latent_d, T], None)."""
    B, Cl, T = noised_latents.shape
    Ce = encodings.shape[1]
    D = params["w_pre"].shape[0]
    H4 = params["w_e1"].shape[0]
    Da = params["w_p2"].shape[0]

    # ---- step_ffn hoisted to plain JAX (depends only on the B scalars) ----
    steps = diffusion_steps.astype(jnp.float32)
    ang = steps[:, None] * params["div_term"][None, :]              # [B, D/2]
    emb = jnp.concatenate([jnp.sin(ang), jnp.cos(ang)], axis=1)     # [B, D]
    s = _gelu_tanh(emb @ params["w_s1"].T + params["b_s1"][:, 0])
    s = s @ params["w_s2"].T + params["b_s2"][:, 0]                 # [B, D]

    # Fold step contribution + e2/f2 biases into a per-batch column [B, D, 1].
    bias_ef_s = (params["b_e2"][:, 0] + params["b_f2"][:, 0])[None, :] + s
    bias_ef_s = bias_ef_s[:, :, None].astype(jnp.float32)

    # Pack the remaining bias columns into a single array (one DMA stream).
    bias_all = jnp.concatenate(
        [params["b_pre"], params["b_e1"], params["b_f1"],
         params["b_p1"], params["b_p2"]], axis=0).astype(jnp.float32)
    n_bias = 2 * D + 2 * H4 + Da

    # ---- time tile: lane-dense, no wrapper pad; Pallas masks ragged block ----
    TT = max(128, min(_round_up(time_tile, 128), _round_up(T, 128)))
    if B == 1:
        # keep >= 2 grid steps so v7x's second TensorCore has work
        TT = min(TT, max(128, _round_up(pl.cdiv(T, 2), 128)))
    n_t = pl.cdiv(T, TT)
    grid = (B, n_t)

    x_in = noised_latents.astype(jnp.float32)
    e_in = encodings.astype(jnp.float32)
    f_in = f0s.astype(jnp.float32)[:, None, :]          # reshape only, no copy

    def act_spec(c):
        return pl.BlockSpec((1, c, TT), lambda b, t: (b, 0, t))

    def w_spec(shape):
        return pl.BlockSpec(shape, lambda b, t: (0,) * len(shape))

    in_specs = [
        act_spec(Cl),                                      # noised latents
        act_spec(Ce),                                      # encodings
        act_spec(1),                                       # f0s
        pl.BlockSpec((1, D, 1), lambda b, t: (b, 0, 0)),   # per-batch bias col
        w_spec((D, Cl)),                                   # prenet W
        w_spec((H4, Ce)),                                  # encoding_ffn conv1 W
        w_spec((H4, 1)),                                   # f0_ffn linear1 W
        w_spec((D, H4)),                                   # encoding_ffn conv2 W
        w_spec((D, H4)),                                   # f0_ffn linear2 W
        w_spec((D, D)),                                    # projection conv1 W
        w_spec((Da, D)),                                   # projection conv2 W
        w_spec((n_bias, 1)),                               # packed biases
    ]

    kernel = functools.partial(_network_kernel, D=D, H4=H4, Da=Da)

    out = pl.pallas_call(
        kernel,
        out_shape=jax.ShapeDtypeStruct((B, Da, T), jnp.float32),
        grid_spec=pltpu.PrefetchScalarGridSpec(
            num_scalar_prefetch=0,
            grid=grid,
            in_specs=in_specs,
            out_specs=pl.BlockSpec((1, Da, TT), lambda b, t: (b, 0, t)),
        ),
        compiler_params=pltpu.CompilerParams(
            dimension_semantics=("parallel", "parallel"),
            # above v5e's 16 MiB / v6e's 32 MiB scoped defaults, below v7x's
            # 64 MiB physical VMEM
            vmem_limit_bytes=48 * 1024 * 1024),
    )(x_in, e_in, f_in, bias_ef_s,
      params["w_pre"], params["w_e1"], params["w_f1"],
      params["w_e2"], params["w_f2"],
      params["w_p1"], params["w_p2"], bias_all)

    prediction_tokens = None  # use_token_predictor defaults to False
    return out, prediction_tokens


# -------------------- pure-JAX reference (correctness check) --------------------

def network_reference(params, noised_latents, encodings, f0s, diffusion_steps):
    def conv1x1(w, b, x):        # w: [O, I], b: [O, 1], x: [B, I, T]
        return jnp.einsum("oi,bit->bot", w, x) + b[None]

    x = _gelu_tanh(conv1x1(params["w_pre"], params["b_pre"], noised_latents))
    e = _gelu_tanh(conv1x1(params["w_e1"], params["b_e1"], encodings))
    e = conv1x1(params["w_e2"], params["b_e2"], e)
    f = _gelu_tanh(params["w_f1"][None] * f0s[:, None, :] + params["b_f1"][None])
    f = conv1x1(params["w_f2"], params["b_f2"], f)
    ang = diffusion_steps[:, None] * params["div_term"][None, :]
    emb = jnp.concatenate([jnp.sin(ang), jnp.cos(ang)], axis=1)
    s = _gelu_tanh(emb @ params["w_s1"].T + params["b_s1"][:, 0])
    s = s @ params["w_s2"].T + params["b_s2"][:, 0]
    x = x + e + f + s[:, :, None]
    p = _gelu_tanh(conv1x1(params["w_p1"], params["b_p1"], x))
    out = conv1x1(params["w_p2"], params["b_p2"], p)
    return out


# -------------------- deterministic parameter init --------------------

def init_params(key, *, audio_codec_size, encoder_size, diffusion_size):
    D, H4 = diffusion_size, diffusion_size * 4
    half = D // 2
    div_term = jnp.exp(
        jnp.arange(half, dtype=jnp.float32) * -(math.log(10000.0) / (half - 1)))

    def lin(key, cin, cout):     # weights stored [Cout, Cin], bias [Cout, 1]
        kw, kb = jax.random.split(key)
        scale = 1.0 / math.sqrt(cin)
        w = jax.random.uniform(kw, (cout, cin), jnp.float32, -scale, scale)
        b = jax.random.uniform(kb, (cout, 1), jnp.float32, -scale, scale)
        return w, b

    keys = jax.random.split(key, 9)
    p = {"div_term": div_term}
    p["w_pre"], p["b_pre"] = lin(keys[0], audio_codec_size, D)
    p["w_e1"], p["b_e1"] = lin(keys[1], encoder_size, H4)
    p["w_e2"], p["b_e2"] = lin(keys[2], H4, D)
    p["w_f1"], p["b_f1"] = lin(keys[3], 1, H4)
    p["w_f2"], p["b_f2"] = lin(keys[4], H4, D)
    p["w_s1"], p["b_s1"] = lin(keys[5], D, H4)
    p["w_s2"], p["b_s2"] = lin(keys[6], H4, D)
    p["w_p1"], p["b_p1"] = lin(keys[7], D, D)
    # NOTE: PyTorch uses w_init_gain='zero' for the final projection; we use
    # small random values so the numeric check is non-trivial.
    p["w_p2"], p["b_p2"] = lin(keys[8], D, audio_codec_size)
    return p


# -------------------- main --------------------

if __name__ == "__main__":
    # Small hyper-parameters consistent with the module
    AUDIO_CODEC_SIZE = 16   # hp.Audio_Codec_Size (Latent_d)
    ENCODER_SIZE = 16       # hp.Encoder.Size (Enc_d)
    DIFFUSION_SIZE = 32     # hp.Diffusion.Size
    B, T = 2, 400           # batch, Dec_t (not a multiple of 128 -> ragged path)

    key = jax.random.PRNGKey(0)
    k_par, k_lat, k_enc, k_f0, k_step = jax.random.split(key, 5)

    params = init_params(k_par,
                         audio_codec_size=AUDIO_CODEC_SIZE,
                         encoder_size=ENCODER_SIZE,
                         diffusion_size=DIFFUSION_SIZE)

    noised_latents = jax.random.normal(k_lat, (B, AUDIO_CODEC_SIZE, T), jnp.float32)
    encodings = jax.random.normal(k_enc, (B, ENCODER_SIZE, T), jnp.float32)
    f0s = jax.random.uniform(k_f0, (B, T), jnp.float32, 0.0, 400.0)
    diffusion_steps = jax.random.uniform(k_step, (B,), jnp.float32, 0.0, 1000.0)

    forward = jax.jit(
        lambda p, a, b, c, d: network_forward(p, a, b, c, d, time_tile=2048))

    out, pred_tokens = forward(params, noised_latents, encodings, f0s,
                               diffusion_steps)
    out = jax.block_until_ready(out)

    ref = network_reference(params, noised_latents, encodings, f0s,
                            diffusion_steps)
    assert out.shape == (B, AUDIO_CODEC_SIZE, T)
    assert pred_tokens is None
    assert jnp.allclose(out, ref, atol=1e-3, rtol=1e-3), "mismatch vs JAX reference"

    print("KERNEL_OK")
</pallas_src>

<mosaic_0001>
module attributes {stable_mosaic.version = 11 : i64} {
  func.func @_network_kernel(%arg0: i32, %arg1: i32, %arg2: memref<1x16x512xf32, #tpu.memory_space<vmem>>, %arg3: memref<1x16x512xf32, #tpu.memory_space<vmem>>, %arg4: memref<1x1x512xf32, #tpu.memory_space<vmem>>, %arg5: memref<1x32x1xf32, #tpu.memory_space<vmem>>, %arg6: memref<32x16xf32, #tpu.memory_space<vmem>>, %arg7: memref<128x16xf32, #tpu.memory_space<vmem>>, %arg8: memref<128x1xf32, #tpu.memory_space<vmem>>, %arg9: memref<32x128xf32, #tpu.memory_space<vmem>>, %arg10: memref<32x128xf32, #tpu.memory_space<vmem>>, %arg11: memref<32x32xf32, #tpu.memory_space<vmem>>, %arg12: memref<16x32xf32, #tpu.memory_space<vmem>>, %arg13: memref<336x1xf32, #tpu.memory_space<vmem>>, %arg14: memref<1x16x512xf32, #tpu.memory_space<vmem>>) attributes {dimension_semantics = [#tpu.dimension_semantics<parallel>, #tpu.dimension_semantics<parallel>], iteration_bounds = array<i64: 2, 1>, scalar_prefetch = 0 : i64, scratch_operands = 0 : i64, tpu.core_type = #tpu.core_type<tc>, window_params = [{transform_indices = @transform_0, window_bounds = array<i64: 1, 16, 512>}, {transform_indices = @transform_1, window_bounds = array<i64: 1, 16, 512>}, {transform_indices = @transform_2, window_bounds = array<i64: 1, 1, 512>}, {transform_indices = @transform_3, window_bounds = array<i64: 1, 32, 1>}, {pipeline_mode = #tpu.pipeline_mode<synchronous>, transform_indices = @transform_4, window_bounds = array<i64: 32, 16>}, {pipeline_mode = #tpu.pipeline_mode<synchronous>, transform_indices = @transform_5, window_bounds = array<i64: 128, 16>}, {pipeline_mode = #tpu.pipeline_mode<synchronous>, transform_indices = @transform_6, window_bounds = array<i64: 128, 1>}, {pipeline_mode = #tpu.pipeline_mode<synchronous>, transform_indices = @transform_7, window_bounds = array<i64: 32, 128>}, {pipeline_mode = #tpu.pipeline_mode<synchronous>, transform_indices = @transform_8, window_bounds = array<i64: 32, 128>}, {pipeline_mode = #tpu.pipeline_mode<synchronous>, transform_indices = @transform_9, window_bounds = array<i64: 32, 32>}, {pipeline_mode = #tpu.pipeline_mode<synchronous>, transform_indices = @transform_10, window_bounds = array<i64: 16, 32>}, {pipeline_mode = #tpu.pipeline_mode<synchronous>, transform_indices = @transform_11, window_bounds = array<i64: 336, 1>}, {transform_indices = @transform_12, window_bounds = array<i64: 1, 16, 512>}]} {
    %c0 = arith.constant 0 : index
    %c0_0 = arith.constant 0 : index
    %c0_1 = arith.constant 0 : index
    %0 = vector.load %arg2[%c0, %c0_0, %c0_1] : memref<1x16x512xf32, #tpu.memory_space<vmem>>, vector<1x16x512xf32>
    %1 = vector.shape_cast %0 : vector<1x16x512xf32> to vector<16x512xf32>
    %c0_2 = arith.constant 0 : index
    %c0_3 = arith.constant 0 : index
    %c0_4 = arith.constant 0 : index
    %2 = vector.load %arg3[%c0_2, %c0_3, %c0_4] : memref<1x16x512xf32, #tpu.memory_space<vmem>>, vector<1x16x512xf32>
    %3 = vector.shape_cast %2 : vector<1x16x512xf32> to vector<16x512xf32>
    %c0_5 = arith.constant 0 : index
    %c0_6 = arith.constant 0 : index
    %c0_7 = arith.constant 0 : index
    %4 = vector.load %arg4[%c0_5, %c0_6, %c0_7] : memref<1x1x512xf32, #tpu.memory_space<vmem>>, vector<1x1x512xf32>
    %5 = vector.shape_cast %4 : vector<1x1x512xf32> to vector<1x512xf32>
    %c0_8 = arith.constant 0 : index
    %c0_9 = arith.constant 0 : index
    %6 = vector.load %arg13[%c0_8, %c0_9] : memref<336x1xf32, #tpu.memory_space<vmem>>, vector<32x1xf32>
    %c32 = arith.constant 32 : index
    %c0_10 = arith.constant 0 : index
    %7 = vector.load %arg13[%c32, %c0_10] : memref<336x1xf32, #tpu.memory_space<vmem>>, vector<128x1xf32>
    %c160 = arith.constant 160 : index
    %c0_11 = arith.constant 0 : index
    %8 = vector.load %arg13[%c160, %c0_11] : memref<336x1xf32, #tpu.memory_space<vmem>>, vector<128x1xf32>
    %c288 = arith.constant 288 : index
    %c0_12 = arith.constant 0 : index
    %9 = vector.load %arg13[%c288, %c0_12] : memref<336x1xf32, #tpu.memory_space<vmem>>, vector<32x1xf32>
    %c320 = arith.constant 320 : index
    %c0_13 = arith.constant 0 : index
    %10 = vector.load %arg13[%c320, %c0_13] : memref<336x1xf32, #tpu.memory_space<vmem>>, vector<16x1xf32>
    %c0_14 = arith.constant 0 : index
    %c0_15 = arith.constant 0 : index
    %11 = vector.load %arg6[%c0_14, %c0_15] : memref<32x16xf32, #tpu.memory_space<vmem>>, vector<32x16xf32>
    %cst = arith.constant dense<0.000000e+00> : vector<32x512xf32>
    %12 = tpu.matmul %11, %1, %cst {dimension_numbers = #tpu.dot_dimension_numbers<[1], [0], [0], [1], [0, 0, 1, 1], [], []>} : vector<32x16xf32>, vector<16x512xf32>, vector<32x512xf32> -> vector<32x512xf32>
    %13 = vector.broadcast %6 : vector<32x1xf32> to vector<32x512xf32>
    %14 = arith.addf %12, %13 : vector<32x512xf32>
    %cst_16 = arith.constant 5.000000e-01 : f32
    %15 = vector.broadcast %cst_16 : f32 to vector<32x512xf32>
    %16 = arith.mulf %15, %14 : vector<32x512xf32>
    %cst_17 = arith.constant 4.471500e-02 : f32
    %17 = vector.broadcast %cst_17 : f32 to vector<32x512xf32>
    %18 = arith.mulf %17, %14 : vector<32x512xf32>
    %19 = arith.mulf %18, %14 : vector<32x512xf32>
    %20 = arith.mulf %19, %14 : vector<32x512xf32>
    %21 = arith.addf %14, %20 : vector<32x512xf32>
    %cst_18 = arith.constant 0.797884583 : f32
    %22 = vector.broadcast %cst_18 : f32 to vector<32x512xf32>
    %23 = arith.mulf %22, %21 : vector<32x512xf32>
    %24 = math.tanh %23 : vector<32x512xf32>
    %cst_19 = arith.constant 1.000000e+00 : f32
    %25 = vector.broadcast %cst_19 : f32 to vector<32x512xf32>
    %26 = arith.addf %25, %24 : vector<32x512xf32>
    %27 = arith.mulf %16, %26 : vector<32x512xf32>
    %c0_20 = arith.constant 0 : index
    %c0_21 = arith.constant 0 : index
    %28 = vector.load %arg7[%c0_20, %c0_21] : memref<128x16xf32, #tpu.memory_space<vmem>>, vector<128x16xf32>
    %cst_22 = arith.constant dense<0.000000e+00> : vector<128x512xf32>
    %29 = tpu.matmul %28, %3, %cst_22 {dimension_numbers = #tpu.dot_dimension_numbers<[1], [0], [0], [1], [0, 0, 1, 1], [], []>} : vector<128x16xf32>, vector<16x512xf32>, vector<128x512xf32> -> vector<128x512xf32>
    %30 = vector.broadcast %7 : vector<128x1xf32> to vector<128x512xf32>
    %31 = arith.addf %29, %30 : vector<128x512xf32>
    %cst_23 = arith.constant 5.000000e-01 : f32
    %32 = vector.broadcast %cst_23 : f32 to vector<128x512xf32>
    %33 = arith.mulf %32, %31 : vector<128x512xf32>
    %cst_24 = arith.constant 4.471500e-02 : f32
    %34 = vector.broadcast %cst_24 : f32 to vector<128x512xf32>
    %35 = arith.mulf %34, %31 : vector<128x512xf32>
    %36 = arith.mulf %35, %31 : vector<128x512xf32>
    %37 = arith.mulf %36, %31 : vector<128x512xf32>
    %38 = arith.addf %31, %37 : vector<128x512xf32>
    %cst_25 = arith.constant 0.797884583 : f32
    %39 = vector.broadcast %cst_25 : f32 to vector<128x512xf32>
    %40 = arith.mulf %39, %38 : vector<128x512xf32>
    %41 = math.tanh %40 : vector<128x512xf32>
    %cst_26 = arith.constant 1.000000e+00 : f32
    %42 = vector.broadcast %cst_26 : f32 to vector<128x512xf32>
    %43 = arith.addf %42, %41 : vector<128x512xf32>
    %44 = arith.mulf %33, %43 : vector<128x512xf32>
    %c0_27 = arith.constant 0 : index
    %c0_28 = arith.constant 0 : index
    %45 = vector.load %arg8[%c0_27, %c0_28] : memref<128x1xf32, #tpu.memory_space<vmem>>, vector<128x1xf32>
    %46 = vector.broadcast %45 : vector<128x1xf32> to vector<128x512xf32>
    %47 = vector.broadcast %5 : vector<1x512xf32> to vector<128x512xf32>
    %48 = arith.mulf %46, %47 : vector<128x512xf32>
    %49 = vector.broadcast %8 : vector<128x1xf32> to vector<128x512xf32>
    %50 = arith.addf %48, %49 : vector<128x512xf32>
    %cst_29 = arith.constant 5.000000e-01 : f32
    %51 = vector.broadcast %cst_29 : f32 to vector<128x512xf32>
    %52 = arith.mulf %51, %50 : vector<128x512xf32>
    %cst_30 = arith.constant 4.471500e-02 : f32
    %53 = vector.broadcast %cst_30 : f32 to vector<128x512xf32>
    %54 = arith.mulf %53, %50 : vector<128x512xf32>
    %55 = arith.mulf %54, %50 : vector<128x512xf32>
    %56 = arith.mulf %55, %50 : vector<128x512xf32>
    %57 = arith.addf %50, %56 : vector<128x512xf32>
    %cst_31 = arith.constant 0.797884583 : f32
    %58 = vector.broadcast %cst_31 : f32 to vector<128x512xf32>
    %59 = arith.mulf %58, %57 : vector<128x512xf32>
    %60 = math.tanh %59 : vector<128x512xf32>
    %cst_32 = arith.constant 1.000000e+00 : f32
    %61 = vector.broadcast %cst_32 : f32 to vector<128x512xf32>
    %62 = arith.addf %61, %60 : vector<128x512xf32>
    %63 = arith.mulf %52, %62 : vector<128x512xf32>
    %c0_33 = arith.constant 0 : index
    %c0_34 = arith.constant 0 : index
    %64 = vector.load %arg9[%c0_33, %c0_34] : memref<32x128xf32, #tpu.memory_space<vmem>>, vector<32x128xf32>
    %cst_35 = arith.constant dense<0.000000e+00> : vector<32x512xf32>
    %65 = tpu.matmul %64, %44, %cst_35 {dimension_numbers = #tpu.dot_dimension_numbers<[1], [0], [0], [1], [0, 0, 1, 1], [], []>} : vector<32x128xf32>, vector<128x512xf32>, vector<32x512xf32> -> vector<32x512xf32>
    %66 = arith.addf %27, %65 : vector<32x512xf32>
    %c0_36 = arith.constant 0 : index
    %c0_37 = arith.constant 0 : index
    %67 = vector.load %arg10[%c0_36, %c0_37] : memref<32x128xf32, #tpu.memory_space<vmem>>, vector<32x128xf32>
    %cst_38 = arith.constant dense<0.000000e+00> : vector<32x512xf32>
    %68 = tpu.matmul %67, %63, %cst_38 {dimension_numbers = #tpu.dot_dimension_numbers<[1], [0], [0], [1], [0, 0, 1, 1], [], []>} : vector<32x128xf32>, vector<128x512xf32>, vector<32x512xf32> -> vector<32x512xf32>
    %69 = arith.addf %66, %68 : vector<32x512xf32>
    %c0_39 = arith.constant 0 : index
    %c0_40 = arith.constant 0 : index
    %c0_41 = arith.constant 0 : index
    %70 = vector.load %arg5[%c0_39, %c0_40, %c0_41] : memref<1x32x1xf32, #tpu.memory_space<vmem>>, vector<1x32x1xf32>
    %71 = vector.shape_cast %70 : vector<1x32x1xf32> to vector<32x1xf32>
    %72 = vector.broadcast %71 : vector<32x1xf32> to vector<32x512xf32>
    %73 = arith.addf %69, %72 : vector<32x512xf32>
    %c0_42 = arith.constant 0 : index
    %c0_43 = arith.constant 0 : index
    %74 = vector.load %arg11[%c0_42, %c0_43] : memref<32x32xf32, #tpu.memory_space<vmem>>, vector<32x32xf32>
    %cst_44 = arith.constant dense<0.000000e+00> : vector<32x512xf32>
    %75 = tpu.matmul %74, %73, %cst_44 {dimension_numbers = #tpu.dot_dimension_numbers<[1], [0], [0], [1], [0, 0, 1, 1], [], []>} : vector<32x32xf32>, vector<32x512xf32>, vector<32x512xf32> -> vector<32x512xf32>
    %76 = vector.broadcast %9 : vector<32x1xf32> to vector<32x512xf32>
    %77 = arith.addf %75, %76 : vector<32x512xf32>
    %cst_45 = arith.constant 5.000000e-01 : f32
    %78 = vector.broadcast %cst_45 : f32 to vector<32x512xf32>
    %79 = arith.mulf %78, %77 : vector<32x512xf32>
    %cst_46 = arith.constant 4.471500e-02 : f32
    %80 = vector.broadcast %cst_46 : f32 to vector<32x512xf32>
    %81 = arith.mulf %80, %77 : vector<32x512xf32>
    %82 = arith.mulf %81, %77 : vector<32x512xf32>
    %83 = arith.mulf %82, %77 : vector<32x512xf32>
    %84 = arith.addf %77, %83 : vector<32x512xf32>
    %cst_47 = arith.constant 0.797884583 : f32
    %85 = vector.broadcast %cst_47 : f32 to vector<32x512xf32>
    %86 = arith.mulf %85, %84 : vector<32x512xf32>
    %87 = math.tanh %86 : vector<32x512xf32>
    %cst_48 = arith.constant 1.000000e+00 : f32
    %88 = vector.broadcast %cst_48 : f32 to vector<32x512xf32>
    %89 = arith.addf %88, %87 : vector<32x512xf32>
    %90 = arith.mulf %79, %89 : vector<32x512xf32>
    %c0_49 = arith.constant 0 : index
    %c0_50 = arith.constant 0 : index
    %91 = vector.load %arg12[%c0_49, %c0_50] : memref<16x32xf32, #tpu.memory_space<vmem>>, vector<16x32xf32>
    %cst_51 = arith.constant dense<0.000000e+00> : vector<16x512xf32>
    %92 = tpu.matmul %91, %90, %cst_51 {dimension_numbers = #tpu.dot_dimension_numbers<[1], [0], [0], [1], [0, 0, 1, 1], [], []>} : vector<16x32xf32>, vector<32x512xf32>, vector<16x512xf32> -> vector<16x512xf32>
    %93 = vector.broadcast %10 : vector<16x1xf32> to vector<16x512xf32>
    %94 = arith.addf %92, %93 : vector<16x512xf32>
    %c0_52 = arith.constant 0 : index
    %c0_53 = arith.constant 0 : index
    %c0_54 = arith.constant 0 : index
    %95 = vector.load %arg14[%c0_52, %c0_53, %c0_54] : memref<1x16x512xf32, #tpu.memory_space<vmem>>, vector<1x16x512xf32>
    %96 = vector.shape_cast %95 : vector<1x16x512xf32> to vector<16x512xf32>
    %97 = vector.shape_cast %94 : vector<16x512xf32> to vector<1x16x512xf32>
    tpu.vector_store %arg14[%c0_52, %c0_53, %c0_54], %97 {strides = array<i32>} : memref<1x16x512xf32, #tpu.memory_space<vmem>>, vector<1x16x512xf32>,
    return
  }
  func.func @transform_0(%arg0: i32, %arg1: i32) -> (i32, i32, i32) {
    %c0_i32 = arith.constant 0 : i32
    %c0_i32_0 = arith.constant 0 : i32
    return %arg0, %c0_i32, %arg1 : i32, i32, i32
  }
  func.func @transform_1(%arg0: i32, %arg1: i32) -> (i32, i32, i32) {
    %c0_i32 = arith.constant 0 : i32
    %c0_i32_0 = arith.constant 0 : i32
    return %arg0, %c0_i32, %arg1 : i32, i32, i32
  }
  func.func @transform_2(%arg0: i32, %arg1: i32) -> (i32, i32, i32) {
    %c0_i32 = arith.constant 0 : i32
    %c0_i32_0 = arith.constant 0 : i32
    return %arg0, %c0_i32, %arg1 : i32, i32, i32
  }
  func.func @transform_3(%arg0: i32, %arg1: i32) -> (i32, i32, i32) {
    %c0_i32 = arith.constant 0 : i32
    %c0_i32_0 = arith.constant 0 : i32
    %c0_i32_1 = arith.constant 0 : i32
    return %arg0, %c0_i32, %c0_i32_0 : i32, i32, i32
  }
  func.func @transform_4(%arg0: i32, %arg1: i32) -> (i32, i32) {
    %c0_i32 = arith.constant 0 : i32
    %c0_i32_0 = arith.constant 0 : i32
    %c0_i32_1 = arith.constant 0 : i32
    return %c0_i32, %c0_i32_0 : i32, i32
  }
  func.func @transform_5(%arg0: i32, %arg1: i32) -> (i32, i32) {
    %c0_i32 = arith.constant 0 : i32
    %c0_i32_0 = arith.constant 0 : i32
    %c0_i32_1 = arith.constant 0 : i32
    return %c0_i32, %c0_i32_0 : i32, i32
  }
  func.func @transform_6(%arg0: i32, %arg1: i32) -> (i32, i32) {
    %c0_i32 = arith.constant 0 : i32
    %c0_i32_0 = arith.constant 0 : i32
    %c0_i32_1 = arith.constant 0 : i32
    return %c0_i32, %c0_i32_0 : i32, i32
  }
  func.func @transform_7(%arg0: i32, %arg1: i32) -> (i32, i32) {
    %c0_i32 = arith.constant 0 : i32
    %c0_i32_0 = arith.constant 0 : i32
    %c0_i32_1 = arith.constant 0 : i32
    return %c0_i32, %c0_i32_0 : i32, i32
  }
  func.func @transform_8(%arg0: i32, %arg1: i32) -> (i32, i32) {
    %c0_i32 = arith.constant 0 : i32
    %c0_i32_0 = arith.constant 0 : i32
    %c0_i32_1 = arith.constant 0 : i32
    return %c0_i32, %c0_i32_0 : i32, i32
  }
  func.func @transform_9(%arg0: i32, %arg1: i32) -> (i32, i32) {
    %c0_i32 = arith.constant 0 : i32
    %c0_i32_0 = arith.constant 0 : i32
    %c0_i32_1 = arith.constant 0 : i32
    return %c0_i32, %c0_i32_0 : i32, i32
  }
  func.func @transform_10(%arg0: i32, %arg1: i32) -> (i32, i32) {
    %c0_i32 = arith.constant 0 : i32
    %c0_i32_0 = arith.constant 0 : i32
    %c0_i32_1 = arith.constant 0 : i32
    return %c0_i32, %c0_i32_0 : i32, i32
  }
  func.func @transform_11(%arg0: i32, %arg1: i32) -> (i32, i32) {
    %c0_i32 = arith.constant 0 : i32
    %c0_i32_0 = arith.constant 0 : i32
    %c0_i32_1 = arith.constant 0 : i32
    return %c0_i32, %c0_i32_0 : i32, i32
  }
  func.func @transform_12(%arg0: i32, %arg1: i32) -> (i32, i32, i32) {
    %c0_i32 = arith.constant 0 : i32
    %c0_i32_0 = arith.constant 0 : i32
    return %arg0, %c0_i32, %arg1 : i32, i32, i32
  }
}

</mosaic_0001>

<llo_original>
// kernel: _lambda_.1
$region0: #{_lambda_.1}
  #allocation0 [shape = 'u32[]', space=smem, size = 0x4, offset = 0x4, fixed_abs, tag = 'smem constant byte address 0x4 - core index']
  #allocation1 [shape = 'u32[72,128]{1,0:T(1,128)}', space=vmem, size = 0x9000, scoped, tag = 'internal scratch']
  %s0 = inlined_call_operand.vmem [shape: f32[2,16,400], index: 0, kind: input, shape index: {}]
  %s1 = inlined_call_operand.vmem [shape: f32[2,16,400], index: 1, kind: input, shape index: {}]
  %s2 = inlined_call_operand.vmem [shape: f32[2,1,400], index: 2, kind: input, shape index: {}]
  %s3 = inlined_call_operand.vmem [shape: f32[2,32,1], index: 3, kind: input, shape index: {}]
  %s4 = inlined_call_operand.vmem [shape: f32[32,16], index: 4, kind: input, shape index: {}]
  %s5 = inlined_call_operand.vmem [shape: f32[128,16], index: 5, kind: input, shape index: {}]
  %s6 = inlined_call_operand.vmem [shape: f32[128,1], index: 6, kind: input, shape index: {}]
  %s7 = inlined_call_operand.vmem [shape: f32[32,128], index: 7, kind: input, shape index: {}]
  %s8 = inlined_call_operand.vmem [shape: f32[32,128], index: 8, kind: input, shape index: {}]
  %s9 = inlined_call_operand.vmem [shape: f32[32,32], index: 9, kind: input, shape index: {}]
  %s10 = inlined_call_operand.vmem [shape: f32[16,32], index: 10, kind: input, shape index: {}]
  %s11 = inlined_call_operand.vmem [shape: f32[336,1], index: 11, kind: input, shape index: {}]
  %s12 = inlined_call_operand.hbm [shape: f32[2,16,400], index: 12, kind: output, shape index: {}]
  %s13 = sld [smem:[#allocation0]]
  $region81: #{_lambda_.1} parent=0
    _
  %s15 = ssub.s32 1, %s13
  %s16 = scalar_select 0, %s15, %s13
  $region1: #{_lambda_.1} parent=0
    #allocation2 [shape = 'u8[65536]{0}', space=vmem, size = 0x10000, scoped, tag = 'output window, operand 0']
    #allocation3 [shape = 's32[2]{0}', space=sflag, size = 0x8, scoped, tag = 'scoped memory for _lambda_.1']
    %17 = vsyncpa [#allocation3], 0
    %s18 = scalar_lea.sflag [#allocation3], 1
    %19 = vsyncpa %s18, 0
    loop: start=0, step=1, limit=4
    $region2: #{_lambda_.1} parent=1 // loop_pre_header
      _
    $region3: #{_lambda_.1} parent=1 // loop_header
      %s21 = sphi 0, %s25
      %p22 = scmp.ge.s32.totalorder %s21, 4
      %s28 = sphi 0, %s40
      %s29 = sphi 0, %s36
      %s30 = sphi 0, %s28
      %s31 = sphi 0, %s29
      %s32 = sphi 0, %s30
      %s33 = sphi 0, %s31
      %s45 = sphi 0, %s47
      %s48 = sphi 0, %s45
      %s49 = sphi 0, %s48
      %s65 = sphi 0, %s49
      %s73 = sphi 0, %s75
      %s76 = sphi 0, %s73
      %s77 = sphi 0, %s76
      %s93 = sphi 0, %s77
      %s101 = sphi 0, %s103
      %s104 = sphi 0, %s101
      %s105 = sphi 0, %s104
      %s121 = sphi 0, %s105
      %s127 = sphi 0, %s129
      %s130 = sphi 0, %s127
      %s131 = sphi 0, %s130
      %s147 = sphi 0, %s131
      %s151 = sphi 0, %s151
      %s153 = sphi 0, %s151
      %s154 = sphi 0, %s153
      %s168 = sphi 0, %s154
      %s172 = sphi 0, %s172
      %s174 = sphi 0, %s172
      %s175 = sphi 0, %s174
      %s189 = sphi 0, %s175
      %s193 = sphi 0, %s193
      %s195 = sphi 0, %s193
      %s196 = sphi 0, %s195
      %s210 = sphi 0, %s196
      %s214 = sphi 0, %s214
      %s216 = sphi 0, %s214
      %s217 = sphi 0, %s216
      %s231 = sphi 0, %s217
      %s235 = sphi 0, %s235
      %s237 = sphi 0, %s235
      %s238 = sphi 0, %s237
      %s252 = sphi 0, %s238
      %s256 = sphi 0, %s256
      %s258 = sphi 0, %s256
      %s259 = sphi 0, %s258
      %s273 = sphi 0, %s259
      %s277 = sphi 0, %s277
      %s279 = sphi 0, %s277
      %s280 = sphi 0, %s279
      %s294 = sphi 0, %s280
      %s298 = sphi 0, %s298
      %s300 = sphi 0, %s298
      %s301 = sphi 0, %s300
      %s315 = sphi 0, %s301
      %s323 = sphi 0, %s325
      %s326 = sphi 0, %s323
      %s327 = sphi 0, %s326
      %s343 = sphi 0, %s327
    $region4: #{_lambda_.1} parent=1 // loop_header_branch
      %24 = sbr.rel (%p22) target = $region8
    $region5: #{_lambda_.1} parent=1 // loop_body
      %s26 = ssub.s32 %s21, 1
      %s27 = ssub.s32 %s21, 2
      %s34 = sadd.s32 1, %s29
      %p35 = scmp.ge.s32.totalorder %s34, 1
      %s36 = scalar_select %p35, 0, %s34
      %s37 = sadd.s32 1, %s28
      %s38 = scalar_select %p35, %s37, %s28
      %p39 = scmp.ge.s32.totalorder %s38, 2
      %s40 = scalar_select %p39, 0, %s38
      %s41 = ssub.s32 %s28, %s40
      %s42 = ssub.s32 %s29, %s36
      %s43 = sor.u32 %s41, %s42
      %p44 = scmp.eq.s32.totalorder %s43, 0
      %s46 = sadd.s32 %s45, 1
      %s47 = scalar_select %p44, %s45, %s46
      %p50 = pneg %p44
      %p51 = scmp.eq.s32.totalorder %s21, 1
      %p52 = por %p50, %p51
      %p53 = scmp.ne.s32.totalorder %s45, %s48
      %p54 = scmp.eq.s32.totalorder %s21, 0
      %p55 = por %p53, %p54
      %p56 = scmp.ne.s32.totalorder %s45, %s48
      %p57 = scmp.eq.s32.totalorder %s26, 1
      %p58 = por %p56, %p57
      %p59 = scmp.ne.s32.totalorder %s48, %s49
      %p60 = scmp.eq.s32.totalorder %s26, 0
      %p61 = por %p59, %p60
      %p62 = scmp.ne.s32.totalorder %s48, %s49
      %p63 = scmp.eq.s32.totalorder %s27, 1
      %p64 = por %p62, %p63
      %p66 = scmp.ne.s32.totalorder %s49, %s65
      %p67 = scmp.eq.s32.totalorder %s27, 0
      %p68 = por %p66, %p67
      %s69 = ssub.s32 %s28, %s40
      %s70 = ssub.s32 %s29, %s36
      %s71 = sor.u32 %s69, %s70
      %p72 = scmp.eq.s32.totalorder %s71, 0
      %s74 = sadd.s32 %s73, 1
      %s75 = scalar_select %p72, %s73, %s74
      %p78 = pneg %p72
      %p79 = scmp.eq.s32.totalorder %s21, 1
      %p80 = por %p78, %p79
      %p81 = scmp.ne.s32.totalorder %s73, %s76
      %p82 = scmp.eq.s32.totalorder %s21, 0
      %p83 = por %p81, %p82
      %p84 = scmp.ne.s32.totalorder %s73, %s76
      %p85 = scmp.eq.s32.totalorder %s26, 1
      %p86 = por %p84, %p85
      %p87 = scmp.ne.s32.totalorder %s76, %s77
      %p88 = scmp.eq.s32.totalorder %s26, 0
      %p89 = por %p87, %p88
      %p90 = scmp.ne.s32.totalorder %s76, %s77
      %p91 = scmp.eq.s32.totalorder %s27, 1
      %p92 = por %p90, %p91
      %p94 = scmp.ne.s32.totalorder %s77, %s93
      %p95 = scmp.eq.s32.totalorder %s27, 0
      %p96 = por %p94, %p95
      %s97 = ssub.s32 %s28, %s40
      %s98 = ssub.s32 %s29, %s36
      %s99 = sor.u32 %s97, %s98
      %p100 = scmp.eq.s32.totalorder %s99, 0
      %s102 = sadd.s32 %s101, 1
      %s103 = scalar_select %p100, %s101, %s102
      %p106 = pneg %p100
      %p107 = scmp.eq.s32.totalorder %s21, 1
      %p108 = por %p106, %p107
      %p109 = scmp.ne.s32.totalorder %s101, %s104
      %p110 = scmp.eq.s32.totalorder %s21, 0
      %p111 = por %p109, %p110
      %p112 = scmp.ne.s32.totalorder %s101, %s104
      %p113 = scmp.eq.s32.totalorder %s26, 1
      %p114 = por %p112, %p113
      %p115 = scmp.ne.s32.totalorder %s104, %s105
      %p116 = scmp.eq.s32.totalorder %s26, 0
      %p117 = por %p115, %p116
      %p118 = scmp.ne.s32.totalorder %s104, %s105
      %p119 = scmp.eq.s32.totalorder %s27, 1
      %p120 = por %p118, %p119
      %p122 = scmp.ne.s32.totalorder %s105, %s121
      %p123 = scmp.eq.s32.totalorder %s27, 0
      %p124 = por %p122, %p123
      %s125 = ssub.s32 %s28, %s40
      %p126 = scmp.eq.s32.totalorder %s125, 0
      %s128 = sadd.s32 %s127, 1
      %s129 = scalar_select %p126, %s127, %s128
      %p132 = pneg %p126
      %p133 = scmp.eq.s32.totalorder %s21, 1
      %p134 = por %p132, %p133
      %p135 = scmp.ne.s32.totalorder %s127, %s130
      %p136 = scmp.eq.s32.totalorder %s21, 0
      %p137 = por %p135, %p136
      %p138 = scmp.ne.s32.totalorder %s127, %s130
      %p139 = scmp.eq.s32.totalorder %s26, 1
      %p140 = por %p138, %p139
      %p141 = scmp.ne.s32.totalorder %s130, %s131
      %p142 = scmp.eq.s32.totalorder %s26, 0
      %p143 = por %p141, %p142
      %p144 = scmp.ne.s32.totalorder %s130, %s131
      %p145 = scmp.eq.s32.totalorder %s27, 1
      %p146 = por %p144, %p145
      %p148 = scmp.ne.s32.totalorder %s131, %s147
      %p149 = scmp.eq.s32.totalorder %s27, 0
      %p150 = por %p148, %p149
      %s152 = sadd.s32 %s151, 1
      %p155 = scmp.eq.s32.totalorder %s21, 1
      %p156 = scmp.ne.s32.totalorder %s151, %s153
      %p157 = scmp.eq.s32.totalorder %s21, 0
      %p158 = por %p156, %p157
      %p159 = scmp.ne.s32.totalorder %s151, %s153
      %p160 = scmp.eq.s32.totalorder %s26, 1
      %p161 = por %p159, %p160
      %p162 = scmp.ne.s32.totalorder %s153, %s154
      %p163 = scmp.eq.s32.totalorder %s26, 0
      %p164 = por %p162, %p163
      %p165 = scmp.ne.s32.totalorder %s153, %s154
      %p166 = scmp.eq.s32.totalorder %s27, 1
      %p167 = por %p165, %p166
      %p169 = scmp.ne.s32.totalorder %s154, %s168
      %p170 = scmp.eq.s32.totalorder %s27, 0
      %p171 = por %p169, %p170
      %s173 = sadd.s32 %s172, 1
      %p176 = scmp.eq.s32.totalorder %s21, 1
      %p177 = scmp.ne.s32.totalorder %s172, %s174
      %p178 = scmp.eq.s32.totalorder %s21, 0
      %p179 = por %p177, %p178
      %p180 = scmp.ne.s32.totalorder %s172, %s174
      %p181 = scmp.eq.s32.totalorder %s26, 1
      %p182 = por %p180, %p181
      %p183 = scmp.ne.s32.totalorder %s174, %s175
      %p184 = scmp.eq.s32.totalorder %s26, 0
      %p185 = por %p183, %p184
      %p186 = scmp.ne.s32.totalorder %s174, %s175
      %p187 = scmp.eq.s32.totalorder %s27, 1
      %p188 = por %p186, %p187
      %p190 = scmp.ne.s32.totalorder %s175, %s189
      %p191 = scmp.eq.s32.totalorder %s27, 0
      %p192 = por %p190, %p191
      %s194 = sadd.s32 %s193, 1
      %p197 = scmp.eq.s32.totalorder %s21, 1
      %p198 = scmp.ne.s32.totalorder %s193, %s195
      %p199 = scmp.eq.s32.totalorder %s21, 0
      %p200 = por %p198, %p199
      %p201 = scmp.ne.s32.totalorder %s193, %s195
      %p202 = scmp.eq.s32.totalorder %s26, 1
      %p203 = por %p201, %p202
      %p204 = scmp.ne.s32.totalorder %s195, %s196
      %p205 = scmp.eq.s32.totalorder %s26, 0
      %p206 = por %p204, %p205
      %p207 = scmp.ne.s32.totalorder %s195, %s196
      %p208 = scmp.eq.s32.totalorder %s27, 1
      %p209 = por %p207, %p208
      %p211 = scmp.ne.s32.totalorder %s196, %s210
      %p212 = scmp.eq.s32.totalorder %s27, 0
      %p213 = por %p211, %p212
      %s215 = sadd.s32 %s214, 1
      %p218 = scmp.eq.s32.totalorder %s21, 1
      %p219 = scmp.ne.s32.totalorder %s214, %s216
      %p220 = scmp.eq.s32.totalorder %s21, 0
      %p221 = por %p219, %p220
      %p222 = scmp.ne.s32.totalorder %s214, %s216
      %p223 = scmp.eq.s32.totalorder %s26, 1
      %p224 = por %p222, %p223
      %p225 = scmp.ne.s32.totalorder %s216, %s217
      %p226 = scmp.eq.s32.totalorder %s26, 0
      %p227 = por %p225, %p226
      %p228 = scmp.ne.s32.totalorder %s216, %s217
      %p229 = scmp.eq.s32.totalorder %s27, 1
      %p230 = por %p228, %p229
      %p232 = scmp.ne.s32.totalorder %s217, %s231
      %p233 = scmp.eq.s32.totalorder %s27, 0
      %p234 = por %p232, %p233
      %s236 = sadd.s32 %s235, 1
      %p239 = scmp.eq.s32.totalorder %s21, 1
      %p240 = scmp.ne.s32.totalorder %s235, %s237
      %p241 = scmp.eq.s32.totalorder %s21, 0
      %p242 = por %p240, %p241
      %p243 = scmp.ne.s32.totalorder %s235, %s237
      %p244 = scmp.eq.s32.totalorder %s26, 1
      %p245 = por %p243, %p244
      %p246 = scmp.ne.s32.totalorder %s237, %s238
      %p247 = scmp.eq.s32.totalorder %s26, 0
      %p248 = por %p246, %p247
      %p249 = scmp.ne.s32.totalorder %s237, %s238
      %p250 = scmp.eq.s32.totalorder %s27, 1
      %p251 = por %p249, %p250
      %p253 = scmp.ne.s32.totalorder %s238, %s252
      %p254 = scmp.eq.s32.totalorder %s27, 0
      %p255 = por %p253, %p254
      %s257 = sadd.s32 %s256, 1
      %p260 = scmp.eq.s32.totalorder %s21, 1
      %p261 = scmp.ne.s32.totalorder %s256, %s258
      %p262 = scmp.eq.s32.totalorder %s21, 0
      %p263 = por %p261, %p262
      %p264 = scmp.ne.s32.totalorder %s256, %s258
      %p265 = scmp.eq.s32.totalorder %s26, 1
      %p266 = por %p264, %p265
      %p267 = scmp.ne.s32.totalorder %s258, %s259
      %p268 = scmp.eq.s32.totalorder %s26, 0
      %p269 = por %p267, %p268
      %p270 = scmp.ne.s32.totalorder %s258, %s259
      %p271 = scmp.eq.s32.totalorder %s27, 1
      %p272 = por %p270, %p271
      %p274 = scmp.ne.s32.totalorder %s259, %s273
      %p275 = scmp.eq.s32.totalorder %s27, 0
      %p276 = por %p274, %p275
      %s278 = sadd.s32 %s277, 1
      %p281 = scmp.eq.s32.totalorder %s21, 1
      %p282 = scmp.ne.s32.totalorder %s277, %s279
      %p283 = scmp.eq.s32.totalorder %s21, 0
      %p284 = por %p282, %p283
      %p285 = scmp.ne.s32.totalorder %s277, %s279
      %p286 = scmp.eq.s32.totalorder %s26, 1
      %p287 = por %p285, %p286
      %p288 = scmp.ne.s32.totalorder %s279, %s280
      %p289 = scmp.eq.s32.totalorder %s26, 0
      %p290 = por %p288, %p289
      %p291 = scmp.ne.s32.totalorder %s279, %s280
      %p292 = scmp.eq.s32.totalorder %s27, 1
      %p293 = por %p291, %p292
      %p295 = scmp.ne.s32.totalorder %s280, %s294
      %p296 = scmp.eq.s32.totalorder %s27, 0
      %p297 = por %p295, %p296
      %s299 = sadd.s32 %s298, 1
      %p302 = scmp.eq.s32.totalorder %s21, 1
      %p303 = scmp.ne.s32.totalorder %s298, %s300
      %p304 = scmp.eq.s32.totalorder %s21, 0
      %p305 = por %p303, %p304
      %p306 = scmp.ne.s32.totalorder %s298, %s300
      %p307 = scmp.eq.s32.totalorder %s26, 1
      %p308 = por %p306, %p307
      %p309 = scmp.ne.s32.totalorder %s300, %s301
      %p310 = scmp.eq.s32.totalorder %s26, 0
      %p311 = por %p309, %p310
      %p312 = scmp.ne.s32.totalorder %s300, %s301
      %p313 = scmp.eq.s32.totalorder %s27, 1
      %p314 = por %p312, %p313
      %p316 = scmp.ne.s32.totalorder %s301, %s315
      %p317 = scmp.eq.s32.totalorder %s27, 0
      %p318 = por %p316, %p317
      %s319 = ssub.s32 %s28, %s40
      %s320 = ssub.s32 %s29, %s36
      %s321 = sor.u32 %s319, %s320
      %p322 = scmp.eq.s32.totalorder %s321, 0
      %s324 = sadd.s32 %s323, 1
      %s325 = scalar_select %p322, %s323, %s324
      %p328 = pneg %p322
      %p329 = scmp.eq.s32.totalorder %s21, 1
      %p330 = por %p328, %p329
      %p331 = scmp.ne.s32.totalorder %s323, %s326
      %p332 = scmp.eq.s32.totalorder %s21, 0
      %p333 = por %p331, %p332
      %p334 = scmp.ne.s32.totalorder %s323, %s326
      %p335 = scmp.eq.s32.totalorder %s26, 1
      %p336 = por %p334, %p335
      %p337 = scmp.ne.s32.totalorder %s326, %s327
      %p338 = scmp.eq.s32.totalorder %s26, 0
      %p339 = por %p337, %p338
      %p340 = scmp.ne.s32.totalorder %s326, %s327
      %p341 = scmp.eq.s32.totalorder %s27, 1
      %p342 = por %p340, %p341
      %p344 = scmp.ne.s32.totalorder %s327, %s343
      %p345 = scmp.eq.s32.totalorder %s27, 0
      %p346 = por %p344, %p345
      %p347 = scmp.le.s32.totalorder 1, %s21
      %p348 = scmp.lt.s32.totalorder %s21, 3
      %p349 = pnand %p347, %p348
      %p350 = pneg %p349
      // Predicated region
      $region9: #{_lambda_.1} parent=5 // pred_check
        _
      $region10: #{_lambda_.1} parent=5 // pred_check_branch
        %352 = sbr.rel (%p349) target = $region12
      $region11: #{_lambda_.1} parent=5 // pred_region
        %s353 = ssub.s32 %s21, 1
        // Predicated region
        $region13: #{_lambda_.1} parent=11 // pred_check
          %p354 = pneg %p164
        $region14: #{_lambda_.1} parent=11 // pred_check_branch
          %356 = sbr.rel (%p354) target = $region16
        $region15: #{_lambda_.1} parent=11 // pred_region
          _
        $region16: #{_lambda_.1} parent=11 // pred_fallthru
          _
        // Predicated region
        $region17: #{_lambda_.1} parent=11 // pred_check
          %p357 = pneg %p185
        $region18: #{_lambda_.1} parent=11 // pred_check_branch
          %359 = sbr.rel (%p357) target = $region20
        $region19: #{_lambda_.1} parent=11 // pred_region
          _
        $region20: #{_lambda_.1} parent=11 // pred_fallthru
          _
        // Predicated region
        $region21: #{_lambda_.1} parent=11 // pred_check
          %p360 = pneg %p206
        $region22: #{_lambda_.1} parent=11 // pred_check_branch
          %362 = sbr.rel (%p360) target = $region24
        $region23: #{_lambda_.1} parent=11 // pred_region
          _
        $region24: #{_lambda_.1} parent=11 // pred_fallthru
          _
        // Predicated region
        $region25: #{_lambda_.1} parent=11 // pred_check
          %p363 = pneg %p227
        $region26: #{_lambda_.1} parent=11 // pred_check_branch
          %365 = sbr.rel (%p363) target = $region28
        $region27: #{_lambda_.1} parent=11 // pred_region
          _
        $region28: #{_lambda_.1} parent=11 // pred_fallthru
          _
        // Predicated region
        $region29: #{_lambda_.1} parent=11 // pred_check
          %p366 = pneg %p248
        $region30: #{_lambda_.1} parent=11 // pred_check_branch
          %368 = sbr.rel (%p366) target = $region32
        $region31: #{_lambda_.1} parent=11 // pred_region
          _
        $region32: #{_lambda_.1} parent=11 // pred_fallthru
          _
        // Predicated region
        $region33: #{_lambda_.1} parent=11 // pred_check
          %p369 = pneg %p269
        $region34: #{_lambda_.1} parent=11 // pred_check_branch
          %371 = sbr.rel (%p369) target = $region36
        $region35: #{_lambda_.1} parent=11 // pred_region
          _
        $region36: #{_lambda_.1} parent=11 // pred_fallthru
          _
        // Predicated region
        $region37: #{_lambda_.1} parent=11 // pred_check
          %p372 = pneg %p290
        $region38: #{_lambda_.1} parent=11 // pred_check_branch
          %374 = sbr.rel (%p372) target = $region40
        $region39: #{_lambda_.1} parent=11 // pred_region
          _
        $region40: #{_lambda_.1} parent=11 // pred_fallthru
          _
        // Predicated region
        $region41: #{_lambda_.1} parent=11 // pred_check
          %p375 = pneg %p311
        $region42: #{_lambda_.1} parent=11 // pred_check_branch
          %377 = sbr.rel (%p375) target = $region44
        $region43: #{_lambda_.1} parent=11 // pred_region
          _
        $region44: #{_lambda_.1} parent=11 // pred_fallthru
          _
      $region12: #{_lambda_.1} parent=5 // pred_fallthru
        _
      %p378 = scmp.lt.s32.totalorder %s21, 2
      // Predicated region
      $region45: #{_lambda_.1} parent=5 // pred_check
        %p379 = pneg %p378
      $region46: #{_lambda_.1} parent=5 // pred_check_branch
        %381 = sbr.rel (%p379) target = $region48
      $region47: #{_lambda_.1} parent=5 // pred_region
        // Predicated region
        $region49: #{_lambda_.1} parent=47 // pred_check
          %p382 = pneg %p55
        $region50: #{_lambda_.1} parent=47 // pred_check_branch
          %384 = sbr.rel (%p382) target = $region52
        $region51: #{_lambda_.1} parent=47 // pred_region
          %s385 = smul.u32 4, %s29
          %p386 = scmp.lt.s32.totalorder %s28, 1
          %s387 = scalar_select %p386, %s28, 1
          %p388 = scmp.lt.s32.totalorder %s385, 3
          %s389 = scalar_select %p388, %s385, 3
          %s390 = smul.addr %s387, 8
          %s391 = sadd.s32 %s389, %s390
          %s392 = smul.addr %s391, 8
          %s393 = scalar_lea.vmem %s0, %s392
          %s394 = smul.u32 4, %s29
        $region52: #{_lambda_.1} parent=47 // pred_fallthru
          _
        // Predicated region
        $region53: #{_lambda_.1} parent=47 // pred_check
          %p395 = pneg %p83
        $region54: #{_lambda_.1} parent=47 // pred_check_branch
          %397 = sbr.rel (%p395) target = $region56
        $region55: #{_lambda_.1} parent=47 // pred_region
          %s398 = smul.u32 4, %s29
          %p399 = scmp.lt.s32.totalorder %s28, 1
          %s400 = scalar_select %p399, %s28, 1
          %p401 = scmp.lt.s32.totalorder %s398, 3
          %s402 = scalar_select %p401, %s398, 3
          %s403 = smul.addr %s400, 8
          %s404 = sadd.s32 %s402, %s403
          %s405 = smul.addr %s404, 8
          %s406 = scalar_lea.vmem %s1, %s405
          %s407 = smul.u32 4, %s29
        $region56: #{_lambda_.1} parent=47 // pred_fallthru
          _
        // Predicated region
        $region57: #{_lambda_.1} parent=47 // pred_check
          %p408 = pneg %p111
        $region58: #{_lambda_.1} parent=47 // pred_check_branch
          %410 = sbr.rel (%p408) target = $region60
        $region59: #{_lambda_.1} parent=47 // pred_region
          %s411 = smul.u32 4, %s29
          %p412 = scmp.lt.s32.totalorder %s28, 1
          %s413 = scalar_select %p412, %s28, 1
          %p414 = scmp.lt.s32.totalorder %s411, 3
          %s415 = scalar_select %p414, %s411, 3
          %s416 = smul.addr %s413, 4
          %s417 = sadd.s32 %s415, %s416
          %s418 = scalar_lea.vmem %s2, %s417
          %s419 = smul.u32 4, %s29
        $region60: #{_lambda_.1} parent=47 // pred_fallthru
          _
        // Predicated region
        $region61: #{_lambda_.1} parent=47 // pred_check
          %p420 = pneg %p137
        $region62: #{_lambda_.1} parent=47 // pred_check_branch
          %422 = sbr.rel (%p420) target = $region64
        $region63: #{_lambda_.1} parent=47 // pred_region
          %p423 = scmp.lt.s32.totalorder %s28, 1
          %s424 = scalar_select %p423, %s28, 1
          %s425 = smul.addr %s424, 4
          %s426 = smul.addr %s425, 8
          %s427 = scalar_lea.vmem %s3, %s426
        $region64: #{_lambda_.1} parent=47 // pred_fallthru
          _
      $region48: #{_lambda_.1} parent=5 // pred_fallthru
        _
      %p428 = scmp.le.s32.totalorder 1, %s21
      %p429 = scmp.lt.s32.totalorder %s21, 3
      %p430 = pnand %p428, %p429
      %p431 = pneg %p430
      // Predicated region
      $region65: #{_lambda_.1} parent=5 // pred_check
        _
      $region66: #{_lambda_.1} parent=5 // pred_check_branch
        %433 = sbr.rel (%p430) target = $region68
      $region67: #{_lambda_.1} parent=5 // pred_region
        %s434 = ssub.s32 %s21, 1
        %s435 = smul.u32 4, %s31
        %p436 = scmp.lt.s32.totalorder %s30, 1
        %s437 = scalar_select %p436, %s30, 1
        %p438 = scmp.lt.s32.totalorder %s435, 3
        %s439 = scalar_select %p438, %s435, 3
        %s440 = smul.addr %s437, 8
        %s441 = sadd.s32 %s439, %s440
        %s442 = smul.addr %s441, 8
        %s443 = scalar_lea.vmem %s0, %s442
        %p444 = pneg %p61
        %p445 = pneg %p58
        %s446 = smul.u32 4, %s31
        %p447 = scmp.lt.s32.totalorder %s30, 1
        %s448 = scalar_select %p447, %s30, 1
        %p449 = scmp.lt.s32.totalorder %s446, 3
        %s450 = scalar_select %p449, %s446, 3
        %s451 = smul.addr %s448, 8
        %s452 = sadd.s32 %s450, %s451
        %s453 = smul.addr %s452, 8
        %s454 = scalar_lea.vmem %s1, %s453
        %p455 = pneg %p89
        %p456 = pneg %p86
        %s457 = smul.u32 4, %s31
        %p458 = scmp.lt.s32.totalorder %s30, 1
        %s459 = scalar_select %p458, %s30, 1
        %p460 = scmp.lt.s32.totalorder %s457, 3
        %s461 = scalar_select %p460, %s457, 3
        %s462 = smul.addr %s459, 4
        %s463 = sadd.s32 %s461, %s462
        %s464 = scalar_lea.vmem %s2, %s463
        %p465 = pneg %p117
        %p466 = pneg %p114
        %p467 = scmp.lt.s32.totalorder %s30, 1
        %s468 = scalar_select %p467, %s30, 1
        %s469 = smul.addr %s468, 4
        %s470 = smul.addr %s469, 8
        %s471 = scalar_lea.vmem %s3, %s470
        %p472 = pneg %p143
        %p473 = pneg %p140
        %p474 = pneg %p164
        %p475 = pneg %p161
        %p476 = pneg %p185
        %p477 = pneg %p182
        %p478 = pneg %p206
        %p479 = pneg %p203
        %p480 = pneg %p227
        %p481 = pneg %p224
        %p482 = pneg %p248
        %p483 = pneg %p245
        %p484 = pneg %p269
        %p485 = pneg %p266
        %p486 = pneg %p290
        %p487 = pneg %p287
        %p488 = pneg %p311
        %p489 = pneg %p308
        %p490 = pneg %p339
        %p491 = pneg %p336
        %s492 = sand.u32 %s326, 1
        %s493 = scalar_lea.sflag [#allocation3], %s492
        %s494 = sand.u32 %s326, 1
        %s495 = smul.addr %s494, 64
        %s496 = scalar_lea.vmem [#allocation2], %s495
        %s497 = smul.u32 4, %s31
        %p498 = scmp.lt.s32.totalorder %s30, 1
        %s499 = scalar_select %p498, %s30, 1
        %p500 = scmp.lt.s32.totalorder %s497, 3
        %s501 = scalar_select %p500, %s497, 3
        %s502 = smul.addr %s499, 8
        %s503 = sadd.s32 %s501, %s502
        %s504 = smul.addr %s503, 8
        %s505 = scalar_lea.vmem %s0, %s504
        %s506 = smul.u32 4, %s31
        %s507 = smul.u32 4, %s31
        %p508 = scmp.lt.s32.totalorder %s30, 1
        %s509 = scalar_select %p508, %s30, 1
        %p510 = scmp.lt.s32.totalorder %s507, 3
        %s511 = scalar_select %p510, %s507, 3
        %s512 = smul.addr %s509, 8
        %s513 = sadd.s32 %s511, %s512
        %s514 = smul.addr %s513, 8
        %s515 = scalar_lea.vmem %s1, %s514
        %s516 = smul.u32 4, %s31
        %s517 = smul.u32 4, %s31
        %p518 = scmp.lt.s32.totalorder %s30, 1
        %s519 = scalar_select %p518, %s30, 1
        %p520 = scmp.lt.s32.totalorder %s517, 3
        %s521 = scalar_select %p520, %s517, 3
        %s522 = smul.addr %s519, 4
        %s523 = sadd.s32 %s521, %s522
        %s524 = scalar_lea.vmem %s2, %s523
        %s525 = smul.u32 4, %s31
        %p526 = scmp.lt.s32.totalorder %s30, 1
        %s527 = scalar_select %p526, %s30, 1
        %s528 = smul.addr %s527, 4
        %s529 = smul.addr %s528, 8
        %s530 = scalar_lea.vmem %s3, %s529
        %s531 = smul.u32 4, %s31
        %v532 = vld [vmem:[%s505] sm:$0xff]
        %v533 = vld [vmem:[%s505 + $0x8] sm:$0xff]
        %v534 = vld [vmem:[%s505 + $0x10] sm:$0xff]
        %v535 = vld [vmem:[%s505 + $0x18] sm:$0xff]
        %v536 = vld [vmem:[%s505 + $0x20] sm:$0xff]
        %v537 = vld [vmem:[%s505 + $0x28] sm:$0xff]
        %v538 = vld [vmem:[%s505 + $0x30] sm:$0xff]
        %v539 = vld [vmem:[%s505 + $0x38] sm:$0xff]
        %v540 = vld [vmem:[%s515] sm:$0xff]
        %v541 = vld [vmem:[%s515 + $0x8] sm:$0xff]
        %v542 = vld [vmem:[%s515 + $0x10] sm:$0xff]
        %v543 = vld [vmem:[%s515 + $0x18] sm:$0xff]
        %v544 = vld [vmem:[%s515 + $0x20] sm:$0xff]
        %v545 = vld [vmem:[%s515 + $0x28] sm:$0xff]
        %v546 = vld [vmem:[%s515 + $0x30] sm:$0xff]
        %v547 = vld [vmem:[%s515 + $0x38] sm:$0xff]
        %v548 = vld [vmem:[%s524] sm:$0xf]
        %v549 = vld [vmem:[%s11] sm:$0xff]
        %v550 = vld [vmem:[%s11 + $0x8] sm:$0xff]
        %v551 = vld [vmem:[%s11 + $0x10] sm:$0xff]
        %v552 = vld [vmem:[%s11 + $0x18] sm:$0xff]
        %v553 = vld [vmem:[%s11 + $0x20] sm:$0xff]
        %v554 = vld [vmem:[%s11 + $0x28] sm:$0xff]
        %v555 = vld [vmem:[%s11 + $0x30] sm:$0xff]
        %v556 = vld [vmem:[%s11 + $0x38] sm:$0xff]
        %v557 = vld [vmem:[%s11 + $0x40] sm:$0xff]
        %v558 = vld [vmem:[%s11 + $0x48] sm:$0xff]
        %v559 = vld [vmem:[%s11 + $0x50] sm:$0xff]
        %v560 = vld [vmem:[%s11 + $0x58] sm:$0xff]
        %v561 = vld [vmem:[%s11 + $0x60] sm:$0xff]
        %v562 = vld [vmem:[%s11 + $0x68] sm:$0xff]
        %v563 = vld [vmem:[%s11 + $0x70] sm:$0xff]
        %v564 = vld [vmem:[%s11 + $0x78] sm:$0xff]
        %v565 = vld [vmem:[%s11 + $0x80] sm:$0xff]
        %v566 = vld [vmem:[%s11 + $0x88] sm:$0xff]
        %v567 = vld [vmem:[%s11 + $0x90] sm:$0xff]
        %v568 = vld [vmem:[%s11 + $0x98] sm:$0xff]
        %v569 = vld [vmem:[%s11 + $0xa0] sm:$0xff]
        %v570 = vld [vmem:[%s11 + $0xa8] sm:$0xff]
        %v571 = vld [vmem:[%s11 + $0xb0] sm:$0xff]
        %v572 = vld [vmem:[%s11 + $0xb8] sm:$0xff]
        %v573 = vld [vmem:[%s11 + $0xc0] sm:$0xff]
        %v574 = vld [vmem:[%s11 + $0xc8] sm:$0xff]
        %v575 = vld [vmem:[%s11 + $0xd0] sm:$0xff]
        %v576 = vld [vmem:[%s11 + $0xd8] sm:$0xff]
        %v577 = vld [vmem:[%s11 + $0xe0] sm:$0xff]
        %v578 = vld [vmem:[%s11 + $0xe8] sm:$0xff]
        %v579 = vld [vmem:[%s11 + $0xf0] sm:$0xff]
        %v580 = vld [vmem:[%s11 + $0xf8] sm:$0xff]
        %v581 = vld [vmem:[%s11 + $0x100] sm:$0xff]
        %v582 = vld [vmem:[%s11 + $0x108] sm:$0xff]
        %v583 = vld [vmem:[%s11 + $0x110] sm:$0xff]
        %v584 = vld [vmem:[%s11 + $0x118] sm:$0xff]
        %v585 = vld [vmem:[%s11 + $0x120] sm:$0xff]
        %v586 = vld [vmem:[%s11 + $0x128] sm:$0xff]
        %v587 = vld [vmem:[%s11 + $0x130] sm:$0xff]
        %v588 = vld [vmem:[%s11 + $0x138] sm:$0xff]
        %v589 = vld [vmem:[%s11 + $0x140] sm:$0xff]
        %v590 = vld [vmem:[%s11 + $0x148] sm:$0xff]
        %v591 = vld [vmem:[%s4] sm:$0xff]
        %v592 = vld [vmem:[%s4 + $0x8] sm:$0xff]
        %v593 = vld [vmem:[%s4 + $0x10] sm:$0xff]
        %v594 = vld [vmem:[%s4 + $0x18] sm:$0xff]
        %596 = vset.pattern.permute.xlu0 0
        %597 = vperm.xlu0 %596, %v549
        %v598 = vpop.permute.xlu0 %597
        %601 = vset.pattern.permute.xlu0 0
        %602 = vperm.xlu0 %601, %v550
        %v603 = vpop.permute.xlu0 %602
        %606 = vset.pattern.permute.xlu0 0
        %607 = vperm.xlu0 %606, %v551
        %v608 = vpop.permute.xlu0 %607
        %611 = vset.pattern.permute.xlu0 0
        %612 = vperm.xlu0 %611, %v552
        %v613 = vpop.permute.xlu0 %612
        %vm615 = vcmask 130048
        %v617 = vsel %vm615, %v591, 0
        %v620 = vsel %vm615, %v592, 0
        %v623 = vsel %vm615, %v593, 0
        %v626 = vsel %vm615, %v594, 0
        %628 = vmatpush.msra.mxu0 0.0
        %629 = vmatpush.msra.mxu0 0.0
        %630 = vmatpush.msra.mxu0 0.0
        %631 = vmatpush.msra.mxu0 0.0
        %632 = vmatpush.msra.mxu0 0.0
        %633 = vmatpush.msra.mxu0 0.0
        %634 = vmatpush.msra.mxu0 0.0
        %635 = vmatpush.msra.mxu0 0.0
        %636 = vmatpush.msra.mxu0 0.0
        %637 = vmatpush.msra.mxu0 0.0
        %638 = vmatpush.msra.mxu0 0.0
        %639 = vmatpush.msra.mxu0 0.0
        %640 = vmatpush.msra.mxu0 0.0
        %641 = vmatpush.msra.mxu0 0.0
        %642 = vmatpush.msra.mxu0 %v536
        %643 = vmatpush.msra.mxu0 %v532
        %644 = vmatmul.f32.gmra.mxu0 %v617
        %v645 = vpop.f32.mrf.mxu0
        %v646 = vadd.f32 %v598, %v645
        %647 = vmatmul.f32.gmra.mxu0 %v620
        %v648 = vpop.f32.mrf.mxu0
        %v649 = vadd.f32 %v603, %v648
        %650 = vmatmul.f32.gmra.mxu0 %v623
        %v651 = vpop.f32.mrf.mxu0
        %v652 = vadd.f32 %v608, %v651
        %653 = vmatmul.f32.gmra.mxu0 %v626
        %v654 = vpop.f32.mrf.mxu0
        %v655 = vadd.f32 %v613, %v654
        %656 = vdwg.mxu0
        %657 = vmatpush.msra.mxu0 0.0
        %658 = vmatpush.msra.mxu0 0.0
        %659 = vmatpush.msra.mxu0 0.0
        %660 = vmatpush.msra.mxu0 0.0
        %661 = vmatpush.msra.mxu0 0.0
        %662 = vmatpush.msra.mxu0 0.0
        %663 = vmatpush.msra.mxu0 0.0
        %664 = vmatpush.msra.mxu0 0.0
        %665 = vmatpush.msra.mxu0 0.0
        %666 = vmatpush.msra.mxu0 0.0
        %667 = vmatpush.msra.mxu0 0.0
        %668 = vmatpush.msra.mxu0 0.0
        %669 = vmatpush.msra.mxu0 0.0
        %670 = vmatpush.msra.mxu0 0.0
        %671 = vmatpush.msra.mxu0 %v537
        %672 = vmatpush.msra.mxu0 %v533
        %673 = vmatmul.f32.gmra.mxu0 %v617
        %v674 = vpop.f32.mrf.mxu0
        %v675 = vadd.f32 %v598, %v674
        %676 = vmatmul.f32.gmra.mxu0 %v620
        %v677 = vpop.f32.mrf.mxu0
        %v678 = vadd.f32 %v603, %v677
        %679 = vmatmul.f32.gmra.mxu0 %v623
        %v680 = vpop.f32.mrf.mxu0
        %v681 = vadd.f32 %v608, %v680
        %682 = vmatmul.f32.gmra.mxu0 %v626
        %v683 = vpop.f32.mrf.mxu0
        %v684 = vadd.f32 %v613, %v683
        %685 = vdwg.mxu0
        %686 = vmatpush.msra.mxu0 0.0
        %687 = vmatpush.msra.mxu0 0.0
        %688 = vmatpush.msra.mxu0 0.0
        %689 = vmatpush.msra.mxu0 0.0
        %690 = vmatpush.msra.mxu0 0.0
        %691 = vmatpush.msra.mxu0 0.0
        %692 = vmatpush.msra.mxu0 0.0
        %693 = vmatpush.msra.mxu0 0.0
        %694 = vmatpush.msra.mxu0 0.0
        %695 = vmatpush.msra.mxu0 0.0
        %696 = vmatpush.msra.mxu0 0.0
        %697 = vmatpush.msra.mxu0 0.0
        %698 = vmatpush.msra.mxu0 0.0
        %699 = vmatpush.msra.mxu0 0.0
        %700 = vmatpush.msra.mxu0 %v538
        %701 = vmatpush.msra.mxu0 %v534
        %702 = vmatmul.f32.gmra.mxu0 %v617
        %v703 = vpop.f32.mrf.mxu0
        %v704 = vadd.f32 %v598, %v703
        %705 = vmatmul.f32.gmra.mxu0 %v620
        %v706 = vpop.f32.mrf.mxu0
        %v707 = vadd.f32 %v603, %v706
        %708 = vmatmul.f32.gmra.mxu0 %v623
        %v709 = vpop.f32.mrf.mxu0
        %v710 = vadd.f32 %v608, %v709
        %711 = vmatmul.f32.gmra.mxu0 %v626
        %v712 = vpop.f32.mrf.mxu0
        %v713 = vadd.f32 %v613, %v712
        %714 = vdwg.mxu0
        %715 = vmatpush.msra.mxu0 0.0
        %716 = vmatpush.msra.mxu0 0.0
        %717 = vmatpush.msra.mxu0 0.0
        %718 = vmatpush.msra.mxu0 0.0
        %719 = vmatpush.msra.mxu0 0.0
        %720 = vmatpush.msra.mxu0 0.0
        %721 = vmatpush.msra.mxu0 0.0
        %722 = vmatpush.msra.mxu0 0.0
        %723 = vmatpush.msra.mxu0 0.0
        %724 = vmatpush.msra.mxu0 0.0
        %725 = vmatpush.msra.mxu0 0.0
        %726 = vmatpush.msra.mxu0 0.0
        %727 = vmatpush.msra.mxu0 0.0
        %728 = vmatpush.msra.mxu0 0.0
        %729 = vmatpush.msra.mxu0 %v539
        %730 = vmatpush.msra.mxu0 %v535
        %731 = vmatmul.f32.gmra.mxu0 %v617
        %v732 = vpop.f32.mrf.mxu0
        %v733 = vadd.f32 %v598, %v732
        %734 = vmatmul.f32.gmra.mxu0 %v620
        %v735 = vpop.f32.mrf.mxu0
        %v736 = vadd.f32 %v603, %v735
        %737 = vmatmul.f32.gmra.mxu0 %v623
        %v738 = vpop.f32.mrf.mxu0
        %v739 = vadd.f32 %v608, %v738
        %740 = vmatmul.f32.gmra.mxu0 %v626
        %v741 = vpop.f32.mrf.mxu0
        %v742 = vadd.f32 %v613, %v741
        %743 = vdwg.mxu0
        %v744 = vmul.f32 %v646, 0.5
        %v745 = vmul.f32 %v675, 0.5
        %v746 = vmul.f32 %v704, 0.5
        %v747 = vmul.f32 %v733, 0.5
        %v748 = vmul.f32 %v649, 0.5
        %v749 = vmul.f32 %v678, 0.5
        %v750 = vmul.f32 %v707, 0.5
        %v751 = vmul.f32 %v736, 0.5
        %v752 = vmul.f32 %v652, 0.5
        %v753 = vmul.f32 %v681, 0.5
        %v754 = vmul.f32 %v710, 0.5
        %v755 = vmul.f32 %v739, 0.5
        %v756 = vmul.f32 %v655, 0.5
        %v757 = vmul.f32 %v684, 0.5
        %v758 = vmul.f32 %v713, 0.5
        %v759 = vmul.f32 %v742, 0.5
        %v760 = vmul.f32 %v646, 0.044715
        %v761 = vmul.f32 %v675, 0.044715
        %v762 = vmul.f32 %v704, 0.044715
        %v763 = vmul.f32 %v733, 0.044715
        %v764 = vmul.f32 %v649, 0.044715
        %v765 = vmul.f32 %v678, 0.044715
        %v766 = vmul.f32 %v707, 0.044715
        %v767 = vmul.f32 %v736, 0.044715
        %v768 = vmul.f32 %v652, 0.044715
        %v769 = vmul.f32 %v681, 0.044715
        %v770 = vmul.f32 %v710, 0.044715
        %v771 = vmul.f32 %v739, 0.044715
        %v772 = vmul.f32 %v655, 0.044715
        %v773 = vmul.f32 %v684, 0.044715
        %v774 = vmul.f32 %v713, 0.044715
        %v775 = vmul.f32 %v742, 0.044715
        %v776 = vmul.f32 %v760, %v646
        %v777 = vmul.f32 %v761, %v675
        %v778 = vmul.f32 %v762, %v704
        %v779 = vmul.f32 %v763, %v733
        %v780 = vmul.f32 %v764, %v649
        %v781 = vmul.f32 %v765, %v678
        %v782 = vmul.f32 %v766, %v707
        %v783 = vmul.f32 %v767, %v736
        %v784 = vmul.f32 %v768, %v652
        %v785 = vmul.f32 %v769, %v681
        %v786 = vmul.f32 %v770, %v710
        %v787 = vmul.f32 %v771, %v739
        %v788 = vmul.f32 %v772, %v655
        %v789 = vmul.f32 %v773, %v684
        %v790 = vmul.f32 %v774, %v713
        %v791 = vmul.f32 %v775, %v742
        %v792 = vmul.f32 %v776, %v646
        %v793 = vmul.f32 %v777, %v675
        %v794 = vmul.f32 %v778, %v704
        %v795 = vmul.f32 %v779, %v733
        %v796 = vmul.f32 %v780, %v649
        %v797 = vmul.f32 %v781, %v678
        %v798 = vmul.f32 %v782, %v707
        %v799 = vmul.f32 %v783, %v736
        %v800 = vmul.f32 %v784, %v652
        %v801 = vmul.f32 %v785, %v681
        %v802 = vmul.f32 %v786, %v710
        %v803 = vmul.f32 %v787, %v739
        %v804 = vmul.f32 %v788, %v655
        %v805 = vmul.f32 %v789, %v684
        %v806 = vmul.f32 %v790, %v713
        %v807 = vmul.f32 %v791, %v742
        %v808 = vadd.f32 %v646, %v792
        %v809 = vadd.f32 %v675, %v793
        %v810 = vadd.f32 %v704, %v794
        %v811 = vadd.f32 %v733, %v795
        %v812 = vadd.f32 %v649, %v796
        %v813 = vadd.f32 %v678, %v797
        %v814 = vadd.f32 %v707, %v798
        %v815 = vadd.f32 %v736, %v799
        %v816 = vadd.f32 %v652, %v800
        %v817 = vadd.f32 %v681, %v801
        %v818 = vadd.f32 %v710, %v802
        %v819 = vadd.f32 %v739, %v803
        %v820 = vadd.f32 %v655, %v804
        %v821 = vadd.f32 %v684, %v805
        %v822 = vadd.f32 %v713, %v806
        %v823 = vadd.f32 %v742, %v807
        %v824 = vmul.f32 %v808, 0.7978846
        %v825 = vmul.f32 %v809, 0.7978846
        %v826 = vmul.f32 %v810, 0.7978846
        %v827 = vmul.f32 %v811, 0.7978846
        %v828 = vmul.f32 %v812, 0.7978846
        %v829 = vmul.f32 %v813, 0.7978846
        %v830 = vmul.f32 %v814, 0.7978846
        %v831 = vmul.f32 %v815, 0.7978846
        %v832 = vmul.f32 %v816, 0.7978846
        %v833 = vmul.f32 %v817, 0.7978846
        %v834 = vmul.f32 %v818, 0.7978846
        %v835 = vmul.f32 %v819, 0.7978846
        %v836 = vmul.f32 %v820, 0.7978846
        %v837 = vmul.f32 %v821, 0.7978846
        %v838 = vmul.f32 %v822, 0.7978846
        %v839 = vmul.f32 %v823, 0.7978846
        %v840 = vtanh.pop %v824
        %v841 = vtanh.pop %v825
        %v842 = vtanh.pop %v826
        %v843 = vtanh.pop %v827
        %v844 = vtanh.pop %v828
        %v845 = vtanh.pop %v829
        %v846 = vtanh.pop %v830
        %v847 = vtanh.pop %v831
        %v848 = vtanh.pop %v832
        %v849 = vtanh.pop %v833
        %v850 = vtanh.pop %v834
        %v851 = vtanh.pop %v835
        %v852 = vtanh.pop %v836
        %v853 = vtanh.pop %v837
        %v854 = vtanh.pop %v838
        %v855 = vtanh.pop %v839
        %v856 = vadd.f32 %v840, 1.0
        %v857 = vadd.f32 %v841, 1.0
        %v858 = vadd.f32 %v842, 1.0
        %v859 = vadd.f32 %v843, 1.0
        %v860 = vadd.f32 %v844, 1.0
        %v861 = vadd.f32 %v845, 1.0
        %v862 = vadd.f32 %v846, 1.0
        %v863 = vadd.f32 %v847, 1.0
        %v864 = vadd.f32 %v848, 1.0
        %v865 = vadd.f32 %v849, 1.0
        %v866 = vadd.f32 %v850, 1.0
        %v867 = vadd.f32 %v851, 1.0
        %v868 = vadd.f32 %v852, 1.0
        %v869 = vadd.f32 %v853, 1.0
        %v870 = vadd.f32 %v854, 1.0
        %v871 = vadd.f32 %v855, 1.0
        %v872 = vmul.f32 %v744, %v856
        %v873 = vmul.f32 %v745, %v857
        %v874 = vmul.f32 %v746, %v858
        %v875 = vmul.f32 %v747, %v859
        %v876 = vmul.f32 %v748, %v860
        %v877 = vmul.f32 %v749, %v861
        %v878 = vmul.f32 %v750, %v862
        %v879 = vmul.f32 %v751, %v863
        %v880 = vmul.f32 %v752, %v864
        %v881 = vmul.f32 %v753, %v865
        %v882 = vmul.f32 %v754, %v866
        %v883 = vmul.f32 %v755, %v867
        %v884 = vmul.f32 %v756, %v868
        %v885 = vmul.f32 %v757, %v869
        %v886 = vmul.f32 %v758, %v870
        %v887 = vmul.f32 %v759, %v871
        %v888 = vld [vmem:[%s5] sm:$0xff]
        %v889 = vld [vmem:[%s5 + $0x8] sm:$0xff]
        %v890 = vld [vmem:[%s5 + $0x10] sm:$0xff]
        %v891 = vld [vmem:[%s5 + $0x18] sm:$0xff]
        %v892 = vld [vmem:[%s5 + $0x20] sm:$0xff]
        %v893 = vld [vmem:[%s5 + $0x28] sm:$0xff]
        %v894 = vld [vmem:[%s5 + $0x30] sm:$0xff]
        %v895 = vld [vmem:[%s5 + $0x38] sm:$0xff]
        %v896 = vld [vmem:[%s5 + $0x40] sm:$0xff]
        %v897 = vld [vmem:[%s5 + $0x48] sm:$0xff]
        %v898 = vld [vmem:[%s5 + $0x50] sm:$0xff]
        %v899 = vld [vmem:[%s5 + $0x58] sm:$0xff]
        %v900 = vld [vmem:[%s5 + $0x60] sm:$0xff]
        %v901 = vld [vmem:[%s5 + $0x68] sm:$0xff]
        %v902 = vld [vmem:[%s5 + $0x70] sm:$0xff]
        %v903 = vld [vmem:[%s5 + $0x78] sm:$0xff]
        %905 = vset.pattern.permute.xlu0 0
        %906 = vperm.xlu0 %905, %v553
        %v907 = vpop.permute.xlu0 %906
        %910 = vset.pattern.permute.xlu0 0
        %911 = vperm.xlu0 %910, %v554
        %v912 = vpop.permute.xlu0 %911
        %915 = vset.pattern.permute.xlu0 0
        %916 = vperm.xlu0 %915, %v555
        %v917 = vpop.permute.xlu0 %916
        %920 = vset.pattern.permute.xlu0 0
        %921 = vperm.xlu0 %920, %v556
        %v922 = vpop.permute.xlu0 %921
        %925 = vset.pattern.permute.xlu0 0
        %926 = vperm.xlu0 %925, %v557
        %v927 = vpop.permute.xlu0 %926
        %930 = vset.pattern.permute.xlu0 0
        %931 = vperm.xlu0 %930, %v558
        %v932 = vpop.permute.xlu0 %931
        %935 = vset.pattern.permute.xlu0 0
        %936 = vperm.xlu0 %935, %v559
        %v937 = vpop.permute.xlu0 %936
        %940 = vset.pattern.permute.xlu0 0
        %941 = vperm.xlu0 %940, %v560
        %v942 = vpop.permute.xlu0 %941
        %945 = vset.pattern.permute.xlu0 0
        %946 = vperm.xlu0 %945, %v561
        %v947 = vpop.permute.xlu0 %946
        %950 = vset.pattern.permute.xlu0 0
        %951 = vperm.xlu0 %950, %v562
        %v952 = vpop.permute.xlu0 %951
        %955 = vset.pattern.permute.xlu0 0
        %956 = vperm.xlu0 %955, %v563
        %v957 = vpop.permute.xlu0 %956
        %960 = vset.pattern.permute.xlu0 0
        %961 = vperm.xlu0 %960, %v564
        %v962 = vpop.permute.xlu0 %961
        %965 = vset.pattern.permute.xlu0 0
        %966 = vperm.xlu0 %965, %v565
        %v967 = vpop.permute.xlu0 %966
        %970 = vset.pattern.permute.xlu0 0
        %971 = vperm.xlu0 %970, %v566
        %v972 = vpop.permute.xlu0 %971
        %975 = vset.pattern.permute.xlu0 0
        %976 = vperm.xlu0 %975, %v567
        %v977 = vpop.permute.xlu0 %976
        %980 = vset.pattern.permute.xlu0 0
        %981 = vperm.xlu0 %980, %v568
        %v982 = vpop.permute.xlu0 %981
        %v985 = vsel %vm615, %v888, 0
        %v988 = vsel %vm615, %v889, 0
        %v991 = vsel %vm615, %v890, 0
        %v994 = vsel %vm615, %v891, 0
        %v997 = vsel %vm615, %v892, 0
        %v1000 = vsel %vm615, %v893, 0
        %v1003 = vsel %vm615, %v894, 0
        %v1006 = vsel %vm615, %v895, 0
        %v1009 = vsel %vm615, %v896, 0
        %v1012 = vsel %vm615, %v897, 0
        %v1015 = vsel %vm615, %v898, 0
        %v1018 = vsel %vm615, %v899, 0
        %v1021 = vsel %vm615, %v900, 0
        %v1024 = vsel %vm615, %v901, 0
        %v1027 = vsel %vm615, %v902, 0
        %v1030 = vsel %vm615, %v903, 0
        %1032 = vmatpush.msra.mxu0 0.0
        %1033 = vmatpush.msra.mxu0 0.0
        %1034 = vmatpush.msra.mxu0 0.0
        %1035 = vmatpush.msra.mxu0 0.0
        %1036 = vmatpush.msra.mxu0 0.0
        %1037 = vmatpush.msra.mxu0 0.0
        %1038 = vmatpush.msra.mxu0 0.0
        %1039 = vmatpush.msra.mxu0 0.0
        %1040 = vmatpush.msra.mxu0 0.0
        %1041 = vmatpush.msra.mxu0 0.0
        %1042 = vmatpush.msra.mxu0 0.0
        %1043 = vmatpush.msra.mxu0 0.0
        %1044 = vmatpush.msra.mxu0 0.0
        %1045 = vmatpush.msra.mxu0 0.0
        %1046 = vmatpush.msra.mxu0 %v544
        %1047 = vmatpush.msra.mxu0 %v540
        %1048 = vmatmul.f32.gmra.mxu0 %v985
        %v1049 = vpop.f32.mrf.mxu0
        %v1050 = vadd.f32 %v907, %v1049
        %1051 = vmatmul.f32.gmra.mxu0 %v988
        %v1052 = vpop.f32.mrf.mxu0
        %v1053 = vadd.f32 %v912, %v1052
        %1054 = vmatmul.f32.gmra.mxu0 %v991
        %v1055 = vpop.f32.mrf.mxu0
        %v1056 = vadd.f32 %v917, %v1055
        %1057 = vmatmul.f32.gmra.mxu0 %v994
        %v1058 = vpop.f32.mrf.mxu0
        %v1059 = vadd.f32 %v922, %v1058
        %1060 = vmatmul.f32.gmra.mxu0 %v997
        %v1061 = vpop.f32.mrf.mxu0
        %v1062 = vadd.f32 %v927, %v1061
        %1063 = vmatmul.f32.gmra.mxu0 %v1000
        %v1064 = vpop.f32.mrf.mxu0
        %v1065 = vadd.f32 %v932, %v1064
        %1066 = vmatmul.f32.gmra.mxu0 %v1003
        %v1067 = vpop.f32.mrf.mxu0
        %v1068 = vadd.f32 %v937, %v1067
        %1069 = vmatmul.f32.gmra.mxu0 %v1006
        %v1070 = vpop.f32.mrf.mxu0
        %v1071 = vadd.f32 %v942, %v1070
        %1072 = vmatmul.f32.gmra.mxu0 %v1009
        %v1073 = vpop.f32.mrf.mxu0
        %v1074 = vadd.f32 %v947, %v1073
        %1075 = vmatmul.f32.gmra.mxu0 %v1012
        %v1076 = vpop.f32.mrf.mxu0
        %v1077 = vadd.f32 %v952, %v1076
        %1078 = vmatmul.f32.gmra.mxu0 %v1015
        %v1079 = vpop.f32.mrf.mxu0
        %v1080 = vadd.f32 %v957, %v1079
        %1081 = vmatmul.f32.gmra.mxu0 %v1018
        %v1082 = vpop.f32.mrf.mxu0
        %v1083 = vadd.f32 %v962, %v1082
        %1084 = vmatmul.f32.gmra.mxu0 %v1021
        %v1085 = vpop.f32.mrf.mxu0
        %v1086 = vadd.f32 %v967, %v1085
        %1087 = vmatmul.f32.gmra.mxu0 %v1024
        %v1088 = vpop.f32.mrf.mxu0
        %v1089 = vadd.f32 %v972, %v1088
        %1090 = vmatmul.f32.gmra.mxu0 %v1027
        %v1091 = vpop.f32.mrf.mxu0
        %v1092 = vadd.f32 %v977, %v1091
        %1093 = vmatmul.f32.gmra.mxu0 %v1030
        %v1094 = vpop.f32.mrf.mxu0
        %v1095 = vadd.f32 %v982, %v1094
        %1096 = vdwg.mxu0
        %1097 = vmatpush.msra.mxu0 0.0
        %1098 = vmatpush.msra.mxu0 0.0
        %1099 = vmatpush.msra.mxu0 0.0
        %1100 = vmatpush.msra.mxu0 0.0
        %1101 = vmatpush.msra.mxu0 0.0
        %1102 = vmatpush.msra.mxu0 0.0
        %1103 = vmatpush.msra.mxu0 0.0
        %1104 = vmatpush.msra.mxu0 0.0
        %1105 = vmatpush.msra.mxu0 0.0
        %1106 = vmatpush.msra.mxu0 0.0
        %1107 = vmatpush.msra.mxu0 0.0
        %1108 = vmatpush.msra.mxu0 0.0
        %1109 = vmatpush.msra.mxu0 0.0
        %1110 = vmatpush.msra.mxu0 0.0
        %1111 = vmatpush.msra.mxu0 %v545
        %1112 = vmatpush.msra.mxu0 %v541
        %1113 = vmatmul.f32.gmra.mxu0 %v985
        %v1114 = vpop.f32.mrf.mxu0
        %v1115 = vadd.f32 %v907, %v1114
        %1116 = vmatmul.f32.gmra.mxu0 %v988
        %v1117 = vpop.f32.mrf.mxu0
        %v1118 = vadd.f32 %v912, %v1117
        %1119 = vmatmul.f32.gmra.mxu0 %v991
        %v1120 = vpop.f32.mrf.mxu0
        %v1121 = vadd.f32 %v917, %v1120
        %1122 = vmatmul.f32.gmra.mxu0 %v994
        %v1123 = vpop.f32.mrf.mxu0
        %v1124 = vadd.f32 %v922, %v1123
        %1125 = vmatmul.f32.gmra.mxu0 %v997
        %v1126 = vpop.f32.mrf.mxu0
        %v1127 = vadd.f32 %v927, %v1126
        %1128 = vmatmul.f32.gmra.mxu0 %v1000
        %v1129 = vpop.f32.mrf.mxu0
        %v1130 = vadd.f32 %v932, %v1129
        %1131 = vmatmul.f32.gmra.mxu0 %v1003
        %v1132 = vpop.f32.mrf.mxu0
        %v1133 = vadd.f32 %v937, %v1132
        %1134 = vmatmul.f32.gmra.mxu0 %v1006
        %v1135 = vpop.f32.mrf.mxu0
        %v1136 = vadd.f32 %v942, %v1135
        %1137 = vmatmul.f32.gmra.mxu0 %v1009
        %v1138 = vpop.f32.mrf.mxu0
        %v1139 = vadd.f32 %v947, %v1138
        %1140 = vmatmul.f32.gmra.mxu0 %v1012
        %v1141 = vpop.f32.mrf.mxu0
        %v1142 = vadd.f32 %v952, %v1141
        %1143 = vmatmul.f32.gmra.mxu0 %v1015
        %v1144 = vpop.f32.mrf.mxu0
        %v1145 = vadd.f32 %v957, %v1144
        %1146 = vmatmul.f32.gmra.mxu0 %v1018
        %v1147 = vpop.f32.mrf.mxu0
        %v1148 = vadd.f32 %v962, %v1147
        %1149 = vmatmul.f32.gmra.mxu0 %v1021
        %v1150 = vpop.f32.mrf.mxu0
        %v1151 = vadd.f32 %v967, %v1150
        %1152 = vmatmul.f32.gmra.mxu0 %v1024
        %v1153 = vpop.f32.mrf.mxu0
        %v1154 = vadd.f32 %v972, %v1153
        %1155 = vmatmul.f32.gmra.mxu0 %v1027
        %v1156 = vpop.f32.mrf.mxu0
        %v1157 = vadd.f32 %v977, %v1156
        %1158 = vmatmul.f32.gmra.mxu0 %v1030
        %v1159 = vpop.f32.mrf.mxu0
        %v1160 = vadd.f32 %v982, %v1159
        %1161 = vdwg.mxu0
        %1162 = vmatpush.msra.mxu0 0.0
        %1163 = vmatpush.msra.mxu0 0.0
        %1164 = vmatpush.msra.mxu0 0.0
        %1165 = vmatpush.msra.mxu0 0.0
        %1166 = vmatpush.msra.mxu0 0.0
        %1167 = vmatpush.msra.mxu0 0.0
        %1168 = vmatpush.msra.mxu0 0.0
        %1169 = vmatpush.msra.mxu0 0.0
        %1170 = vmatpush.msra.mxu0 0.0
        %1171 = vmatpush.msra.mxu0 0.0
        %1172 = vmatpush.msra.mxu0 0.0
        %1173 = vmatpush.msra.mxu0 0.0
        %1174 = vmatpush.msra.mxu0 0.0
        %1175 = vmatpush.msra.mxu0 0.0
        %1176 = vmatpush.msra.mxu0 %v546
        %1177 = vmatpush.msra.mxu0 %v542
        %1178 = vmatmul.f32.gmra.mxu0 %v985
        %v1179 = vpop.f32.mrf.mxu0
        %v1180 = vadd.f32 %v907, %v1179
        %1181 = vmatmul.f32.gmra.mxu0 %v988
        %v1182 = vpop.f32.mrf.mxu0
        %v1183 = vadd.f32 %v912, %v1182
        %1184 = vmatmul.f32.gmra.mxu0 %v991
        %v1185 = vpop.f32.mrf.mxu0
        %v1186 = vadd.f32 %v917, %v1185
        %1187 = vmatmul.f32.gmra.mxu0 %v994
        %v1188 = vpop.f32.mrf.mxu0
        %v1189 = vadd.f32 %v922, %v1188
        %1190 = vmatmul.f32.gmra.mxu0 %v997
        %v1191 = vpop.f32.mrf.mxu0
        %v1192 = vadd.f32 %v927, %v1191
        %1193 = vmatmul.f32.gmra.mxu0 %v1000
        %v1194 = vpop.f32.mrf.mxu0
        %v1195 = vadd.f32 %v932, %v1194
        %1196 = vmatmul.f32.gmra.mxu0 %v1003
        %v1197 = vpop.f32.mrf.mxu0
        %v1198 = vadd.f32 %v937, %v1197
        %1199 = vmatmul.f32.gmra.mxu0 %v1006
        %v1200 = vpop.f32.mrf.mxu0
        %v1201 = vadd.f32 %v942, %v1200
        %1202 = vmatmul.f32.gmra.mxu0 %v1009
        %v1203 = vpop.f32.mrf.mxu0
        %v1204 = vadd.f32 %v947, %v1203
        %1205 = vmatmul.f32.gmra.mxu0 %v1012
        %v1206 = vpop.f32.mrf.mxu0
        %v1207 = vadd.f32 %v952, %v1206
        %1208 = vmatmul.f32.gmra.mxu0 %v1015
        %v1209 = vpop.f32.mrf.mxu0
        %v1210 = vadd.f32 %v957, %v1209
        %1211 = vmatmul.f32.gmra.mxu0 %v1018
        %v1212 = vpop.f32.mrf.mxu0
        %v1213 = vadd.f32 %v962, %v1212
        %1214 = vmatmul.f32.gmra.mxu0 %v1021
        %v1215 = vpop.f32.mrf.mxu0
        %v1216 = vadd.f32 %v967, %v1215
        %1217 = vmatmul.f32.gmra.mxu0 %v1024
        %v1218 = vpop.f32.mrf.mxu0
        %v1219 = vadd.f32 %v972, %v1218
        %1220 = vmatmul.f32.gmra.mxu0 %v1027
        %v1221 = vpop.f32.mrf.mxu0
        %v1222 = vadd.f32 %v977, %v1221
        %1223 = vmatmul.f32.gmra.mxu0 %v1030
        %v1224 = vpop.f32.mrf.mxu0
        %v1225 = vadd.f32 %v982, %v1224
        %1226 = vdwg.mxu0
        %1227 = vmatpush.msra.mxu0 0.0
        %1228 = vmatpush.msra.mxu0 0.0
        %1229 = vmatpush.msra.mxu0 0.0
        %1230 = vmatpush.msra.mxu0 0.0
        %1231 = vmatpush.msra.mxu0 0.0
        %1232 = vmatpush.msra.mxu0 0.0
        %1233 = vmatpush.msra.mxu0 0.0
        %1234 = vmatpush.msra.mxu0 0.0
        %1235 = vmatpush.msra.mxu0 0.0
        %1236 = vmatpush.msra.mxu0 0.0
        %1237 = vmatpush.msra.mxu0 0.0
        %1238 = vmatpush.msra.mxu0 0.0
        %1239 = vmatpush.msra.mxu0 0.0
        %1240 = vmatpush.msra.mxu0 0.0
        %1241 = vmatpush.msra.mxu0 %v547
        %1242 = vmatpush.msra.mxu0 %v543
        %1243 = vmatmul.f32.gmra.mxu0 %v985
        %v1244 = vpop.f32.mrf.mxu0
        %v1245 = vadd.f32 %v907, %v1244
        %1246 = vmatmul.f32.gmra.mxu0 %v988
        %v1247 = vpop.f32.mrf.mxu0
        %v1248 = vadd.f32 %v912, %v1247
        %1249 = vmatmul.f32.gmra.mxu0 %v991
        %v1250 = vpop.f32.mrf.mxu0
        %v1251 = vadd.f32 %v917, %v1250
        %1252 = vmatmul.f32.gmra.mxu0 %v994
        %v1253 = vpop.f32.mrf.mxu0
        %v1254 = vadd.f32 %v922, %v1253
        %1255 = vmatmul.f32.gmra.mxu0 %v997
        %v1256 = vpop.f32.mrf.mxu0
        %v1257 = vadd.f32 %v927, %v1256
        %1258 = vmatmul.f32.gmra.mxu0 %v1000
        %v1259 = vpop.f32.mrf.mxu0
        %v1260 = vadd.f32 %v932, %v1259
        %1261 = vmatmul.f32.gmra.mxu0 %v1003
        %v1262 = vpop.f32.mrf.mxu0
        %v1263 = vadd.f32 %v937, %v1262
        %1264 = vmatmul.f32.gmra.mxu0 %v1006
        %v1265 = vpop.f32.mrf.mxu0
        %v1266 = vadd.f32 %v942, %v1265
        %1267 = vmatmul.f32.gmra.mxu0 %v1009
        %v1268 = vpop.f32.mrf.mxu0
        %v1269 = vadd.f32 %v947, %v1268
        %1270 = vmatmul.f32.gmra.mxu0 %v1012
        %v1271 = vpop.f32.mrf.mxu0
        %v1272 = vadd.f32 %v952, %v1271
        %1273 = vmatmul.f32.gmra.mxu0 %v1015
        %v1274 = vpop.f32.mrf.mxu0
        %v1275 = vadd.f32 %v957, %v1274
        %1276 = vmatmul.f32.gmra.mxu0 %v1018
        %v1277 = vpop.f32.mrf.mxu0
        %v1278 = vadd.f32 %v962, %v1277
        %1279 = vmatmul.f32.gmra.mxu0 %v1021
        %v1280 = vpop.f32.mrf.mxu0
        %v1281 = vadd.f32 %v967, %v1280
        %1282 = vmatmul.f32.gmra.mxu0 %v1024
        %v1283 = vpop.f32.mrf.mxu0
        %v1284 = vadd.f32 %v972, %v1283
        %1285 = vmatmul.f32.gmra.mxu0 %v1027
        %v1286 = vpop.f32.mrf.mxu0
        %v1287 = vadd.f32 %v977, %v1286
        %1288 = vmatmul.f32.gmra.mxu0 %v1030
        %v1289 = vpop.f32.mrf.mxu0
        %v1290 = vadd.f32 %v982, %v1289
        %1291 = vdwg.mxu0
        %v1292 = vmul.f32 %v1050, 0.5
        %v1293 = vmul.f32 %v1115, 0.5
        %v1294 = vmul.f32 %v1180, 0.5
        %v1295 = vmul.f32 %v1245, 0.5
        %v1296 = vmul.f32 %v1053, 0.5
        %v1297 = vmul.f32 %v1118, 0.5
        %v1298 = vmul.f32 %v1183, 0.5
        %v1299 = vmul.f32 %v1248, 0.5
        %v1300 = vmul.f32 %v1056, 0.5
        %v1301 = vmul.f32 %v1121, 0.5
        %v1302 = vmul.f32 %v1186, 0.5
        %v1303 = vmul.f32 %v1251, 0.5
        %v1304 = vmul.f32 %v1059, 0.5
        %v1305 = vmul.f32 %v1124, 0.5
        %v1306 = vmul.f32 %v1189, 0.5
        %v1307 = vmul.f32 %v1254, 0.5
        %v1308 = vmul.f32 %v1062, 0.5
        %v1309 = vmul.f32 %v1127, 0.5
        %v1310 = vmul.f32 %v1192, 0.5
        %v1311 = vmul.f32 %v1257, 0.5
        %v1312 = vmul.f32 %v1065, 0.5
        %v1313 = vmul.f32 %v1130, 0.5
        %v1314 = vmul.f32 %v1195, 0.5
        %v1315 = vmul.f32 %v1260, 0.5
        %v1316 = vmul.f32 %v1068, 0.5
        %v1317 = vmul.f32 %v1133, 0.5
        %v1318 = vmul.f32 %v1198, 0.5
        %v1319 = vmul.f32 %v1263, 0.5
        %v1320 = vmul.f32 %v1071, 0.5
        %v1321 = vmul.f32 %v1136, 0.5
        %v1322 = vmul.f32 %v1201, 0.5
        %v1323 = vmul.f32 %v1266, 0.5
        %v1324 = vmul.f32 %v1074, 0.5
        %v1325 = vmul.f32 %v1139, 0.5
        %v1326 = vmul.f32 %v1204, 0.5
        %v1327 = vmul.f32 %v1269, 0.5
        %v1328 = vmul.f32 %v1077, 0.5
        %v1329 = vmul.f32 %v1142, 0.5
        %v1330 = vmul.f32 %v1207, 0.5
        %v1331 = vmul.f32 %v1272, 0.5
        %v1332 = vmul.f32 %v1080, 0.5
        %v1333 = vmul.f32 %v1145, 0.5
        %v1334 = vmul.f32 %v1210, 0.5
        %v1335 = vmul.f32 %v1275, 0.5
        %v1336 = vmul.f32 %v1083, 0.5
        %v1337 = vmul.f32 %v1148, 0.5
        %v1338 = vmul.f32 %v1213, 0.5
        %v1339 = vmul.f32 %v1278, 0.5
        %v1340 = vmul.f32 %v1086, 0.5
        %v1341 = vmul.f32 %v1151, 0.5
        %v1342 = vmul.f32 %v1216, 0.5
        %v1343 = vmul.f32 %v1281, 0.5
        %v1344 = vmul.f32 %v1089, 0.5
        %v1345 = vmul.f32 %v1154, 0.5
        %v1346 = vmul.f32 %v1219, 0.5
        %v1347 = vmul.f32 %v1284, 0.5
        %v1348 = vmul.f32 %v1092, 0.5
        %v1349 = vmul.f32 %v1157, 0.5
        %v1350 = vmul.f32 %v1222, 0.5
        %v1351 = vmul.f32 %v1287, 0.5
        %v1352 = vmul.f32 %v1095, 0.5
        %v1353 = vmul.f32 %v1160, 0.5
        %v1354 = vmul.f32 %v1225, 0.5
        %v1355 = vmul.f32 %v1290, 0.5
        %v1356 = vmul.f32 %v1050, 0.044715
        %v1357 = vmul.f32 %v1115, 0.044715
        %v1358 = vmul.f32 %v1180, 0.044715
        %v1359 = vmul.f32 %v1245, 0.044715
        %v1360 = vmul.f32 %v1053, 0.044715
        %v1361 = vmul.f32 %v1118, 0.044715
        %v1362 = vmul.f32 %v1183, 0.044715
        %v1363 = vmul.f32 %v1248, 0.044715
        %v1364 = vmul.f32 %v1056, 0.044715
        %v1365 = vmul.f32 %v1121, 0.044715
        %v1366 = vmul.f32 %v1186, 0.044715
        %v1367 = vmul.f32 %v1251, 0.044715
        %v1368 = vmul.f32 %v1059, 0.044715
        %v1369 = vmul.f32 %v1124, 0.044715
        %v1370 = vmul.f32 %v1189, 0.044715
        %v1371 = vmul.f32 %v1254, 0.044715
        %v1372 = vmul.f32 %v1062, 0.044715
        %v1373 = vmul.f32 %v1127, 0.044715
        %v1374 = vmul.f32 %v1192, 0.044715
        %v1375 = vmul.f32 %v1257, 0.044715
        %v1376 = vmul.f32 %v1065, 0.044715
        %v1377 = vmul.f32 %v1130, 0.044715
        %v1378 = vmul.f32 %v1195, 0.044715
        %v1379 = vmul.f32 %v1260, 0.044715
        %v1380 = vmul.f32 %v1068, 0.044715
        %v1381 = vmul.f32 %v1133, 0.044715
        %v1382 = vmul.f32 %v1198, 0.044715
        %v1383 = vmul.f32 %v1263, 0.044715
        %v1384 = vmul.f32 %v1071, 0.044715
        %v1385 = vmul.f32 %v1136, 0.044715
        %v1386 = vmul.f32 %v1201, 0.044715
        %v1387 = vmul.f32 %v1266, 0.044715
        %v1388 = vmul.f32 %v1074, 0.044715
        %v1389 = vmul.f32 %v1139, 0.044715
        %v1390 = vmul.f32 %v1204, 0.044715
        %v1391 = vmul.f32 %v1269, 0.044715
        %v1392 = vmul.f32 %v1077, 0.044715
        %v1393 = vmul.f32 %v1142, 0.044715
        %v1394 = vmul.f32 %v1207, 0.044715
        %v1395 = vmul.f32 %v1272, 0.044715
        %v1396 = vmul.f32 %v1080, 0.044715
        %v1397 = vmul.f32 %v1145, 0.044715
        %v1398 = vmul.f32 %v1210, 0.044715
        %v1399 = vmul.f32 %v1275, 0.044715
        %v1400 = vmul.f32 %v1083, 0.044715
        %v1401 = vmul.f32 %v1148, 0.044715
        %v1402 = vmul.f32 %v1213, 0.044715
        %v1403 = vmul.f32 %v1278, 0.044715
        %v1404 = vmul.f32 %v1086, 0.044715
        %v1405 = vmul.f32 %v1151, 0.044715
        %v1406 = vmul.f32 %v1216, 0.044715
        %v1407 = vmul.f32 %v1281, 0.044715
        %v1408 = vmul.f32 %v1089, 0.044715
        %v1409 = vmul.f32 %v1154, 0.044715
        %v1410 = vmul.f32 %v1219, 0.044715
        %v1411 = vmul.f32 %v1284, 0.044715
        %v1412 = vmul.f32 %v1092, 0.044715
        %v1413 = vmul.f32 %v1157, 0.044715
        %v1414 = vmul.f32 %v1222, 0.044715
        %v1415 = vmul.f32 %v1287, 0.044715
        %v1416 = vmul.f32 %v1095, 0.044715
        %v1417 = vmul.f32 %v1160, 0.044715
        %v1418 = vmul.f32 %v1225, 0.044715
        %v1419 = vmul.f32 %v1290, 0.044715
        %v1420 = vmul.f32 %v1356, %v1050
        %v1421 = vmul.f32 %v1357, %v1115
        %v1422 = vmul.f32 %v1358, %v1180
        %v1423 = vmul.f32 %v1359, %v1245
        %v1424 = vmul.f32 %v1360, %v1053
        %v1425 = vmul.f32 %v1361, %v1118
        %v1426 = vmul.f32 %v1362, %v1183
        %v1427 = vmul.f32 %v1363, %v1248
        %v1428 = vmul.f32 %v1364, %v1056
        %v1429 = vmul.f32 %v1365, %v1121
        %v1430 = vmul.f32 %v1366, %v1186
        %v1431 = vmul.f32 %v1367, %v1251
        %v1432 = vmul.f32 %v1368, %v1059
        %v1433 = vmul.f32 %v1369, %v1124
        %v1434 = vmul.f32 %v1370, %v1189
        %v1435 = vmul.f32 %v1371, %v1254
        %v1436 = vmul.f32 %v1372, %v1062
        %v1437 = vmul.f32 %v1373, %v1127
        %v1438 = vmul.f32 %v1374, %v1192
        %v1439 = vmul.f32 %v1375, %v1257
        %v1440 = vmul.f32 %v1376, %v1065
        %v1441 = vmul.f32 %v1377, %v1130
        %v1442 = vmul.f32 %v1378, %v1195
        %v1443 = vmul.f32 %v1379, %v1260
        %v1444 = vmul.f32 %v1380, %v1068
        %v1445 = vmul.f32 %v1381, %v1133
        %v1446 = vmul.f32 %v1382, %v1198
        %v1447 = vmul.f32 %v1383, %v1263
        %v1448 = vmul.f32 %v1384, %v1071
        %v1449 = vmul.f32 %v1385, %v1136
        %v1450 = vmul.f32 %v1386, %v1201
        %v1451 = vmul.f32 %v1387, %v1266
        %v1452 = vmul.f32 %v1388, %v1074
        %v1453 = vmul.f32 %v1389, %v1139
        %v1454 = vmul.f32 %v1390, %v1204
        %v1455 = vmul.f32 %v1391, %v1269
        %v1456 = vmul.f32 %v1392, %v1077
        %v1457 = vmul.f32 %v1393, %v1142
        %v1458 = vmul.f32 %v1394, %v1207
        %v1459 = vmul.f32 %v1395, %v1272
        %v1460 = vmul.f32 %v1396, %v1080
        %v1461 = vmul.f32 %v1397, %v1145
        %v1462 = vmul.f32 %v1398, %v1210
        %v1463 = vmul.f32 %v1399, %v1275
        %v1464 = vmul.f32 %v1400, %v1083
        %v1465 = vmul.f32 %v1401, %v1148
        %v1466 = vmul.f32 %v1402, %v1213
        %v1467 = vmul.f32 %v1403, %v1278
        %v1468 = vmul.f32 %v1404, %v1086
        %v1469 = vmul.f32 %v1405, %v1151
        %v1470 = vmul.f32 %v1406, %v1216
        %v1471 = vmul.f32 %v1407, %v1281
        %v1472 = vmul.f32 %v1408, %v1089
        %v1473 = vmul.f32 %v1409, %v1154
        %v1474 = vmul.f32 %v1410, %v1219
        %v1475 = vmul.f32 %v1411, %v1284
        %v1476 = vmul.f32 %v1412, %v1092
        %v1477 = vmul.f32 %v1413, %v1157
        %v1478 = vmul.f32 %v1414, %v1222
        %v1479 = vmul.f32 %v1415, %v1287
        %v1480 = vmul.f32 %v1416, %v1095
        %v1481 = vmul.f32 %v1417, %v1160
        %v1482 = vmul.f32 %v1418, %v1225
        %v1483 = vmul.f32 %v1419, %v1290
        %v1484 = vmul.f32 %v1420, %v1050
        %v1485 = vmul.f32 %v1421, %v1115
        %v1486 = vmul.f32 %v1422, %v1180
        %v1487 = vmul.f32 %v1423, %v1245
        %v1488 = vmul.f32 %v1424, %v1053
        %v1489 = vmul.f32 %v1425, %v1118
        %v1490 = vmul.f32 %v1426, %v1183
        %v1491 = vmul.f32 %v1427, %v1248
        %v1492 = vmul.f32 %v1428, %v1056
        %v1493 = vmul.f32 %v1429, %v1121
        %v1494 = vmul.f32 %v1430, %v1186
        %v1495 = vmul.f32 %v1431, %v1251
        %v1496 = vmul.f32 %v1432, %v1059
        %v1497 = vmul.f32 %v1433, %v1124
        %v1498 = vmul.f32 %v1434, %v1189
        %v1499 = vmul.f32 %v1435, %v1254
        %v1500 = vmul.f32 %v1436, %v1062
        %v1501 = vmul.f32 %v1437, %v1127
        %v1502 = vmul.f32 %v1438, %v1192
        %v1503 = vmul.f32 %v1439, %v1257
        %v1504 = vmul.f32 %v1440, %v1065
        %v1505 = vmul.f32 %v1441, %v1130
        %v1506 = vmul.f32 %v1442, %v1195
        %v1507 = vmul.f32 %v1443, %v1260
        %v1508 = vmul.f32 %v1444, %v1068
        %v1509 = vmul.f32 %v1445, %v1133
        %v1510 = vmul.f32 %v1446, %v1198
        %v1511 = vmul.f32 %v1447, %v1263
        %v1512 = vmul.f32 %v1448, %v1071
        %v1513 = vmul.f32 %v1449, %v1136
        %v1514 = vmul.f32 %v1450, %v1201
        %v1515 = vmul.f32 %v1451, %v1266
        %v1516 = vmul.f32 %v1452, %v1074
        %v1517 = vmul.f32 %v1453, %v1139
        %v1518 = vmul.f32 %v1454, %v1204
        %v1519 = vmul.f32 %v1455, %v1269
        %v1520 = vmul.f32 %v1456, %v1077
        %v1521 = vmul.f32 %v1457, %v1142
        %v1522 = vmul.f32 %v1458, %v1207
        %v1523 = vmul.f32 %v1459, %v1272
        %v1524 = vmul.f32 %v1460, %v1080
        %v1525 = vmul.f32 %v1461, %v1145
        %v1526 = vmul.f32 %v1462, %v1210
        %v1527 = vmul.f32 %v1463, %v1275
        %v1528 = vmul.f32 %v1464, %v1083
        %v1529 = vmul.f32 %v1465, %v1148
        %v1530 = vmul.f32 %v1466, %v1213
        %v1531 = vmul.f32 %v1467, %v1278
        %v1532 = vmul.f32 %v1468, %v1086
        %v1533 = vmul.f32 %v1469, %v1151
        %v1534 = vmul.f32 %v1470, %v1216
        %v1535 = vmul.f32 %v1471, %v1281
        %v1536 = vmul.f32 %v1472, %v1089
        %v1537 = vmul.f32 %v1473, %v1154
        %v1538 = vmul.f32 %v1474, %v1219
        %v1539 = vmul.f32 %v1475, %v1284
        %v1540 = vmul.f32 %v1476, %v1092
        %v1541 = vmul.f32 %v1477, %v1157
        %v1542 = vmul.f32 %v1478, %v1222
        %v1543 = vmul.f32 %v1479, %v1287
        %v1544 = vmul.f32 %v1480, %v1095
        %v1545 = vmul.f32 %v1481, %v1160
        %v1546 = vmul.f32 %v1482, %v1225
        %v1547 = vmul.f32 %v1483, %v1290
        %v1548 = vadd.f32 %v1050, %v1484
        %v1549 = vadd.f32 %v1115, %v1485
        %v1550 = vadd.f32 %v1180, %v1486
        %v1551 = vadd.f32 %v1245, %v1487
        %v1552 = vadd.f32 %v1053, %v1488
        %v1553 = vadd.f32 %v1118, %v1489
        %v1554 = vadd.f32 %v1183, %v1490
        %v1555 = vadd.f32 %v1248, %v1491
        %v1556 = vadd.f32 %v1056, %v1492
        %v1557 = vadd.f32 %v1121, %v1493
        %v1558 = vadd.f32 %v1186, %v1494
        %v1559 = vadd.f32 %v1251, %v1495
        %v1560 = vadd.f32 %v1059, %v1496
        %v1561 = vadd.f32 %v1124, %v1497
        %v1562 = vadd.f32 %v1189, %v1498
        %v1563 = vadd.f32 %v1254, %v1499
        %v1564 = vadd.f32 %v1062, %v1500
        %v1565 = vadd.f32 %v1127, %v1501
        %v1566 = vadd.f32 %v1192, %v1502
        %v1567 = vadd.f32 %v1257, %v1503
        %v1568 = vadd.f32 %v1065, %v1504
        %v1569 = vadd.f32 %v1130, %v1505
        %v1570 = vadd.f32 %v1195, %v1506
        %v1571 = vadd.f32 %v1260, %v1507
        %v1572 = vadd.f32 %v1068, %v1508
        %v1573 = vadd.f32 %v1133, %v1509
        %v1574 = vadd.f32 %v1198, %v1510
        %v1575 = vadd.f32 %v1263, %v1511
        %v1576 = vadd.f32 %v1071, %v1512
        %v1577 = vadd.f32 %v1136, %v1513
        %v1578 = vadd.f32 %v1201, %v1514
        %v1579 = vadd.f32 %v1266, %v1515
        %v1580 = vadd.f32 %v1074, %v1516
        %v1581 = vadd.f32 %v1139, %v1517
        %v1582 = vadd.f32 %v1204, %v1518
        %v1583 = vadd.f32 %v1269, %v1519
        %v1584 = vadd.f32 %v1077, %v1520
        %v1585 = vadd.f32 %v1142, %v1521
        %v1586 = vadd.f32 %v1207, %v1522
        %v1587 = vadd.f32 %v1272, %v1523
        %v1588 = vadd.f32 %v1080, %v1524
        %v1589 = vadd.f32 %v1145, %v1525
        %v1590 = vadd.f32 %v1210, %v1526
        %v1591 = vadd.f32 %v1275, %v1527
        %v1592 = vadd.f32 %v1083, %v1528
        %v1593 = vadd.f32 %v1148, %v1529
        %v1594 = vadd.f32 %v1213, %v1530
        %v1595 = vadd.f32 %v1278, %v1531
        %v1596 = vadd.f32 %v1086, %v1532
        %v1597 = vadd.f32 %v1151, %v1533
        %v1598 = vadd.f32 %v1216, %v1534
        %v1599 = vadd.f32 %v1281, %v1535
        %v1600 = vadd.f32 %v1089, %v1536
        %v1601 = vadd.f32 %v1154, %v1537
        %v1602 = vadd.f32 %v1219, %v1538
        %v1603 = vadd.f32 %v1284, %v1539
        %v1604 = vadd.f32 %v1092, %v1540
        %v1605 = vadd.f32 %v1157, %v1541
        %v1606 = vadd.f32 %v1222, %v1542
        %v1607 = vadd.f32 %v1287, %v1543
        %v1608 = vadd.f32 %v1095, %v1544
        %v1609 = vadd.f32 %v1160, %v1545
        %v1610 = vadd.f32 %v1225, %v1546
        %v1611 = vadd.f32 %v1290, %v1547
        %v1612 = vmul.f32 %v1548, 0.7978846
        %v1613 = vmul.f32 %v1549, 0.7978846
        %v1614 = vmul.f32 %v1550, 0.7978846
        %v1615 = vmul.f32 %v1551, 0.7978846
        %v1616 = vmul.f32 %v1552, 0.7978846
        %v1617 = vmul.f32 %v1553, 0.7978846
        %v1618 = vmul.f32 %v1554, 0.7978846
        %v1619 = vmul.f32 %v1555, 0.7978846
        %v1620 = vmul.f32 %v1556, 0.7978846
        %v1621 = vmul.f32 %v1557, 0.7978846
        %v1622 = vmul.f32 %v1558, 0.7978846
        %v1623 = vmul.f32 %v1559, 0.7978846
        %v1624 = vmul.f32 %v1560, 0.7978846
        %v1625 = vmul.f32 %v1561, 0.7978846
        %v1626 = vmul.f32 %v1562, 0.7978846
        %v1627 = vmul.f32 %v1563, 0.7978846
        %v1628 = vmul.f32 %v1564, 0.7978846
        %v1629 = vmul.f32 %v1565, 0.7978846
        %v1630 = vmul.f32 %v1566, 0.7978846
        %v1631 = vmul.f32 %v1567, 0.7978846
        %v1632 = vmul.f32 %v1568, 0.7978846
        %v1633 = vmul.f32 %v1569, 0.7978846
        %v1634 = vmul.f32 %v1570, 0.7978846
        %v1635 = vmul.f32 %v1571, 0.7978846
        %v1636 = vmul.f32 %v1572, 0.7978846
        %v1637 = vmul.f32 %v1573, 0.7978846
        %v1638 = vmul.f32 %v1574, 0.7978846
        %v1639 = vmul.f32 %v1575, 0.7978846
        %v1640 = vmul.f32 %v1576, 0.7978846
        %v1641 = vmul.f32 %v1577, 0.7978846
        %v1642 = vmul.f32 %v1578, 0.7978846
        %v1643 = vmul.f32 %v1579, 0.7978846
        %v1644 = vmul.f32 %v1580, 0.7978846
        %v1645 = vmul.f32 %v1581, 0.7978846
        %v1646 = vmul.f32 %v1582, 0.7978846
        %v1647 = vmul.f32 %v1583, 0.7978846
        %v1648 = vmul.f32 %v1584, 0.7978846
        %v1649 = vmul.f32 %v1585, 0.7978846
        %v1650 = vmul.f32 %v1586, 0.7978846
        %v1651 = vmul.f32 %v1587, 0.7978846
        %v1652 = vmul.f32 %v1588, 0.7978846
        %v1653 = vmul.f32 %v1589, 0.7978846
        %v1654 = vmul.f32 %v1590, 0.7978846
        %v1655 = vmul.f32 %v1591, 0.7978846
        %v1656 = vmul.f32 %v1592, 0.7978846
        %v1657 = vmul.f32 %v1593, 0.7978846
        %v1658 = vmul.f32 %v1594, 0.7978846
        %v1659 = vmul.f32 %v1595, 0.7978846
        %v1660 = vmul.f32 %v1596, 0.7978846
        %v1661 = vmul.f32 %v1597, 0.7978846
        %v1662 = vmul.f32 %v1598, 0.7978846
        %v1663 = vmul.f32 %v1599, 0.7978846
        %v1664 = vmul.f32 %v1600, 0.7978846
        %v1665 = vmul.f32 %v1601, 0.7978846
        %v1666 = vmul.f32 %v1602, 0.7978846
        %v1667 = vmul.f32 %v1603, 0.7978846
        %v1668 = vmul.f32 %v1604, 0.7978846
        %v1669 = vmul.f32 %v1605, 0.7978846
        %v1670 = vmul.f32 %v1606, 0.7978846
        %v1671 = vmul.f32 %v1607, 0.7978846
        %v1672 = vmul.f32 %v1608, 0.7978846
        %v1673 = vmul.f32 %v1609, 0.7978846
        %v1674 = vmul.f32 %v1610, 0.7978846
        %v1675 = vmul.f32 %v1611, 0.7978846
        %v1676 = vtanh.pop %v1612
        %v1677 = vtanh.pop %v1613
        %v1678 = vtanh.pop %v1614
        %v1679 = vtanh.pop %v1615
        %v1680 = vtanh.pop %v1616
        %v1681 = vtanh.pop %v1617
        %v1682 = vtanh.pop %v1618
        %v1683 = vtanh.pop %v1619
        %v1684 = vtanh.pop %v1620
        %v1685 = vtanh.pop %v1621
        %v1686 = vtanh.pop %v1622
        %v1687 = vtanh.pop %v1623
        %v1688 = vtanh.pop %v1624
        %v1689 = vtanh.pop %v1625
        %v1690 = vtanh.pop %v1626
        %v1691 = vtanh.pop %v1627
        %v1692 = vtanh.pop %v1628
        %v1693 = vtanh.pop %v1629
        %v1694 = vtanh.pop %v1630
        %v1695 = vtanh.pop %v1631
        %v1696 = vtanh.pop %v1632
        %v1697 = vtanh.pop %v1633
        %v1698 = vtanh.pop %v1634
        %v1699 = vtanh.pop %v1635
        %v1700 = vtanh.pop %v1636
        %v1701 = vtanh.pop %v1637
        %v1702 = vtanh.pop %v1638
        %v1703 = vtanh.pop %v1639
        %v1704 = vtanh.pop %v1640
        %v1705 = vtanh.pop %v1641
        %v1706 = vtanh.pop %v1642
        %v1707 = vtanh.pop %v1643
        %v1708 = vtanh.pop %v1644
        %v1709 = vtanh.pop %v1645
        %v1710 = vtanh.pop %v1646
        %v1711 = vtanh.pop %v1647
        %v1712 = vtanh.pop %v1648
        %v1713 = vtanh.pop %v1649
        %v1714 = vtanh.pop %v1650
        %v1715 = vtanh.pop %v1651
        %v1716 = vtanh.pop %v1652
        %v1717 = vtanh.pop %v1653
        %v1718 = vtanh.pop %v1654
        %v1719 = vtanh.pop %v1655
        %v1720 = vtanh.pop %v1656
        %v1721 = vtanh.pop %v1657
        %v1722 = vtanh.pop %v1658
        %v1723 = vtanh.pop %v1659
        %v1724 = vtanh.pop %v1660
        %v1725 = vtanh.pop %v1661
        %v1726 = vtanh.pop %v1662
        %v1727 = vtanh.pop %v1663
        %v1728 = vtanh.pop %v1664
        %v1729 = vtanh.pop %v1665
        %v1730 = vtanh.pop %v1666
        %v1731 = vtanh.pop %v1667
        %v1732 = vtanh.pop %v1668
        %v1733 = vtanh.pop %v1669
        %v1734 = vtanh.pop %v1670
        %v1735 = vtanh.pop %v1671
        %v1736 = vtanh.pop %v1672
        %v1737 = vtanh.pop %v1673
        %v1738 = vtanh.pop %v1674
        %v1739 = vtanh.pop %v1675
        %v1740 = vadd.f32 %v1676, 1.0
        %v1741 = vadd.f32 %v1677, 1.0
        %v1742 = vadd.f32 %v1678, 1.0
        %v1743 = vadd.f32 %v1679, 1.0
        %v1744 = vadd.f32 %v1680, 1.0
        %v1745 = vadd.f32 %v1681, 1.0
        %v1746 = vadd.f32 %v1682, 1.0
        %v1747 = vadd.f32 %v1683, 1.0
        %v1748 = vadd.f32 %v1684, 1.0
        %v1749 = vadd.f32 %v1685, 1.0
        %v1750 = vadd.f32 %v1686, 1.0
        %v1751 = vadd.f32 %v1687, 1.0
        %v1752 = vadd.f32 %v1688, 1.0
        %v1753 = vadd.f32 %v1689, 1.0
        %v1754 = vadd.f32 %v1690, 1.0
        %v1755 = vadd.f32 %v1691, 1.0
        %v1756 = vadd.f32 %v1692, 1.0
        %v1757 = vadd.f32 %v1693, 1.0
        %v1758 = vadd.f32 %v1694, 1.0
        %v1759 = vadd.f32 %v1695, 1.0
        %v1760 = vadd.f32 %v1696, 1.0
        %v1761 = vadd.f32 %v1697, 1.0
        %v1762 = vadd.f32 %v1698, 1.0
        %v1763 = vadd.f32 %v1699, 1.0
        %v1764 = vadd.f32 %v1700, 1.0
        %v1765 = vadd.f32 %v1701, 1.0
        %v1766 = vadd.f32 %v1702, 1.0
        %v1767 = vadd.f32 %v1703, 1.0
        %v1768 = vadd.f32 %v1704, 1.0
        %v1769 = vadd.f32 %v1705, 1.0
        %v1770 = vadd.f32 %v1706, 1.0
        %v1771 = vadd.f32 %v1707, 1.0
        %v1772 = vadd.f32 %v1708, 1.0
        %v1773 = vadd.f32 %v1709, 1.0
        %v1774 = vadd.f32 %v1710, 1.0
        %v1775 = vadd.f32 %v1711, 1.0
        %v1776 = vadd.f32 %v1712, 1.0
        %v1777 = vadd.f32 %v1713, 1.0
        %v1778 = vadd.f32 %v1714, 1.0
        %v1779 = vadd.f32 %v1715, 1.0
        %v1780 = vadd.f32 %v1716, 1.0
        %v1781 = vadd.f32 %v1717, 1.0
        %v1782 = vadd.f32 %v1718, 1.0
        %v1783 = vadd.f32 %v1719, 1.0
        %v1784 = vadd.f32 %v1720, 1.0
        %v1785 = vadd.f32 %v1721, 1.0
        %v1786 = vadd.f32 %v1722, 1.0
        %v1787 = vadd.f32 %v1723, 1.0
        %v1788 = vadd.f32 %v1724, 1.0
        %v1789 = vadd.f32 %v1725, 1.0
        %v1790 = vadd.f32 %v1726, 1.0
        %v1791 = vadd.f32 %v1727, 1.0
        %v1792 = vadd.f32 %v1728, 1.0
        %v1793 = vadd.f32 %v1729, 1.0
        %v1794 = vadd.f32 %v1730, 1.0
        %v1795 = vadd.f32 %v1731, 1.0
        %v1796 = vadd.f32 %v1732, 1.0
        %v1797 = vadd.f32 %v1733, 1.0
        %v1798 = vadd.f32 %v1734, 1.0
        %v1799 = vadd.f32 %v1735, 1.0
        %v1800 = vadd.f32 %v1736, 1.0
        %v1801 = vadd.f32 %v1737, 1.0
        %v1802 = vadd.f32 %v1738, 1.0
        %v1803 = vadd.f32 %v1739, 1.0
        %v1804 = vmul.f32 %v1292, %v1740
        %v1805 = vmul.f32 %v1293, %v1741
        %v1806 = vmul.f32 %v1294, %v1742
        %v1807 = vmul.f32 %v1295, %v1743
        %v1808 = vmul.f32 %v1296, %v1744
        %v1809 = vmul.f32 %v1297, %v1745
        %v1810 = vmul.f32 %v1298, %v1746
        %v1811 = vmul.f32 %v1299, %v1747
        %v1812 = vmul.f32 %v1300, %v1748
        %v1813 = vmul.f32 %v1301, %v1749
        %v1814 = vmul.f32 %v1302, %v1750
        %v1815 = vmul.f32 %v1303, %v1751
        %v1816 = vmul.f32 %v1304, %v1752
        %v1817 = vmul.f32 %v1305, %v1753
        %v1818 = vmul.f32 %v1306, %v1754
        %v1819 = vmul.f32 %v1307, %v1755
        %v1820 = vmul.f32 %v1308, %v1756
        %v1821 = vmul.f32 %v1309, %v1757
        %v1822 = vmul.f32 %v1310, %v1758
        %v1823 = vmul.f32 %v1311, %v1759
        %v1824 = vmul.f32 %v1312, %v1760
        %v1825 = vmul.f32 %v1313, %v1761
        %v1826 = vmul.f32 %v1314, %v1762
        %v1827 = vmul.f32 %v1315, %v1763
        %v1828 = vmul.f32 %v1316, %v1764
        %v1829 = vmul.f32 %v1317, %v1765
        %v1830 = vmul.f32 %v1318, %v1766
        %v1831 = vmul.f32 %v1319, %v1767
        %v1832 = vmul.f32 %v1320, %v1768
        %v1833 = vmul.f32 %v1321, %v1769
        %v1834 = vmul.f32 %v1322, %v1770
        %v1835 = vmul.f32 %v1323, %v1771
        %v1836 = vmul.f32 %v1324, %v1772
        %v1837 = vmul.f32 %v1325, %v1773
        %v1838 = vmul.f32 %v1326, %v1774
        %v1839 = vmul.f32 %v1327, %v1775
        %v1840 = vmul.f32 %v1328, %v1776
        %v1841 = vmul.f32 %v1329, %v1777
        %v1842 = vmul.f32 %v1330, %v1778
        %v1843 = vmul.f32 %v1331, %v1779
        %v1844 = vmul.f32 %v1332, %v1780
        %v1845 = vmul.f32 %v1333, %v1781
        %v1846 = vmul.f32 %v1334, %v1782
        %v1847 = vmul.f32 %v1335, %v1783
        %v1848 = vmul.f32 %v1336, %v1784
        %v1849 = vmul.f32 %v1337, %v1785
        %v1850 = vmul.f32 %v1338, %v1786
        %v1851 = vmul.f32 %v1339, %v1787
        %v1852 = vmul.f32 %v1340, %v1788
        %v1853 = vmul.f32 %v1341, %v1789
        %v1854 = vmul.f32 %v1342, %v1790
        %v1855 = vmul.f32 %v1343, %v1791
        %v1856 = vmul.f32 %v1344, %v1792
        %v1857 = vmul.f32 %v1345, %v1793
        %v1858 = vmul.f32 %v1346, %v1794
        %v1859 = vmul.f32 %v1347, %v1795
        %v1860 = vmul.f32 %v1348, %v1796
        %v1861 = vmul.f32 %v1349, %v1797
        %v1862 = vmul.f32 %v1350, %v1798
        %v1863 = vmul.f32 %v1351, %v1799
        %v1864 = vmul.f32 %v1352, %v1800
        %v1865 = vmul.f32 %v1353, %v1801
        %v1866 = vmul.f32 %v1354, %v1802
        %v1867 = vmul.f32 %v1355, %v1803
        %v1868 = vld [vmem:[%s6] sm:$0xff]
        %v1869 = vld [vmem:[%s6 + $0x8] sm:$0xff]
        %v1870 = vld [vmem:[%s6 + $0x10] sm:$0xff]
        %v1871 = vld [vmem:[%s6 + $0x18] sm:$0xff]
        %v1872 = vld [vmem:[%s6 + $0x20] sm:$0xff]
        %v1873 = vld [vmem:[%s6 + $0x28] sm:$0xff]
        %v1874 = vld [vmem:[%s6 + $0x30] sm:$0xff]
        %v1875 = vld [vmem:[%s6 + $0x38] sm:$0xff]
        %v1876 = vld [vmem:[%s6 + $0x40] sm:$0xff]
        %v1877 = vld [vmem:[%s6 + $0x48] sm:$0xff]
        %v1878 = vld [vmem:[%s6 + $0x50] sm:$0xff]
        %v1879 = vld [vmem:[%s6 + $0x58] sm:$0xff]
        %v1880 = vld [vmem:[%s6 + $0x60] sm:$0xff]
        %v1881 = vld [vmem:[%s6 + $0x68] sm:$0xff]
        %v1882 = vld [vmem:[%s6 + $0x70] sm:$0xff]
        %v1883 = vld [vmem:[%s6 + $0x78] sm:$0xff]
        %1885 = vset.pattern.permute.xlu0 0
        %1886 = vperm.xlu0 %1885, %v1868
        %v1887 = vpop.permute.xlu0 %1886
        %1890 = vset.pattern.permute.xlu0 0
        %1891 = vperm.xlu0 %1890, %v1869
        %v1892 = vpop.permute.xlu0 %1891
        %1895 = vset.pattern.permute.xlu0 0
        %1896 = vperm.xlu0 %1895, %v1870
        %v1897 = vpop.permute.xlu0 %1896
        %1900 = vset.pattern.permute.xlu0 0
        %1901 = vperm.xlu0 %1900, %v1871
        %v1902 = vpop.permute.xlu0 %1901
        %1905 = vset.pattern.permute.xlu0 0
        %1906 = vperm.xlu0 %1905, %v1872
        %v1907 = vpop.permute.xlu0 %1906
        %1910 = vset.pattern.permute.xlu0 0
        %1911 = vperm.xlu0 %1910, %v1873
        %v1912 = vpop.permute.xlu0 %1911
        %1915 = vset.pattern.permute.xlu0 0
        %1916 = vperm.xlu0 %1915, %v1874
        %v1917 = vpop.permute.xlu0 %1916
        %1920 = vset.pattern.permute.xlu0 0
        %1921 = vperm.xlu0 %1920, %v1875
        %v1922 = vpop.permute.xlu0 %1921
        %1925 = vset.pattern.permute.xlu0 0
        %1926 = vperm.xlu0 %1925, %v1876
        %v1927 = vpop.permute.xlu0 %1926
        %1930 = vset.pattern.permute.xlu0 0
        %1931 = vperm.xlu0 %1930, %v1877
        %v1932 = vpop.permute.xlu0 %1931
        %1935 = vset.pattern.permute.xlu0 0
        %1936 = vperm.xlu0 %1935, %v1878
        %v1937 = vpop.permute.xlu0 %1936
        %1940 = vset.pattern.permute.xlu0 0
        %1941 = vperm.xlu0 %1940, %v1879
        %v1942 = vpop.permute.xlu0 %1941
        %1945 = vset.pattern.permute.xlu0 0
        %1946 = vperm.xlu0 %1945, %v1880
        %v1947 = vpop.permute.xlu0 %1946
        %1950 = vset.pattern.permute.xlu0 0
        %1951 = vperm.xlu0 %1950, %v1881
        %v1952 = vpop.permute.xlu0 %1951
        %1955 = vset.pattern.permute.xlu0 0
        %1956 = vperm.xlu0 %1955, %v1882
        %v1957 = vpop.permute.xlu0 %1956
        %1960 = vset.pattern.permute.xlu0 0
        %1961 = vperm.xlu0 %1960, %v1883
        %v1962 = vpop.permute.xlu0 %1961
        %v1965 = vperm.slane %v548, 0
        %v1966 = vperm.slane %v548, 1
        %v1967 = vperm.slane %v548, 2
        %v1968 = vperm.slane %v548, 3
        %v1973 = vmul.f32 %v1887, %v1965
        %v1974 = vmul.f32 %v1887, %v1966
        %v1975 = vmul.f32 %v1887, %v1967
        %v1976 = vmul.f32 %v1887, %v1968
        %v1977 = vmul.f32 %v1892, %v1965
        %v1978 = vmul.f32 %v1892, %v1966
        %v1979 = vmul.f32 %v1892, %v1967
        %v1980 = vmul.f32 %v1892, %v1968
        %v1981 = vmul.f32 %v1897, %v1965
        %v1982 = vmul.f32 %v1897, %v1966
        %v1983 = vmul.f32 %v1897, %v1967
        %v1984 = vmul.f32 %v1897, %v1968
        %v1985 = vmul.f32 %v1902, %v1965
        %v1986 = vmul.f32 %v1902, %v1966
        %v1987 = vmul.f32 %v1902, %v1967
        %v1988 = vmul.f32 %v1902, %v1968
        %v1989 = vmul.f32 %v1907, %v1965
        %v1990 = vmul.f32 %v1907, %v1966
        %v1991 = vmul.f32 %v1907, %v1967
        %v1992 = vmul.f32 %v1907, %v1968
        %v1993 = vmul.f32 %v1912, %v1965
        %v1994 = vmul.f32 %v1912, %v1966
        %v1995 = vmul.f32 %v1912, %v1967
        %v1996 = vmul.f32 %v1912, %v1968
        %v1997 = vmul.f32 %v1917, %v1965
        %v1998 = vmul.f32 %v1917, %v1966
        %v1999 = vmul.f32 %v1917, %v1967
        %v2000 = vmul.f32 %v1917, %v1968
        %v2001 = vmul.f32 %v1922, %v1965
        %v2002 = vmul.f32 %v1922, %v1966
        %v2003 = vmul.f32 %v1922, %v1967
        %v2004 = vmul.f32 %v1922, %v1968
        %v2005 = vmul.f32 %v1927, %v1965
        %v2006 = vmul.f32 %v1927, %v1966
        %v2007 = vmul.f32 %v1927, %v1967
        %v2008 = vmul.f32 %v1927, %v1968
        %v2009 = vmul.f32 %v1932, %v1965
        %v2010 = vmul.f32 %v1932, %v1966
        %v2011 = vmul.f32 %v1932, %v1967
        %v2012 = vmul.f32 %v1932, %v1968
        %v2013 = vmul.f32 %v1937, %v1965
        %v2014 = vmul.f32 %v1937, %v1966
        %v2015 = vmul.f32 %v1937, %v1967
        %v2016 = vmul.f32 %v1937, %v1968
        %v2017 = vmul.f32 %v1942, %v1965
        %v2018 = vmul.f32 %v1942, %v1966
        %v2019 = vmul.f32 %v1942, %v1967
        %v2020 = vmul.f32 %v1942, %v1968
        %v2021 = vmul.f32 %v1947, %v1965
        %v2022 = vmul.f32 %v1947, %v1966
        %v2023 = vmul.f32 %v1947, %v1967
        %v2024 = vmul.f32 %v1947, %v1968
        %v2025 = vmul.f32 %v1952, %v1965
        %v2026 = vmul.f32 %v1952, %v1966
        %v2027 = vmul.f32 %v1952, %v1967
        %v2028 = vmul.f32 %v1952, %v1968
        %v2029 = vmul.f32 %v1957, %v1965
        %v2030 = vmul.f32 %v1957, %v1966
        %v2031 = vmul.f32 %v1957, %v1967
        %v2032 = vmul.f32 %v1957, %v1968
        %v2033 = vmul.f32 %v1962, %v1965
        %v2034 = vmul.f32 %v1962, %v1966
        %v2035 = vmul.f32 %v1962, %v1967
        %v2036 = vmul.f32 %v1962, %v1968
        %2038 = vset.pattern.permute.xlu0 0
        %2039 = vperm.xlu0 %2038, %v569
        %v2040 = vpop.permute.xlu0 %2039
        %2043 = vset.pattern.permute.xlu0 0
        %2044 = vperm.xlu0 %2043, %v570
        %v2045 = vpop.permute.xlu0 %2044
        %2048 = vset.pattern.permute.xlu0 0
        %2049 = vperm.xlu0 %2048, %v571
        %v2050 = vpop.permute.xlu0 %2049
        %2053 = vset.pattern.permute.xlu0 0
        %2054 = vperm.xlu0 %2053, %v572
        %v2055 = vpop.permute.xlu0 %2054
        %2058 = vset.pattern.permute.xlu0 0
        %2059 = vperm.xlu0 %2058, %v573
        %v2060 = vpop.permute.xlu0 %2059
        %2063 = vset.pattern.permute.xlu0 0
        %2064 = vperm.xlu0 %2063, %v574
        %v2065 = vpop.permute.xlu0 %2064
        %2068 = vset.pattern.permute.xlu0 0
        %2069 = vperm.xlu0 %2068, %v575
        %v2070 = vpop.permute.xlu0 %2069
        %2073 = vset.pattern.permute.xlu0 0
        %2074 = vperm.xlu0 %2073, %v576
        %v2075 = vpop.permute.xlu0 %2074
        %2078 = vset.pattern.permute.xlu0 0
        %2079 = vperm.xlu0 %2078, %v577
        %v2080 = vpop.permute.xlu0 %2079
        %2083 = vset.pattern.permute.xlu0 0
        %2084 = vperm.xlu0 %2083, %v578
        %v2085 = vpop.permute.xlu0 %2084
        %2088 = vset.pattern.permute.xlu0 0
        %2089 = vperm.xlu0 %2088, %v579
        %v2090 = vpop.permute.xlu0 %2089
        %2093 = vset.pattern.permute.xlu0 0
        %2094 = vperm.xlu0 %2093, %v580
        %v2095 = vpop.permute.xlu0 %2094
        %2098 = vset.pattern.permute.xlu0 0
        %2099 = vperm.xlu0 %2098, %v581
        %v2100 = vpop.permute.xlu0 %2099
        %2103 = vset.pattern.permute.xlu0 0
        %2104 = vperm.xlu0 %2103, %v582
        %v2105 = vpop.permute.xlu0 %2104
        %2108 = vset.pattern.permute.xlu0 0
        %2109 = vperm.xlu0 %2108, %v583
        %v2110 = vpop.permute.xlu0 %2109
        %2113 = vset.pattern.permute.xlu0 0
        %2114 = vperm.xlu0 %2113, %v584
        %v2115 = vpop.permute.xlu0 %2114
        %v2117 = vadd.f32 %v1973, %v2040
        %v2118 = vadd.f32 %v1974, %v2040
        %v2119 = vadd.f32 %v1975, %v2040
        %v2120 = vadd.f32 %v1976, %v2040
        %v2121 = vadd.f32 %v1977, %v2045
        %v2122 = vadd.f32 %v1978, %v2045
        %v2123 = vadd.f32 %v1979, %v2045
        %v2124 = vadd.f32 %v1980, %v2045
        %v2125 = vadd.f32 %v1981, %v2050
        %v2126 = vadd.f32 %v1982, %v2050
        %v2127 = vadd.f32 %v1983, %v2050
        %v2128 = vadd.f32 %v1984, %v2050
        %v2129 = vadd.f32 %v1985, %v2055
        %v2130 = vadd.f32 %v1986, %v2055
        %v2131 = vadd.f32 %v1987, %v2055
        %v2132 = vadd.f32 %v1988, %v2055
        %v2133 = vadd.f32 %v1989, %v2060
        %v2134 = vadd.f32 %v1990, %v2060
        %v2135 = vadd.f32 %v1991, %v2060
        %v2136 = vadd.f32 %v1992, %v2060
        %v2137 = vadd.f32 %v1993, %v2065
        %v2138 = vadd.f32 %v1994, %v2065
        %v2139 = vadd.f32 %v1995, %v2065
        %v2140 = vadd.f32 %v1996, %v2065
        %v2141 = vadd.f32 %v1997, %v2070
        %v2142 = vadd.f32 %v1998, %v2070
        %v2143 = vadd.f32 %v1999, %v2070
        %v2144 = vadd.f32 %v2000, %v2070
        %v2145 = vadd.f32 %v2001, %v2075
        %v2146 = vadd.f32 %v2002, %v2075
        %v2147 = vadd.f32 %v2003, %v2075
        %v2148 = vadd.f32 %v2004, %v2075
        %v2149 = vadd.f32 %v2005, %v2080
        %v2150 = vadd.f32 %v2006, %v2080
        %v2151 = vadd.f32 %v2007, %v2080
        %v2152 = vadd.f32 %v2008, %v2080
        %v2153 = vadd.f32 %v2009, %v2085
        %v2154 = vadd.f32 %v2010, %v2085
        %v2155 = vadd.f32 %v2011, %v2085
        %v2156 = vadd.f32 %v2012, %v2085
        %v2157 = vadd.f32 %v2013, %v2090
        %v2158 = vadd.f32 %v2014, %v2090
        %v2159 = vadd.f32 %v2015, %v2090
        %v2160 = vadd.f32 %v2016, %v2090
        %v2161 = vadd.f32 %v2017, %v2095
        %v2162 = vadd.f32 %v2018, %v2095
        %v2163 = vadd.f32 %v2019, %v2095
        %v2164 = vadd.f32 %v2020, %v2095
        %v2165 = vadd.f32 %v2021, %v2100
        %v2166 = vadd.f32 %v2022, %v2100
        %v2167 = vadd.f32 %v2023, %v2100
        %v2168 = vadd.f32 %v2024, %v2100
        %v2169 = vadd.f32 %v2025, %v2105
        %v2170 = vadd.f32 %v2026, %v2105
        %v2171 = vadd.f32 %v2027, %v2105
        %v2172 = vadd.f32 %v2028, %v2105
        %v2173 = vadd.f32 %v2029, %v2110
        %v2174 = vadd.f32 %v2030, %v2110
        %v2175 = vadd.f32 %v2031, %v2110
        %v2176 = vadd.f32 %v2032, %v2110
        %v2177 = vadd.f32 %v2033, %v2115
        %v2178 = vadd.f32 %v2034, %v2115
        %v2179 = vadd.f32 %v2035, %v2115
        %v2180 = vadd.f32 %v2036, %v2115
        %v2181 = vmul.f32 %v2117, 0.5
        %v2182 = vmul.f32 %v2118, 0.5
        %v2183 = vmul.f32 %v2119, 0.5
        %v2184 = vmul.f32 %v2120, 0.5
        %v2185 = vmul.f32 %v2121, 0.5
        %v2186 = vmul.f32 %v2122, 0.5
        %v2187 = vmul.f32 %v2123, 0.5
        %v2188 = vmul.f32 %v2124, 0.5
        %v2189 = vmul.f32 %v2125, 0.5
        %v2190 = vmul.f32 %v2126, 0.5
        %v2191 = vmul.f32 %v2127, 0.5
        %v2192 = vmul.f32 %v2128, 0.5
        %v2193 = vmul.f32 %v2129, 0.5
        %v2194 = vmul.f32 %v2130, 0.5
        %v2195 = vmul.f32 %v2131, 0.5
        %v2196 = vmul.f32 %v2132, 0.5
        %v2197 = vmul.f32 %v2133, 0.5
        %v2198 = vmul.f32 %v2134, 0.5
        %v2199 = vmul.f32 %v2135, 0.5
        %v2200 = vmul.f32 %v2136, 0.5
        %v2201 = vmul.f32 %v2137, 0.5
        %v2202 = vmul.f32 %v2138, 0.5
        %v2203 = vmul.f32 %v2139, 0.5
        %v2204 = vmul.f32 %v2140, 0.5
        %v2205 = vmul.f32 %v2141, 0.5
        %v2206 = vmul.f32 %v2142, 0.5
        %v2207 = vmul.f32 %v2143, 0.5
        %v2208 = vmul.f32 %v2144, 0.5
        %v2209 = vmul.f32 %v2145, 0.5
        %v2210 = vmul.f32 %v2146, 0.5
        %v2211 = vmul.f32 %v2147, 0.5
        %v2212 = vmul.f32 %v2148, 0.5
        %v2213 = vmul.f32 %v2149, 0.5
        %v2214 = vmul.f32 %v2150, 0.5
        %v2215 = vmul.f32 %v2151, 0.5
        %v2216 = vmul.f32 %v2152, 0.5
        %v2217 = vmul.f32 %v2153, 0.5
        %v2218 = vmul.f32 %v2154, 0.5
        %v2219 = vmul.f32 %v2155, 0.5
        %v2220 = vmul.f32 %v2156, 0.5
        %v2221 = vmul.f32 %v2157, 0.5
        %v2222 = vmul.f32 %v2158, 0.5
        %v2223 = vmul.f32 %v2159, 0.5
        %v2224 = vmul.f32 %v2160, 0.5
        %v2225 = vmul.f32 %v2161, 0.5
        %v2226 = vmul.f32 %v2162, 0.5
        %v2227 = vmul.f32 %v2163, 0.5
        %v2228 = vmul.f32 %v2164, 0.5
        %v2229 = vmul.f32 %v2165, 0.5
        %v2230 = vmul.f32 %v2166, 0.5
        %v2231 = vmul.f32 %v2167, 0.5
        %v2232 = vmul.f32 %v2168, 0.5
        %v2233 = vmul.f32 %v2169, 0.5
        %v2234 = vmul.f32 %v2170, 0.5
        %v2235 = vmul.f32 %v2171, 0.5
        %v2236 = vmul.f32 %v2172, 0.5
        %v2237 = vmul.f32 %v2173, 0.5
        %v2238 = vmul.f32 %v2174, 0.5
        %v2239 = vmul.f32 %v2175, 0.5
        %v2240 = vmul.f32 %v2176, 0.5
        %v2241 = vmul.f32 %v2177, 0.5
        %v2242 = vmul.f32 %v2178, 0.5
        %v2243 = vmul.f32 %v2179, 0.5
        %v2244 = vmul.f32 %v2180, 0.5
        %v2245 = vmul.f32 %v2117, 0.044715
        %v2246 = vmul.f32 %v2118, 0.044715
        %v2247 = vmul.f32 %v2119, 0.044715
        %v2248 = vmul.f32 %v2120, 0.044715
        %v2249 = vmul.f32 %v2121, 0.044715
        %v2250 = vmul.f32 %v2122, 0.044715
        %v2251 = vmul.f32 %v2123, 0.044715
        %v2252 = vmul.f32 %v2124, 0.044715
        %v2253 = vmul.f32 %v2125, 0.044715
        %v2254 = vmul.f32 %v2126, 0.044715
        %v2255 = vmul.f32 %v2127, 0.044715
        %v2256 = vmul.f32 %v2128, 0.044715
        %v2257 = vmul.f32 %v2129, 0.044715
        %v2258 = vmul.f32 %v2130, 0.044715
        %v2259 = vmul.f32 %v2131, 0.044715
        %v2260 = vmul.f32 %v2132, 0.044715
        %v2261 = vmul.f32 %v2133, 0.044715
        %v2262 = vmul.f32 %v2134, 0.044715
        %v2263 = vmul.f32 %v2135, 0.044715
        %v2264 = vmul.f32 %v2136, 0.044715
        %v2265 = vmul.f32 %v2137, 0.044715
        %v2266 = vmul.f32 %v2138, 0.044715
        %v2267 = vmul.f32 %v2139, 0.044715
        %v2268 = vmul.f32 %v2140, 0.044715
        %v2269 = vmul.f32 %v2141, 0.044715
        %v2270 = vmul.f32 %v2142, 0.044715
        %v2271 = vmul.f32 %v2143, 0.044715
        %v2272 = vmul.f32 %v2144, 0.044715
        %v2273 = vmul.f32 %v2145, 0.044715
        %v2274 = vmul.f32 %v2146, 0.044715
        %v2275 = vmul.f32 %v2147, 0.044715
        %v2276 = vmul.f32 %v2148, 0.044715
        %v2277 = vmul.f32 %v2149, 0.044715
        %v2278 = vmul.f32 %v2150, 0.044715
        %v2279 = vmul.f32 %v2151, 0.044715
        %v2280 = vmul.f32 %v2152, 0.044715
        %v2281 = vmul.f32 %v2153, 0.044715
        %v2282 = vmul.f32 %v2154, 0.044715
        %v2283 = vmul.f32 %v2155, 0.044715
        %v2284 = vmul.f32 %v2156, 0.044715
        %v2285 = vmul.f32 %v2157, 0.044715
        %v2286 = vmul.f32 %v2158, 0.044715
        %v2287 = vmul.f32 %v2159, 0.044715
        %v2288 = vmul.f32 %v2160, 0.044715
        %v2289 = vmul.f32 %v2161, 0.044715
        %v2290 = vmul.f32 %v2162, 0.044715
        %v2291 = vmul.f32 %v2163, 0.044715
        %v2292 = vmul.f32 %v2164, 0.044715
        %v2293 = vmul.f32 %v2165, 0.044715
        %v2294 = vmul.f32 %v2166, 0.044715
        %v2295 = vmul.f32 %v2167, 0.044715
        %v2296 = vmul.f32 %v2168, 0.044715
        %v2297 = vmul.f32 %v2169, 0.044715
        %v2298 = vmul.f32 %v2170, 0.044715
        %v2299 = vmul.f32 %v2171, 0.044715
        %v2300 = vmul.f32 %v2172, 0.044715
        %v2301 = vmul.f32 %v2173, 0.044715
        %v2302 = vmul.f32 %v2174, 0.044715
        %v2303 = vmul.f32 %v2175, 0.044715
        %v2304 = vmul.f32 %v2176, 0.044715
        %v2305 = vmul.f32 %v2177, 0.044715
        %v2306 = vmul.f32 %v2178, 0.044715
        %v2307 = vmul.f32 %v2179, 0.044715
        %v2308 = vmul.f32 %v2180, 0.044715
        %v2309 = vmul.f32 %v2245, %v2117
        %v2310 = vmul.f32 %v2246, %v2118
        %v2311 = vmul.f32 %v2247, %v2119
        %v2312 = vmul.f32 %v2248, %v2120
        %v2313 = vmul.f32 %v2249, %v2121
        %v2314 = vmul.f32 %v2250, %v2122
        %v2315 = vmul.f32 %v2251, %v2123
        %v2316 = vmul.f32 %v2252, %v2124
        %v2317 = vmul.f32 %v2253, %v2125
        %v2318 = vmul.f32 %v2254, %v2126
        %v2319 = vmul.f32 %v2255, %v2127
        %v2320 = vmul.f32 %v2256, %v2128
        %v2321 = vmul.f32 %v2257, %v2129
        %v2322 = vmul.f32 %v2258, %v2130
        %v2323 = vmul.f32 %v2259, %v2131
        %v2324 = vmul.f32 %v2260, %v2132
        %v2325 = vmul.f32 %v2261, %v2133
        %v2326 = vmul.f32 %v2262, %v2134
        %v2327 = vmul.f32 %v2263, %v2135
        %v2328 = vmul.f32 %v2264, %v2136
        %v2329 = vmul.f32 %v2265, %v2137
        %v2330 = vmul.f32 %v2266, %v2138
        %v2331 = vmul.f32 %v2267, %v2139
        %v2332 = vmul.f32 %v2268, %v2140
        %v2333 = vmul.f32 %v2269, %v2141
        %v2334 = vmul.f32 %v2270, %v2142
        %v2335 = vmul.f32 %v2271, %v2143
        %v2336 = vmul.f32 %v2272, %v2144
        %v2337 = vmul.f32 %v2273, %v2145
        %v2338 = vmul.f32 %v2274, %v2146
        %v2339 = vmul.f32 %v2275, %v2147
        %v2340 = vmul.f32 %v2276, %v2148
        %v2341 = vmul.f32 %v2277, %v2149
        %v2342 = vmul.f32 %v2278, %v2150
        %v2343 = vmul.f32 %v2279, %v2151
        %v2344 = vmul.f32 %v2280, %v2152
        %v2345 = vmul.f32 %v2281, %v2153
        %v2346 = vmul.f32 %v2282, %v2154
        %v2347 = vmul.f32 %v2283, %v2155
        %v2348 = vmul.f32 %v2284, %v2156
        %v2349 = vmul.f32 %v2285, %v2157
        %v2350 = vmul.f32 %v2286, %v2158
        %v2351 = vmul.f32 %v2287, %v2159
        %v2352 = vmul.f32 %v2288, %v2160
        %v2353 = vmul.f32 %v2289, %v2161
        %v2354 = vmul.f32 %v2290, %v2162
        %v2355 = vmul.f32 %v2291, %v2163
        %v2356 = vmul.f32 %v2292, %v2164
        %v2357 = vmul.f32 %v2293, %v2165
        %v2358 = vmul.f32 %v2294, %v2166
        %v2359 = vmul.f32 %v2295, %v2167
        %v2360 = vmul.f32 %v2296, %v2168
        %v2361 = vmul.f32 %v2297, %v2169
        %v2362 = vmul.f32 %v2298, %v2170
        %v2363 = vmul.f32 %v2299, %v2171
        %v2364 = vmul.f32 %v2300, %v2172
        %v2365 = vmul.f32 %v2301, %v2173
        %v2366 = vmul.f32 %v2302, %v2174
        %v2367 = vmul.f32 %v2303, %v2175
        %v2368 = vmul.f32 %v2304, %v2176
        %v2369 = vmul.f32 %v2305, %v2177
        %v2370 = vmul.f32 %v2306, %v2178
        %v2371 = vmul.f32 %v2307, %v2179
        %v2372 = vmul.f32 %v2308, %v2180
        %v2373 = vmul.f32 %v2309, %v2117
        %v2374 = vmul.f32 %v2310, %v2118
        %v2375 = vmul.f32 %v2311, %v2119
        %v2376 = vmul.f32 %v2312, %v2120
        %v2377 = vmul.f32 %v2313, %v2121
        %v2378 = vmul.f32 %v2314, %v2122
        %v2379 = vmul.f32 %v2315, %v2123
        %v2380 = vmul.f32 %v2316, %v2124
        %v2381 = vmul.f32 %v2317, %v2125
        %v2382 = vmul.f32 %v2318, %v2126
        %v2383 = vmul.f32 %v2319, %v2127
        %v2384 = vmul.f32 %v2320, %v2128
        %v2385 = vmul.f32 %v2321, %v2129
        %v2386 = vmul.f32 %v2322, %v2130
        %v2387 = vmul.f32 %v2323, %v2131
        %v2388 = vmul.f32 %v2324, %v2132
        %v2389 = vmul.f32 %v2325, %v2133
        %v2390 = vmul.f32 %v2326, %v2134
        %v2391 = vmul.f32 %v2327, %v2135
        %v2392 = vmul.f32 %v2328, %v2136
        %v2393 = vmul.f32 %v2329, %v2137
        %v2394 = vmul.f32 %v2330, %v2138
        %v2395 = vmul.f32 %v2331, %v2139
        %v2396 = vmul.f32 %v2332, %v2140
        %v2397 = vmul.f32 %v2333, %v2141
        %v2398 = vmul.f32 %v2334, %v2142
        %v2399 = vmul.f32 %v2335, %v2143
        %v2400 = vmul.f32 %v2336, %v2144
        %v2401 = vmul.f32 %v2337, %v2145
        %v2402 = vmul.f32 %v2338, %v2146
        %v2403 = vmul.f32 %v2339, %v2147
        %v2404 = vmul.f32 %v2340, %v2148
        %v2405 = vmul.f32 %v2341, %v2149
        %v2406 = vmul.f32 %v2342, %v2150
        %v2407 = vmul.f32 %v2343, %v2151
        %v2408 = vmul.f32 %v2344, %v2152
        %v2409 = vmul.f32 %v2345, %v2153
        %v2410 = vmul.f32 %v2346, %v2154
        %v2411 = vmul.f32 %v2347, %v2155
        %v2412 = vmul.f32 %v2348, %v2156
        %v2413 = vmul.f32 %v2349, %v2157
        %v2414 = vmul.f32 %v2350, %v2158
        %v2415 = vmul.f32 %v2351, %v2159
        %v2416 = vmul.f32 %v2352, %v2160
        %v2417 = vmul.f32 %v2353, %v2161
        %v2418 = vmul.f32 %v2354, %v2162
        %v2419 = vmul.f32 %v2355, %v2163
        %v2420 = vmul.f32 %v2356, %v2164
        %v2421 = vmul.f32 %v2357, %v2165
        %v2422 = vmul.f32 %v2358, %v2166
        %v2423 = vmul.f32 %v2359, %v2167
        %v2424 = vmul.f32 %v2360, %v2168
        %v2425 = vmul.f32 %v2361, %v2169
        %v2426 = vmul.f32 %v2362, %v2170
        %v2427 = vmul.f32 %v2363, %v2171
        %v2428 = vmul.f32 %v2364, %v2172
        %v2429 = vmul.f32 %v2365, %v2173
        %v2430 = vmul.f32 %v2366, %v2174
        %v2431 = vmul.f32 %v2367, %v2175
        %v2432 = vmul.f32 %v2368, %v2176
        %v2433 = vmul.f32 %v2369, %v2177
        %v2434 = vmul.f32 %v2370, %v2178
        %v2435 = vmul.f32 %v2371, %v2179
        %v2436 = vmul.f32 %v2372, %v2180
        %v2437 = vadd.f32 %v2117, %v2373
        %v2438 = vadd.f32 %v2118, %v2374
        %v2439 = vadd.f32 %v2119, %v2375
        %v2440 = vadd.f32 %v2120, %v2376
        %v2441 = vadd.f32 %v2121, %v2377
        %v2442 = vadd.f32 %v2122, %v2378
        %v2443 = vadd.f32 %v2123, %v2379
        %v2444 = vadd.f32 %v2124, %v2380
        %v2445 = vadd.f32 %v2125, %v2381
        %v2446 = vadd.f32 %v2126, %v2382
        %v2447 = vadd.f32 %v2127, %v2383
        %v2448 = vadd.f32 %v2128, %v2384
        %v2449 = vadd.f32 %v2129, %v2385
        %v2450 = vadd.f32 %v2130, %v2386
        %v2451 = vadd.f32 %v2131, %v2387
        %v2452 = vadd.f32 %v2132, %v2388
        %v2453 = vadd.f32 %v2133, %v2389
        %v2454 = vadd.f32 %v2134, %v2390
        %v2455 = vadd.f32 %v2135, %v2391
        %v2456 = vadd.f32 %v2136, %v2392
        %v2457 = vadd.f32 %v2137, %v2393
        %v2458 = vadd.f32 %v2138, %v2394
        %v2459 = vadd.f32 %v2139, %v2395
        %v2460 = vadd.f32 %v2140, %v2396
        %v2461 = vadd.f32 %v2141, %v2397
        %v2462 = vadd.f32 %v2142, %v2398
        %v2463 = vadd.f32 %v2143, %v2399
        %v2464 = vadd.f32 %v2144, %v2400
        %v2465 = vadd.f32 %v2145, %v2401
        %v2466 = vadd.f32 %v2146, %v2402
        %v2467 = vadd.f32 %v2147, %v2403
        %v2468 = vadd.f32 %v2148, %v2404
        %v2469 = vadd.f32 %v2149, %v2405
        %v2470 = vadd.f32 %v2150, %v2406
        %v2471 = vadd.f32 %v2151, %v2407
        %v2472 = vadd.f32 %v2152, %v2408
        %v2473 = vadd.f32 %v2153, %v2409
        %v2474 = vadd.f32 %v2154, %v2410
        %v2475 = vadd.f32 %v2155, %v2411
        %v2476 = vadd.f32 %v2156, %v2412
        %v2477 = vadd.f32 %v2157, %v2413
        %v2478 = vadd.f32 %v2158, %v2414
        %v2479 = vadd.f32 %v2159, %v2415
        %v2480 = vadd.f32 %v2160, %v2416
        %v2481 = vadd.f32 %v2161, %v2417
        %v2482 = vadd.f32 %v2162, %v2418
        %v2483 = vadd.f32 %v2163, %v2419
        %v2484 = vadd.f32 %v2164, %v2420
        %v2485 = vadd.f32 %v2165, %v2421
        %v2486 = vadd.f32 %v2166, %v2422
        %v2487 = vadd.f32 %v2167, %v2423
        %v2488 = vadd.f32 %v2168, %v2424
        %v2489 = vadd.f32 %v2169, %v2425
        %v2490 = vadd.f32 %v2170, %v2426
        %v2491 = vadd.f32 %v2171, %v2427
        %v2492 = vadd.f32 %v2172, %v2428
        %v2493 = vadd.f32 %v2173, %v2429
        %v2494 = vadd.f32 %v2174, %v2430
        %v2495 = vadd.f32 %v2175, %v2431
        %v2496 = vadd.f32 %v2176, %v2432
        %v2497 = vadd.f32 %v2177, %v2433
        %v2498 = vadd.f32 %v2178, %v2434
        %v2499 = vadd.f32 %v2179, %v2435
        %v2500 = vadd.f32 %v2180, %v2436
        %v2501 = vmul.f32 %v2437, 0.7978846
        %v2502 = vmul.f32 %v2438, 0.7978846
        %v2503 = vmul.f32 %v2439, 0.7978846
        %v2504 = vmul.f32 %v2440, 0.7978846
        %v2505 = vmul.f32 %v2441, 0.7978846
        %v2506 = vmul.f32 %v2442, 0.7978846
        %v2507 = vmul.f32 %v2443, 0.7978846
        %v2508 = vmul.f32 %v2444, 0.7978846
        %v2509 = vmul.f32 %v2445, 0.7978846
        %v2510 = vmul.f32 %v2446, 0.7978846
        %v2511 = vmul.f32 %v2447, 0.7978846
        %v2512 = vmul.f32 %v2448, 0.7978846
        %v2513 = vmul.f32 %v2449, 0.7978846
        %v2514 = vmul.f32 %v2450, 0.7978846
        %v2515 = vmul.f32 %v2451, 0.7978846
        %v2516 = vmul.f32 %v2452, 0.7978846
        %v2517 = vmul.f32 %v2453, 0.7978846
        %v2518 = vmul.f32 %v2454, 0.7978846
        %v2519 = vmul.f32 %v2455, 0.7978846
        %v2520 = vmul.f32 %v2456, 0.7978846
        %v2521 = vmul.f32 %v2457, 0.7978846
        %v2522 = vmul.f32 %v2458, 0.7978846
        %v2523 = vmul.f32 %v2459, 0.7978846
        %v2524 = vmul.f32 %v2460, 0.7978846
        %v2525 = vmul.f32 %v2461, 0.7978846
        %v2526 = vmul.f32 %v2462, 0.7978846
        %v2527 = vmul.f32 %v2463, 0.7978846
        %v2528 = vmul.f32 %v2464, 0.7978846
        %v2529 = vmul.f32 %v2465, 0.7978846
        %v2530 = vmul.f32 %v2466, 0.7978846
        %v2531 = vmul.f32 %v2467, 0.7978846
        %v2532 = vmul.f32 %v2468, 0.7978846
        %v2533 = vmul.f32 %v2469, 0.7978846
        %v2534 = vmul.f32 %v2470, 0.7978846
        %v2535 = vmul.f32 %v2471, 0.7978846
        %v2536 = vmul.f32 %v2472, 0.7978846
        %v2537 = vmul.f32 %v2473, 0.7978846
        %v2538 = vmul.f32 %v2474, 0.7978846
        %v2539 = vmul.f32 %v2475, 0.7978846
        %v2540 = vmul.f32 %v2476, 0.7978846
        %v2541 = vmul.f32 %v2477, 0.7978846
        %v2542 = vmul.f32 %v2478, 0.7978846
        %v2543 = vmul.f32 %v2479, 0.7978846
        %v2544 = vmul.f32 %v2480, 0.7978846
        %v2545 = vmul.f32 %v2481, 0.7978846
        %v2546 = vmul.f32 %v2482, 0.7978846
        %v2547 = vmul.f32 %v2483, 0.7978846
        %v2548 = vmul.f32 %v2484, 0.7978846
        %v2549 = vmul.f32 %v2485, 0.7978846
        %v2550 = vmul.f32 %v2486, 0.7978846
        %v2551 = vmul.f32 %v2487, 0.7978846
        %v2552 = vmul.f32 %v2488, 0.7978846
        %v2553 = vmul.f32 %v2489, 0.7978846
        %v2554 = vmul.f32 %v2490, 0.7978846
        %v2555 = vmul.f32 %v2491, 0.7978846
        %v2556 = vmul.f32 %v2492, 0.7978846
        %v2557 = vmul.f32 %v2493, 0.7978846
        %v2558 = vmul.f32 %v2494, 0.7978846
        %v2559 = vmul.f32 %v2495, 0.7978846
        %v2560 = vmul.f32 %v2496, 0.7978846
        %v2561 = vmul.f32 %v2497, 0.7978846
        %v2562 = vmul.f32 %v2498, 0.7978846
        %v2563 = vmul.f32 %v2499, 0.7978846
        %v2564 = vmul.f32 %v2500, 0.7978846
        %v2565 = vtanh.pop %v2501
        %v2566 = vtanh.pop %v2502
        %v2567 = vtanh.pop %v2503
        %v2568 = vtanh.pop %v2504
        %v2569 = vtanh.pop %v2505
        %v2570 = vtanh.pop %v2506
        %v2571 = vtanh.pop %v2507
        %v2572 = vtanh.pop %v2508
        %v2573 = vtanh.pop %v2509
        %v2574 = vtanh.pop %v2510
        %v2575 = vtanh.pop %v2511
        %v2576 = vtanh.pop %v2512
        %v2577 = vtanh.pop %v2513
        %v2578 = vtanh.pop %v2514
        %v2579 = vtanh.pop %v2515
        %v2580 = vtanh.pop %v2516
        %v2581 = vtanh.pop %v2517
        %v2582 = vtanh.pop %v2518
        %v2583 = vtanh.pop %v2519
        %v2584 = vtanh.pop %v2520
        %v2585 = vtanh.pop %v2521
        %v2586 = vtanh.pop %v2522
        %v2587 = vtanh.pop %v2523
        %v2588 = vtanh.pop %v2524
        %v2589 = vtanh.pop %v2525
        %v2590 = vtanh.pop %v2526
        %v2591 = vtanh.pop %v2527
        %v2592 = vtanh.pop %v2528
        %v2593 = vtanh.pop %v2529
        %v2594 = vtanh.pop %v2530
        %v2595 = vtanh.pop %v2531
        %v2596 = vtanh.pop %v2532
        %v2597 = vtanh.pop %v2533
        %v2598 = vtanh.pop %v2534
        %v2599 = vtanh.pop %v2535
        %v2600 = vtanh.pop %v2536
        %v2601 = vtanh.pop %v2537
        %v2602 = vtanh.pop %v2538
        %v2603 = vtanh.pop %v2539
        %v2604 = vtanh.pop %v2540
        %v2605 = vtanh.pop %v2541
        %v2606 = vtanh.pop %v2542
        %v2607 = vtanh.pop %v2543
        %v2608 = vtanh.pop %v2544
        %v2609 = vtanh.pop %v2545
        %v2610 = vtanh.pop %v2546
        %v2611 = vtanh.pop %v2547
        %v2612 = vtanh.pop %v2548
        %v2613 = vtanh.pop %v2549
        %v2614 = vtanh.pop %v2550
        %v2615 = vtanh.pop %v2551
        %v2616 = vtanh.pop %v2552
        %v2617 = vtanh.pop %v2553
        %v2618 = vtanh.pop %v2554
        %v2619 = vtanh.pop %v2555
        %v2620 = vtanh.pop %v2556
        %v2621 = vtanh.pop %v2557
        %v2622 = vtanh.pop %v2558
        %v2623 = vtanh.pop %v2559
        %v2624 = vtanh.pop %v2560
        %v2625 = vtanh.pop %v2561
        %v2626 = vtanh.pop %v2562
        %v2627 = vtanh.pop %v2563
        %v2628 = vtanh.pop %v2564
        %v2629 = vadd.f32 %v2565, 1.0
        %v2630 = vadd.f32 %v2566, 1.0
        %v2631 = vadd.f32 %v2567, 1.0
        %v2632 = vadd.f32 %v2568, 1.0
        %v2633 = vadd.f32 %v2569, 1.0
        %v2634 = vadd.f32 %v2570, 1.0
        %v2635 = vadd.f32 %v2571, 1.0
        %v2636 = vadd.f32 %v2572, 1.0
        %v2637 = vadd.f32 %v2573, 1.0
        %v2638 = vadd.f32 %v2574, 1.0
        %v2639 = vadd.f32 %v2575, 1.0
        %v2640 = vadd.f32 %v2576, 1.0
        %v2641 = vadd.f32 %v2577, 1.0
        %v2642 = vadd.f32 %v2578, 1.0
        %v2643 = vadd.f32 %v2579, 1.0
        %v2644 = vadd.f32 %v2580, 1.0
        %v2645 = vadd.f32 %v2581, 1.0
        %v2646 = vadd.f32 %v2582, 1.0
        %v2647 = vadd.f32 %v2583, 1.0
        %v2648 = vadd.f32 %v2584, 1.0
        %v2649 = vadd.f32 %v2585, 1.0
        %v2650 = vadd.f32 %v2586, 1.0
        %v2651 = vadd.f32 %v2587, 1.0
        %v2652 = vadd.f32 %v2588, 1.0
        %v2653 = vadd.f32 %v2589, 1.0
        %v2654 = vadd.f32 %v2590, 1.0
        %v2655 = vadd.f32 %v2591, 1.0
        %v2656 = vadd.f32 %v2592, 1.0
        %v2657 = vadd.f32 %v2593, 1.0
        %v2658 = vadd.f32 %v2594, 1.0
        %v2659 = vadd.f32 %v2595, 1.0
        %v2660 = vadd.f32 %v2596, 1.0
        %v2661 = vadd.f32 %v2597, 1.0
        %v2662 = vadd.f32 %v2598, 1.0
        %v2663 = vadd.f32 %v2599, 1.0
        %v2664 = vadd.f32 %v2600, 1.0
        %v2665 = vadd.f32 %v2601, 1.0
        %v2666 = vadd.f32 %v2602, 1.0
        %v2667 = vadd.f32 %v2603, 1.0
        %v2668 = vadd.f32 %v2604, 1.0
        %v2669 = vadd.f32 %v2605, 1.0
        %v2670 = vadd.f32 %v2606, 1.0
        %v2671 = vadd.f32 %v2607, 1.0
        %v2672 = vadd.f32 %v2608, 1.0
        %v2673 = vadd.f32 %v2609, 1.0
        %v2674 = vadd.f32 %v2610, 1.0
        %v2675 = vadd.f32 %v2611, 1.0
        %v2676 = vadd.f32 %v2612, 1.0
        %v2677 = vadd.f32 %v2613, 1.0
        %v2678 = vadd.f32 %v2614, 1.0
        %v2679 = vadd.f32 %v2615, 1.0
        %v2680 = vadd.f32 %v2616, 1.0
        %v2681 = vadd.f32 %v2617, 1.0
        %v2682 = vadd.f32 %v2618, 1.0
        %v2683 = vadd.f32 %v2619, 1.0
        %v2684 = vadd.f32 %v2620, 1.0
        %v2685 = vadd.f32 %v2621, 1.0
        %v2686 = vadd.f32 %v2622, 1.0
        %v2687 = vadd.f32 %v2623, 1.0
        %v2688 = vadd.f32 %v2624, 1.0
        %v2689 = vadd.f32 %v2625, 1.0
        %v2690 = vadd.f32 %v2626, 1.0
        %v2691 = vadd.f32 %v2627, 1.0
        %v2692 = vadd.f32 %v2628, 1.0
        %v2693 = vmul.f32 %v2181, %v2629
        %v2694 = vmul.f32 %v2182, %v2630
        %v2695 = vmul.f32 %v2183, %v2631
        %v2696 = vmul.f32 %v2184, %v2632
        %v2697 = vmul.f32 %v2185, %v2633
        %v2698 = vmul.f32 %v2186, %v2634
        %v2699 = vmul.f32 %v2187, %v2635
        %v2700 = vmul.f32 %v2188, %v2636
        %v2701 = vmul.f32 %v2189, %v2637
        %v2702 = vmul.f32 %v2190, %v2638
        %v2703 = vmul.f32 %v2191, %v2639
        %v2704 = vmul.f32 %v2192, %v2640
        %v2705 = vmul.f32 %v2193, %v2641
        %v2706 = vmul.f32 %v2194, %v2642
        %v2707 = vmul.f32 %v2195, %v2643
        %v2708 = vmul.f32 %v2196, %v2644
        %v2709 = vmul.f32 %v2197, %v2645
        %v2710 = vmul.f32 %v2198, %v2646
        %v2711 = vmul.f32 %v2199, %v2647
        %v2712 = vmul.f32 %v2200, %v2648
        %v2713 = vmul.f32 %v2201, %v2649
        %v2714 = vmul.f32 %v2202, %v2650
        %v2715 = vmul.f32 %v2203, %v2651
        %v2716 = vmul.f32 %v2204, %v2652
        %v2717 = vmul.f32 %v2205, %v2653
        %v2718 = vmul.f32 %v2206, %v2654
        %v2719 = vmul.f32 %v2207, %v2655
        %v2720 = vmul.f32 %v2208, %v2656
        %v2721 = vmul.f32 %v2209, %v2657
        %v2722 = vmul.f32 %v2210, %v2658
        %v2723 = vmul.f32 %v2211, %v2659
        %v2724 = vmul.f32 %v2212, %v2660
        %v2725 = vmul.f32 %v2213, %v2661
        %v2726 = vmul.f32 %v2214, %v2662
        %v2727 = vmul.f32 %v2215, %v2663
        %v2728 = vmul.f32 %v2216, %v2664
        %v2729 = vmul.f32 %v2217, %v2665
        %v2730 = vmul.f32 %v2218, %v2666
        %v2731 = vmul.f32 %v2219, %v2667
        %v2732 = vmul.f32 %v2220, %v2668
        %v2733 = vmul.f32 %v2221, %v2669
        %v2734 = vmul.f32 %v2222, %v2670
        %v2735 = vmul.f32 %v2223, %v2671
        %v2736 = vmul.f32 %v2224, %v2672
        %v2737 = vmul.f32 %v2225, %v2673
        %v2738 = vmul.f32 %v2226, %v2674
        %v2739 = vmul.f32 %v2227, %v2675
        %v2740 = vmul.f32 %v2228, %v2676
        %v2741 = vmul.f32 %v2229, %v2677
        %v2742 = vmul.f32 %v2230, %v2678
        %v2743 = vmul.f32 %v2231, %v2679
        %v2744 = vmul.f32 %v2232, %v2680
        %v2745 = vmul.f32 %v2233, %v2681
        %v2746 = vmul.f32 %v2234, %v2682
        %v2747 = vmul.f32 %v2235, %v2683
        %v2748 = vmul.f32 %v2236, %v2684
        %v2749 = vmul.f32 %v2237, %v2685
        %v2750 = vmul.f32 %v2238, %v2686
        %v2751 = vmul.f32 %v2239, %v2687
        %v2752 = vmul.f32 %v2240, %v2688
        %v2753 = vmul.f32 %v2241, %v2689
        %v2754 = vmul.f32 %v2242, %v2690
        %v2755 = vmul.f32 %v2243, %v2691
        %v2756 = vmul.f32 %v2244, %v2692
        %v2757 = vld [vmem:[%s7] sm:$0xff]
        %v2758 = vld [vmem:[%s7 + $0x8] sm:$0xff]
        %v2759 = vld [vmem:[%s7 + $0x10] sm:$0xff]
        %v2760 = vld [vmem:[%s7 + $0x18] sm:$0xff]
        %2761 = vmatpush.msra.mxu0 %v1864
        %2762 = vmatpush.msra.mxu0 %v1860
        %2763 = vmatpush.msra.mxu0 %v1856
        %2764 = vmatpush.msra.mxu0 %v1852
        %2765 = vmatpush.msra.mxu0 %v1848
        %2766 = vmatpush.msra.mxu0 %v1844
        %2767 = vmatpush.msra.mxu0 %v1840
        %2768 = vmatpush.msra.mxu0 %v1836
        %2769 = vmatpush.msra.mxu0 %v1832
        %2770 = vmatpush.msra.mxu0 %v1828
        %2771 = vmatpush.msra.mxu0 %v1824
        %2772 = vmatpush.msra.mxu0 %v1820
        %2773 = vmatpush.msra.mxu0 %v1816
        %2774 = vmatpush.msra.mxu0 %v1812
        %2775 = vmatpush.msra.mxu0 %v1808
        %2776 = vmatpush.msra.mxu0 %v1804
        %2777 = vmatmul.f32.gmra.mxu0 %v2757
        %v2778 = vpop.f32.mrf.mxu0
        %v2779 = vadd.f32 0.0, %v2778
        %2780 = vmatmul.f32.gmra.mxu0 %v2758
        %v2781 = vpop.f32.mrf.mxu0
        %v2782 = vadd.f32 0.0, %v2781
        %2783 = vmatmul.f32.gmra.mxu0 %v2759
        %v2784 = vpop.f32.mrf.mxu0
        %v2785 = vadd.f32 0.0, %v2784
        %2786 = vmatmul.f32.gmra.mxu0 %v2760
        %v2787 = vpop.f32.mrf.mxu0
        %v2788 = vadd.f32 0.0, %v2787
        %2789 = vdwg.mxu0
        %2790 = vmatpush.msra.mxu0 %v1865
        %2791 = vmatpush.msra.mxu0 %v1861
        %2792 = vmatpush.msra.mxu0 %v1857
        %2793 = vmatpush.msra.mxu0 %v1853
        %2794 = vmatpush.msra.mxu0 %v1849
        %2795 = vmatpush.msra.mxu0 %v1845
        %2796 = vmatpush.msra.mxu0 %v1841
        %2797 = vmatpush.msra.mxu0 %v1837
        %2798 = vmatpush.msra.mxu0 %v1833
        %2799 = vmatpush.msra.mxu0 %v1829
        %2800 = vmatpush.msra.mxu0 %v1825
        %2801 = vmatpush.msra.mxu0 %v1821
        %2802 = vmatpush.msra.mxu0 %v1817
        %2803 = vmatpush.msra.mxu0 %v1813
        %2804 = vmatpush.msra.mxu0 %v1809
        %2805 = vmatpush.msra.mxu0 %v1805
        %2806 = vmatmul.f32.gmra.mxu0 %v2757
        %v2807 = vpop.f32.mrf.mxu0
        %v2808 = vadd.f32 0.0, %v2807
        %2809 = vmatmul.f32.gmra.mxu0 %v2758
        %v2810 = vpop.f32.mrf.mxu0
        %v2811 = vadd.f32 0.0, %v2810
        %2812 = vmatmul.f32.gmra.mxu0 %v2759
        %v2813 = vpop.f32.mrf.mxu0
        %v2814 = vadd.f32 0.0, %v2813
        %2815 = vmatmul.f32.gmra.mxu0 %v2760
        %v2816 = vpop.f32.mrf.mxu0
        %v2817 = vadd.f32 0.0, %v2816
        %2818 = vdwg.mxu0
        %2819 = vmatpush.msra.mxu0 %v1866
        %2820 = vmatpush.msra.mxu0 %v1862
        %2821 = vmatpush.msra.mxu0 %v1858
        %2822 = vmatpush.msra.mxu0 %v1854
        %2823 = vmatpush.msra.mxu0 %v1850
        %2824 = vmatpush.msra.mxu0 %v1846
        %2825 = vmatpush.msra.mxu0 %v1842
        %2826 = vmatpush.msra.mxu0 %v1838
        %2827 = vmatpush.msra.mxu0 %v1834
        %2828 = vmatpush.msra.mxu0 %v1830
        %2829 = vmatpush.msra.mxu0 %v1826
        %2830 = vmatpush.msra.mxu0 %v1822
        %2831 = vmatpush.msra.mxu0 %v1818
        %2832 = vmatpush.msra.mxu0 %v1814
        %2833 = vmatpush.msra.mxu0 %v1810
        %2834 = vmatpush.msra.mxu0 %v1806
        %2835 = vmatmul.f32.gmra.mxu0 %v2757
        %v2836 = vpop.f32.mrf.mxu0
        %v2837 = vadd.f32 0.0, %v2836
        %2838 = vmatmul.f32.gmra.mxu0 %v2758
        %v2839 = vpop.f32.mrf.mxu0
        %v2840 = vadd.f32 0.0, %v2839
        %2841 = vmatmul.f32.gmra.mxu0 %v2759
        %v2842 = vpop.f32.mrf.mxu0
        %v2843 = vadd.f32 0.0, %v2842
        %2844 = vmatmul.f32.gmra.mxu0 %v2760
        %v2845 = vpop.f32.mrf.mxu0
        %v2846 = vadd.f32 0.0, %v2845
        %2847 = vdwg.mxu0
        %2848 = vmatpush.msra.mxu0 %v1867
        %2849 = vmatpush.msra.mxu0 %v1863
        %2850 = vmatpush.msra.mxu0 %v1859
        %2851 = vmatpush.msra.mxu0 %v1855
        %2852 = vmatpush.msra.mxu0 %v1851
        %2853 = vmatpush.msra.mxu0 %v1847
        %2854 = vmatpush.msra.mxu0 %v1843
        %2855 = vmatpush.msra.mxu0 %v1839
        %2856 = vmatpush.msra.mxu0 %v1835
        %2857 = vmatpush.msra.mxu0 %v1831
        %2858 = vmatpush.msra.mxu0 %v1827
        %2859 = vmatpush.msra.mxu0 %v1823
        %2860 = vmatpush.msra.mxu0 %v1819
        %2861 = vmatpush.msra.mxu0 %v1815
        %2862 = vmatpush.msra.mxu0 %v1811
        %2863 = vmatpush.msra.mxu0 %v1807
        %2864 = vmatmul.f32.gmra.mxu0 %v2757
        %v2865 = vpop.f32.mrf.mxu0
        %v2866 = vadd.f32 0.0, %v2865
        %2867 = vmatmul.f32.gmra.mxu0 %v2758
        %v2868 = vpop.f32.mrf.mxu0
        %v2869 = vadd.f32 0.0, %v2868
        %2870 = vmatmul.f32.gmra.mxu0 %v2759
        %v2871 = vpop.f32.mrf.mxu0
        %v2872 = vadd.f32 0.0, %v2871
        %2873 = vmatmul.f32.gmra.mxu0 %v2760
        %v2874 = vpop.f32.mrf.mxu0
        %v2875 = vadd.f32 0.0, %v2874
        %2876 = vdwg.mxu0
        %v2877 = vadd.f32 %v872, %v2779
        %v2878 = vadd.f32 %v873, %v2808
        %v2879 = vadd.f32 %v874, %v2837
        %v2880 = vadd.f32 %v875, %v2866
        %v2881 = vadd.f32 %v876, %v2782
        %v2882 = vadd.f32 %v877, %v2811
        %v2883 = vadd.f32 %v878, %v2840
        %v2884 = vadd.f32 %v879, %v2869
        %v2885 = vadd.f32 %v880, %v2785
        %v2886 = vadd.f32 %v881, %v2814
        %v2887 = vadd.f32 %v882, %v2843
        %v2888 = vadd.f32 %v883, %v2872
        %v2889 = vadd.f32 %v884, %v2788
        %v2890 = vadd.f32 %v885, %v2817
        %v2891 = vadd.f32 %v886, %v2846
        %v2892 = vadd.f32 %v887, %v2875
        %v2893 = vld [vmem:[%s8] sm:$0xff]
        %v2894 = vld [vmem:[%s8 + $0x8] sm:$0xff]
        %v2895 = vld [vmem:[%s8 + $0x10] sm:$0xff]
        %v2896 = vld [vmem:[%s8 + $0x18] sm:$0xff]
        %2897 = vmatpush.msra.mxu0 %v2753
        %2898 = vmatpush.msra.mxu0 %v2749
        %2899 = vmatpush.msra.mxu0 %v2745
        %2900 = vmatpush.msra.mxu0 %v2741
        %2901 = vmatpush.msra.mxu0 %v2737
        %2902 = vmatpush.msra.mxu0 %v2733
        %2903 = vmatpush.msra.mxu0 %v2729
        %2904 = vmatpush.msra.mxu0 %v2725
        %2905 = vmatpush.msra.mxu0 %v2721
        %2906 = vmatpush.msra.mxu0 %v2717
        %2907 = vmatpush.msra.mxu0 %v2713
        %2908 = vmatpush.msra.mxu0 %v2709
        %2909 = vmatpush.msra.mxu0 %v2705
        %2910 = vmatpush.msra.mxu0 %v2701
        %2911 = vmatpush.msra.mxu0 %v2697
        %2912 = vmatpush.msra.mxu0 %v2693
        %2913 = vmatmul.f32.gmra.mxu0 %v2893
        %v2914 = vpop.f32.mrf.mxu0
        %v2915 = vadd.f32 0.0, %v2914
        %2916 = vmatmul.f32.gmra.mxu0 %v2894
        %v2917 = vpop.f32.mrf.mxu0
        %v2918 = vadd.f32 0.0, %v2917
        %2919 = vmatmul.f32.gmra.mxu0 %v2895
        %v2920 = vpop.f32.mrf.mxu0
        %v2921 = vadd.f32 0.0, %v2920
        %2922 = vmatmul.f32.gmra.mxu0 %v2896
        %v2923 = vpop.f32.mrf.mxu0
        %v2924 = vadd.f32 0.0, %v2923
        %2925 = vdwg.mxu0
        %2926 = vmatpush.msra.mxu0 %v2754
        %2927 = vmatpush.msra.mxu0 %v2750
        %2928 = vmatpush.msra.mxu0 %v2746
        %2929 = vmatpush.msra.mxu0 %v2742
        %2930 = vmatpush.msra.mxu0 %v2738
        %2931 = vmatpush.msra.mxu0 %v2734
        %2932 = vmatpush.msra.mxu0 %v2730
        %2933 = vmatpush.msra.mxu0 %v2726
        %2934 = vmatpush.msra.mxu0 %v2722
        %2935 = vmatpush.msra.mxu0 %v2718
        %2936 = vmatpush.msra.mxu0 %v2714
        %2937 = vmatpush.msra.mxu0 %v2710
        %2938 = vmatpush.msra.mxu0 %v2706
        %2939 = vmatpush.msra.mxu0 %v2702
        %2940 = vmatpush.msra.mxu0 %v2698
        %2941 = vmatpush.msra.mxu0 %v2694
        %2942 = vmatmul.f32.gmra.mxu0 %v2893
        %v2943 = vpop.f32.mrf.mxu0
        %v2944 = vadd.f32 0.0, %v2943
        %2945 = vmatmul.f32.gmra.mxu0 %v2894
        %v2946 = vpop.f32.mrf.mxu0
        %v2947 = vadd.f32 0.0, %v2946
        %2948 = vmatmul.f32.gmra.mxu0 %v2895
        %v2949 = vpop.f32.mrf.mxu0
        %v2950 = vadd.f32 0.0, %v2949
        %2951 = vmatmul.f32.gmra.mxu0 %v2896
        %v2952 = vpop.f32.mrf.mxu0
        %v2953 = vadd.f32 0.0, %v2952
        %2954 = vdwg.mxu0
        %2955 = vmatpush.msra.mxu0 %v2755
        %2956 = vmatpush.msra.mxu0 %v2751
        %2957 = vmatpush.msra.mxu0 %v2747
        %2958 = vmatpush.msra.mxu0 %v2743
        %2959 = vmatpush.msra.mxu0 %v2739
        %2960 = vmatpush.msra.mxu0 %v2735
        %2961 = vmatpush.msra.mxu0 %v2731
        %2962 = vmatpush.msra.mxu0 %v2727
        %2963 = vmatpush.msra.mxu0 %v2723
        %2964 = vmatpush.msra.mxu0 %v2719
        %2965 = vmatpush.msra.mxu0 %v2715
        %2966 = vmatpush.msra.mxu0 %v2711
        %2967 = vmatpush.msra.mxu0 %v2707
        %2968 = vmatpush.msra.mxu0 %v2703
        %2969 = vmatpush.msra.mxu0 %v2699
        %2970 = vmatpush.msra.mxu0 %v2695
        %2971 = vmatmul.f32.gmra.mxu0 %v2893
        %v2972 = vpop.f32.mrf.mxu0
        %v2973 = vadd.f32 0.0, %v2972
        %2974 = vmatmul.f32.gmra.mxu0 %v2894
        %v2975 = vpop.f32.mrf.mxu0
        %v2976 = vadd.f32 0.0, %v2975
        %2977 = vmatmul.f32.gmra.mxu0 %v2895
        %v2978 = vpop.f32.mrf.mxu0
        %v2979 = vadd.f32 0.0, %v2978
        %2980 = vmatmul.f32.gmra.mxu0 %v2896
        %v2981 = vpop.f32.mrf.mxu0
        %v2982 = vadd.f32 0.0, %v2981
        %2983 = vdwg.mxu0
        %2984 = vmatpush.msra.mxu0 %v2756
        %2985 = vmatpush.msra.mxu0 %v2752
        %2986 = vmatpush.msra.mxu0 %v2748
        %2987 = vmatpush.msra.mxu0 %v2744
        %2988 = vmatpush.msra.mxu0 %v2740
        %2989 = vmatpush.msra.mxu0 %v2736
        %2990 = vmatpush.msra.mxu0 %v2732
        %2991 = vmatpush.msra.mxu0 %v2728
        %2992 = vmatpush.msra.mxu0 %v2724
        %2993 = vmatpush.msra.mxu0 %v2720
        %2994 = vmatpush.msra.mxu0 %v2716
        %2995 = vmatpush.msra.mxu0 %v2712
        %2996 = vmatpush.msra.mxu0 %v2708
        %2997 = vmatpush.msra.mxu0 %v2704
        %2998 = vmatpush.msra.mxu0 %v2700
        %2999 = vmatpush.msra.mxu0 %v2696
        %3000 = vmatmul.f32.gmra.mxu0 %v2893
        %v3001 = vpop.f32.mrf.mxu0
        %v3002 = vadd.f32 0.0, %v3001
        %3003 = vmatmul.f32.gmra.mxu0 %v2894
        %v3004 = vpop.f32.mrf.mxu0
        %v3005 = vadd.f32 0.0, %v3004
        %3006 = vmatmul.f32.gmra.mxu0 %v2895
        %v3007 = vpop.f32.mrf.mxu0
        %v3008 = vadd.f32 0.0, %v3007
        %3009 = vmatmul.f32.gmra.mxu0 %v2896
        %v3010 = vpop.f32.mrf.mxu0
        %v3011 = vadd.f32 0.0, %v3010
        %3012 = vdwg.mxu0
        %v3013 = vadd.f32 %v2877, %v2915
        %v3014 = vadd.f32 %v2878, %v2944
        %v3015 = vadd.f32 %v2879, %v2973
        %v3016 = vadd.f32 %v2880, %v3002
        %v3017 = vadd.f32 %v2881, %v2918
        %v3018 = vadd.f32 %v2882, %v2947
        %v3019 = vadd.f32 %v2883, %v2976
        %v3020 = vadd.f32 %v2884, %v3005
        %v3021 = vadd.f32 %v2885, %v2921
        %v3022 = vadd.f32 %v2886, %v2950
        %v3023 = vadd.f32 %v2887, %v2979
        %v3024 = vadd.f32 %v2888, %v3008
        %v3025 = vadd.f32 %v2889, %v2924
        %v3026 = vadd.f32 %v2890, %v2953
        %v3027 = vadd.f32 %v2891, %v2982
        %v3028 = vadd.f32 %v2892, %v3011
        %v3029 = vld [vmem:[%s530] sm:$0xff]
        %v3030 = vld [vmem:[%s530 + $0x8] sm:$0xff]
        %v3031 = vld [vmem:[%s530 + $0x10] sm:$0xff]
        %v3032 = vld [vmem:[%s530 + $0x18] sm:$0xff]
        %3034 = vset.pattern.permute.xlu0 0
        %3035 = vperm.xlu0 %3034, %v3029
        %v3036 = vpop.permute.xlu0 %3035
        %3039 = vset.pattern.permute.xlu0 0
        %3040 = vperm.xlu0 %3039, %v3030
        %v3041 = vpop.permute.xlu0 %3040
        %3044 = vset.pattern.permute.xlu0 0
        %3045 = vperm.xlu0 %3044, %v3031
        %v3046 = vpop.permute.xlu0 %3045
        %3049 = vset.pattern.permute.xlu0 0
        %3050 = vperm.xlu0 %3049, %v3032
        %v3051 = vpop.permute.xlu0 %3050
        %v3053 = vadd.f32 %v3013, %v3036
        %v3054 = vadd.f32 %v3014, %v3036
        %v3055 = vadd.f32 %v3015, %v3036
        %v3056 = vadd.f32 %v3016, %v3036
        %v3057 = vadd.f32 %v3017, %v3041
        %v3058 = vadd.f32 %v3018, %v3041
        %v3059 = vadd.f32 %v3019, %v3041
        %v3060 = vadd.f32 %v3020, %v3041
        %v3061 = vadd.f32 %v3021, %v3046
        %v3062 = vadd.f32 %v3022, %v3046
        %v3063 = vadd.f32 %v3023, %v3046
        %v3064 = vadd.f32 %v3024, %v3046
        %v3065 = vadd.f32 %v3025, %v3051
        %v3066 = vadd.f32 %v3026, %v3051
        %v3067 = vadd.f32 %v3027, %v3051
        %v3068 = vadd.f32 %v3028, %v3051
        %v3069 = vld [vmem:[%s9] sm:$0xff]
        %v3070 = vld [vmem:[%s9 + $0x8] sm:$0xff]
        %v3071 = vld [vmem:[%s9 + $0x10] sm:$0xff]
        %v3072 = vld [vmem:[%s9 + $0x18] sm:$0xff]
        %3074 = vset.pattern.permute.xlu0 0
        %3075 = vperm.xlu0 %3074, %v585
        %v3076 = vpop.permute.xlu0 %3075
        %3079 = vset.pattern.permute.xlu0 0
        %3080 = vperm.xlu0 %3079, %v586
        %v3081 = vpop.permute.xlu0 %3080
        %3084 = vset.pattern.permute.xlu0 0
        %3085 = vperm.xlu0 %3084, %v587
        %v3086 = vpop.permute.xlu0 %3085
        %3089 = vset.pattern.permute.xlu0 0
        %3090 = vperm.xlu0 %3089, %v588
        %v3091 = vpop.permute.xlu0 %3090
        %vm3093 = vcmask 261120
        %v3095 = vsel %vm3093, %v3069, 0
        %v3098 = vsel %vm3093, %v3070, 0
        %v3101 = vsel %vm3093, %v3071, 0
        %v3104 = vsel %vm3093, %v3072, 0
        %3106 = vmatpush.msra.mxu0 0.0
        %3107 = vmatpush.msra.mxu0 0.0
        %3108 = vmatpush.msra.mxu0 0.0
        %3109 = vmatpush.msra.mxu0 0.0
        %3110 = vmatpush.msra.mxu0 0.0
        %3111 = vmatpush.msra.mxu0 0.0
        %3112 = vmatpush.msra.mxu0 0.0
        %3113 = vmatpush.msra.mxu0 0.0
        %3114 = vmatpush.msra.mxu0 0.0
        %3115 = vmatpush.msra.mxu0 0.0
        %3116 = vmatpush.msra.mxu0 0.0
        %3117 = vmatpush.msra.mxu0 0.0
        %3118 = vmatpush.msra.mxu0 %v3065
        %3119 = vmatpush.msra.mxu0 %v3061
        %3120 = vmatpush.msra.mxu0 %v3057
        %3121 = vmatpush.msra.mxu0 %v3053
        %3122 = vmatmul.f32.gmra.mxu0 %v3095
        %v3123 = vpop.f32.mrf.mxu0
        %v3124 = vadd.f32 %v3076, %v3123
        %3125 = vmatmul.f32.gmra.mxu0 %v3098
        %v3126 = vpop.f32.mrf.mxu0
        %v3127 = vadd.f32 %v3081, %v3126
        %3128 = vmatmul.f32.gmra.mxu0 %v3101
        %v3129 = vpop.f32.mrf.mxu0
        %v3130 = vadd.f32 %v3086, %v3129
        %3131 = vmatmul.f32.gmra.mxu0 %v3104
        %v3132 = vpop.f32.mrf.mxu0
        %v3133 = vadd.f32 %v3091, %v3132
        %3134 = vdwg.mxu0
        %3135 = vmatpush.msra.mxu0 0.0
        %3136 = vmatpush.msra.mxu0 0.0
        %3137 = vmatpush.msra.mxu0 0.0
        %3138 = vmatpush.msra.mxu0 0.0
        %3139 = vmatpush.msra.mxu0 0.0
        %3140 = vmatpush.msra.mxu0 0.0
        %3141 = vmatpush.msra.mxu0 0.0
        %3142 = vmatpush.msra.mxu0 0.0
        %3143 = vmatpush.msra.mxu0 0.0
        %3144 = vmatpush.msra.mxu0 0.0
        %3145 = vmatpush.msra.mxu0 0.0
        %3146 = vmatpush.msra.mxu0 0.0
        %3147 = vmatpush.msra.mxu0 %v3066
        %3148 = vmatpush.msra.mxu0 %v3062
        %3149 = vmatpush.msra.mxu0 %v3058
        %3150 = vmatpush.msra.mxu0 %v3054
        %3151 = vmatmul.f32.gmra.mxu0 %v3095
        %v3152 = vpop.f32.mrf.mxu0
        %v3153 = vadd.f32 %v3076, %v3152
        %3154 = vmatmul.f32.gmra.mxu0 %v3098
        %v3155 = vpop.f32.mrf.mxu0
        %v3156 = vadd.f32 %v3081, %v3155
        %3157 = vmatmul.f32.gmra.mxu0 %v3101
        %v3158 = vpop.f32.mrf.mxu0
        %v3159 = vadd.f32 %v3086, %v3158
        %3160 = vmatmul.f32.gmra.mxu0 %v3104
        %v3161 = vpop.f32.mrf.mxu0
        %v3162 = vadd.f32 %v3091, %v3161
        %3163 = vdwg.mxu0
        %3164 = vmatpush.msra.mxu0 0.0
        %3165 = vmatpush.msra.mxu0 0.0
        %3166 = vmatpush.msra.mxu0 0.0
        %3167 = vmatpush.msra.mxu0 0.0
        %3168 = vmatpush.msra.mxu0 0.0
        %3169 = vmatpush.msra.mxu0 0.0
        %3170 = vmatpush.msra.mxu0 0.0
        %3171 = vmatpush.msra.mxu0 0.0
        %3172 = vmatpush.msra.mxu0 0.0
        %3173 = vmatpush.msra.mxu0 0.0
        %3174 = vmatpush.msra.mxu0 0.0
        %3175 = vmatpush.msra.mxu0 0.0
        %3176 = vmatpush.msra.mxu0 %v3067
        %3177 = vmatpush.msra.mxu0 %v3063
        %3178 = vmatpush.msra.mxu0 %v3059
        %3179 = vmatpush.msra.mxu0 %v3055
        %3180 = vmatmul.f32.gmra.mxu0 %v3095
        %v3181 = vpop.f32.mrf.mxu0
        %v3182 = vadd.f32 %v3076, %v3181
        %3183 = vmatmul.f32.gmra.mxu0 %v3098
        %v3184 = vpop.f32.mrf.mxu0
        %v3185 = vadd.f32 %v3081, %v3184
        %3186 = vmatmul.f32.gmra.mxu0 %v3101
        %v3187 = vpop.f32.mrf.mxu0
        %v3188 = vadd.f32 %v3086, %v3187
        %3189 = vmatmul.f32.gmra.mxu0 %v3104
        %v3190 = vpop.f32.mrf.mxu0
        %v3191 = vadd.f32 %v3091, %v3190
        %3192 = vdwg.mxu0
        %3193 = vmatpush.msra.mxu0 0.0
        %3194 = vmatpush.msra.mxu0 0.0
        %3195 = vmatpush.msra.mxu0 0.0
        %3196 = vmatpush.msra.mxu0 0.0
        %3197 = vmatpush.msra.mxu0 0.0
        %3198 = vmatpush.msra.mxu0 0.0
        %3199 = vmatpush.msra.mxu0 0.0
        %3200 = vmatpush.msra.mxu0 0.0
        %3201 = vmatpush.msra.mxu0 0.0
        %3202 = vmatpush.msra.mxu0 0.0
        %3203 = vmatpush.msra.mxu0 0.0
        %3204 = vmatpush.msra.mxu0 0.0
        %3205 = vmatpush.msra.mxu0 %v3068
        %3206 = vmatpush.msra.mxu0 %v3064
        %3207 = vmatpush.msra.mxu0 %v3060
        %3208 = vmatpush.msra.mxu0 %v3056
        %3209 = vmatmul.f32.gmra.mxu0 %v3095
        %v3210 = vpop.f32.mrf.mxu0
        %v3211 = vadd.f32 %v3076, %v3210
        %3212 = vmatmul.f32.gmra.mxu0 %v3098
        %v3213 = vpop.f32.mrf.mxu0
        %v3214 = vadd.f32 %v3081, %v3213
        %3215 = vmatmul.f32.gmra.mxu0 %v3101
        %v3216 = vpop.f32.mrf.mxu0
        %v3217 = vadd.f32 %v3086, %v3216
        %3218 = vmatmul.f32.gmra.mxu0 %v3104
        %v3219 = vpop.f32.mrf.mxu0
        %v3220 = vadd.f32 %v3091, %v3219
        %3221 = vdwg.mxu0
        %v3222 = vmul.f32 %v3124, 0.5
        %v3223 = vmul.f32 %v3153, 0.5
        %v3224 = vmul.f32 %v3182, 0.5
        %v3225 = vmul.f32 %v3211, 0.5
        %v3226 = vmul.f32 %v3127, 0.5
        %v3227 = vmul.f32 %v3156, 0.5
        %v3228 = vmul.f32 %v3185, 0.5
        %v3229 = vmul.f32 %v3214, 0.5
        %v3230 = vmul.f32 %v3130, 0.5
        %v3231 = vmul.f32 %v3159, 0.5
        %v3232 = vmul.f32 %v3188, 0.5
        %v3233 = vmul.f32 %v3217, 0.5
        %v3234 = vmul.f32 %v3133, 0.5
        %v3235 = vmul.f32 %v3162, 0.5
        %v3236 = vmul.f32 %v3191, 0.5
        %v3237 = vmul.f32 %v3220, 0.5
        %v3238 = vmul.f32 %v3124, 0.044715
        %v3239 = vmul.f32 %v3153, 0.044715
        %v3240 = vmul.f32 %v3182, 0.044715
        %v3241 = vmul.f32 %v3211, 0.044715
        %v3242 = vmul.f32 %v3127, 0.044715
        %v3243 = vmul.f32 %v3156, 0.044715
        %v3244 = vmul.f32 %v3185, 0.044715
        %v3245 = vmul.f32 %v3214, 0.044715
        %v3246 = vmul.f32 %v3130, 0.044715
        %v3247 = vmul.f32 %v3159, 0.044715
        %v3248 = vmul.f32 %v3188, 0.044715
        %v3249 = vmul.f32 %v3217, 0.044715
        %v3250 = vmul.f32 %v3133, 0.044715
        %v3251 = vmul.f32 %v3162, 0.044715
        %v3252 = vmul.f32 %v3191, 0.044715
        %v3253 = vmul.f32 %v3220, 0.044715
        %v3254 = vmul.f32 %v3238, %v3124
        %v3255 = vmul.f32 %v3239, %v3153
        %v3256 = vmul.f32 %v3240, %v3182
        %v3257 = vmul.f32 %v3241, %v3211
        %v3258 = vmul.f32 %v3242, %v3127
        %v3259 = vmul.f32 %v3243, %v3156
        %v3260 = vmul.f32 %v3244, %v3185
        %v3261 = vmul.f32 %v3245, %v3214
        %v3262 = vmul.f32 %v3246, %v3130
        %v3263 = vmul.f32 %v3247, %v3159
        %v3264 = vmul.f32 %v3248, %v3188
        %v3265 = vmul.f32 %v3249, %v3217
        %v3266 = vmul.f32 %v3250, %v3133
        %v3267 = vmul.f32 %v3251, %v3162
        %v3268 = vmul.f32 %v3252, %v3191
        %v3269 = vmul.f32 %v3253, %v3220
        %v3270 = vmul.f32 %v3254, %v3124
        %v3271 = vmul.f32 %v3255, %v3153
        %v3272 = vmul.f32 %v3256, %v3182
        %v3273 = vmul.f32 %v3257, %v3211
        %v3274 = vmul.f32 %v3258, %v3127
        %v3275 = vmul.f32 %v3259, %v3156
        %v3276 = vmul.f32 %v3260, %v3185
        %v3277 = vmul.f32 %v3261, %v3214
        %v3278 = vmul.f32 %v3262, %v3130
        %v3279 = vmul.f32 %v3263, %v3159
        %v3280 = vmul.f32 %v3264, %v3188
        %v3281 = vmul.f32 %v3265, %v3217
        %v3282 = vmul.f32 %v3266, %v3133
        %v3283 = vmul.f32 %v3267, %v3162
        %v3284 = vmul.f32 %v3268, %v3191
        %v3285 = vmul.f32 %v3269, %v3220
        %v3286 = vadd.f32 %v3124, %v3270
        %v3287 = vadd.f32 %v3153, %v3271
        %v3288 = vadd.f32 %v3182, %v3272
        %v3289 = vadd.f32 %v3211, %v3273
        %v3290 = vadd.f32 %v3127, %v3274
        %v3291 = vadd.f32 %v3156, %v3275
        %v3292 = vadd.f32 %v3185, %v3276
        %v3293 = vadd.f32 %v3214, %v3277
        %v3294 = vadd.f32 %v3130, %v3278
        %v3295 = vadd.f32 %v3159, %v3279
        %v3296 = vadd.f32 %v3188, %v3280
        %v3297 = vadd.f32 %v3217, %v3281
        %v3298 = vadd.f32 %v3133, %v3282
        %v3299 = vadd.f32 %v3162, %v3283
        %v3300 = vadd.f32 %v3191, %v3284
        %v3301 = vadd.f32 %v3220, %v3285
        %v3302 = vmul.f32 %v3286, 0.7978846
        %v3303 = vmul.f32 %v3287, 0.7978846
        %v3304 = vmul.f32 %v3288, 0.7978846
        %v3305 = vmul.f32 %v3289, 0.7978846
        %v3306 = vmul.f32 %v3290, 0.7978846
        %v3307 = vmul.f32 %v3291, 0.7978846
        %v3308 = vmul.f32 %v3292, 0.7978846
        %v3309 = vmul.f32 %v3293, 0.7978846
        %v3310 = vmul.f32 %v3294, 0.7978846
        %v3311 = vmul.f32 %v3295, 0.7978846
        %v3312 = vmul.f32 %v3296, 0.7978846
        %v3313 = vmul.f32 %v3297, 0.7978846
        %v3314 = vmul.f32 %v3298, 0.7978846
        %v3315 = vmul.f32 %v3299, 0.7978846
        %v3316 = vmul.f32 %v3300, 0.7978846
        %v3317 = vmul.f32 %v3301, 0.7978846
        %v3318 = vtanh.pop %v3302
        %v3319 = vtanh.pop %v3303
        %v3320 = vtanh.pop %v3304
        %v3321 = vtanh.pop %v3305
        %v3322 = vtanh.pop %v3306
        %v3323 = vtanh.pop %v3307
        %v3324 = vtanh.pop %v3308
        %v3325 = vtanh.pop %v3309
        %v3326 = vtanh.pop %v3310
        %v3327 = vtanh.pop %v3311
        %v3328 = vtanh.pop %v3312
        %v3329 = vtanh.pop %v3313
        %v3330 = vtanh.pop %v3314
        %v3331 = vtanh.pop %v3315
        %v3332 = vtanh.pop %v3316
        %v3333 = vtanh.pop %v3317
        %v3334 = vadd.f32 %v3318, 1.0
        %v3335 = vadd.f32 %v3319, 1.0
        %v3336 = vadd.f32 %v3320, 1.0
        %v3337 = vadd.f32 %v3321, 1.0
        %v3338 = vadd.f32 %v3322, 1.0
        %v3339 = vadd.f32 %v3323, 1.0
        %v3340 = vadd.f32 %v3324, 1.0
        %v3341 = vadd.f32 %v3325, 1.0
        %v3342 = vadd.f32 %v3326, 1.0
        %v3343 = vadd.f32 %v3327, 1.0
        %v3344 = vadd.f32 %v3328, 1.0
        %v3345 = vadd.f32 %v3329, 1.0
        %v3346 = vadd.f32 %v3330, 1.0
        %v3347 = vadd.f32 %v3331, 1.0
        %v3348 = vadd.f32 %v3332, 1.0
        %v3349 = vadd.f32 %v3333, 1.0
        %v3350 = vmul.f32 %v3222, %v3334
        %v3351 = vmul.f32 %v3223, %v3335
        %v3352 = vmul.f32 %v3224, %v3336
        %v3353 = vmul.f32 %v3225, %v3337
        %v3354 = vmul.f32 %v3226, %v3338
        %v3355 = vmul.f32 %v3227, %v3339
        %v3356 = vmul.f32 %v3228, %v3340
        %v3357 = vmul.f32 %v3229, %v3341
        %v3358 = vmul.f32 %v3230, %v3342
        %v3359 = vmul.f32 %v3231, %v3343
        %v3360 = vmul.f32 %v3232, %v3344
        %v3361 = vmul.f32 %v3233, %v3345
        %v3362 = vmul.f32 %v3234, %v3346
        %v3363 = vmul.f32 %v3235, %v3347
        %v3364 = vmul.f32 %v3236, %v3348
        %v3365 = vmul.f32 %v3237, %v3349
        %v3366 = vld [vmem:[%s10] sm:$0xff]
        %v3367 = vld [vmem:[%s10 + $0x8] sm:$0xff]
        %3369 = vset.pattern.permute.xlu0 0
        %3370 = vperm.xlu0 %3369, %v589
        %v3371 = vpop.permute.xlu0 %3370
        %3374 = vset.pattern.permute.xlu0 0
        %3375 = vperm.xlu0 %3374, %v590
        %v3376 = vpop.permute.xlu0 %3375
        %v3379 = vsel %vm3093, %v3366, 0
        %v3382 = vsel %vm3093, %v3367, 0
        %3384 = vmatpush.msra.mxu0 0.0
        %3385 = vmatpush.msra.mxu0 0.0
        %3386 = vmatpush.msra.mxu0 0.0
        %3387 = vmatpush.msra.mxu0 0.0
        %3388 = vmatpush.msra.mxu0 0.0
        %3389 = vmatpush.msra.mxu0 0.0
        %3390 = vmatpush.msra.mxu0 0.0
        %3391 = vmatpush.msra.mxu0 0.0
        %3392 = vmatpush.msra.mxu0 0.0
        %3393 = vmatpush.msra.mxu0 0.0
        %3394 = vmatpush.msra.mxu0 0.0
        %3395 = vmatpush.msra.mxu0 0.0
        %3396 = vmatpush.msra.mxu0 %v3362
        %3397 = vmatpush.msra.mxu0 %v3358
        %3398 = vmatpush.msra.mxu0 %v3354
        %3399 = vmatpush.msra.mxu0 %v3350
        %3400 = vmatmul.f32.gmra.mxu0 %v3379
        %v3401 = vpop.f32.mrf.mxu0
        %v3402 = vadd.f32 %v3371, %v3401
        %3403 = vmatmul.f32.gmra.mxu0 %v3382
        %v3404 = vpop.f32.mrf.mxu0
        %v3405 = vadd.f32 %v3376, %v3404
        %3406 = vdwg.mxu0
        %3407 = vmatpush.msra.mxu0 0.0
        %3408 = vmatpush.msra.mxu0 0.0
        %3409 = vmatpush.msra.mxu0 0.0
        %3410 = vmatpush.msra.mxu0 0.0
        %3411 = vmatpush.msra.mxu0 0.0
        %3412 = vmatpush.msra.mxu0 0.0
        %3413 = vmatpush.msra.mxu0 0.0
        %3414 = vmatpush.msra.mxu0 0.0
        %3415 = vmatpush.msra.mxu0 0.0
        %3416 = vmatpush.msra.mxu0 0.0
        %3417 = vmatpush.msra.mxu0 0.0
        %3418 = vmatpush.msra.mxu0 0.0
        %3419 = vmatpush.msra.mxu0 %v3363
        %3420 = vmatpush.msra.mxu0 %v3359
        %3421 = vmatpush.msra.mxu0 %v3355
        %3422 = vmatpush.msra.mxu0 %v3351
        %3423 = vmatmul.f32.gmra.mxu0 %v3379
        %v3424 = vpop.f32.mrf.mxu0
        %v3425 = vadd.f32 %v3371, %v3424
        %3426 = vmatmul.f32.gmra.mxu0 %v3382
        %v3427 = vpop.f32.mrf.mxu0
        %v3428 = vadd.f32 %v3376, %v3427
        %3429 = vdwg.mxu0
        %3430 = vmatpush.msra.mxu0 0.0
        %3431 = vmatpush.msra.mxu0 0.0
        %3432 = vmatpush.msra.mxu0 0.0
        %3433 = vmatpush.msra.mxu0 0.0
        %3434 = vmatpush.msra.mxu0 0.0
        %3435 = vmatpush.msra.mxu0 0.0
        %3436 = vmatpush.msra.mxu0 0.0
        %3437 = vmatpush.msra.mxu0 0.0
        %3438 = vmatpush.msra.mxu0 0.0
        %3439 = vmatpush.msra.mxu0 0.0
        %3440 = vmatpush.msra.mxu0 0.0
        %3441 = vmatpush.msra.mxu0 0.0
        %3442 = vmatpush.msra.mxu0 %v3364
        %3443 = vmatpush.msra.mxu0 %v3360
        %3444 = vmatpush.msra.mxu0 %v3356
        %3445 = vmatpush.msra.mxu0 %v3352
        %3446 = vmatmul.f32.gmra.mxu0 %v3379
        %v3447 = vpop.f32.mrf.mxu0
        %v3448 = vadd.f32 %v3371, %v3447
        %3449 = vmatmul.f32.gmra.mxu0 %v3382
        %v3450 = vpop.f32.mrf.mxu0
        %v3451 = vadd.f32 %v3376, %v3450
        %3452 = vdwg.mxu0
        %3453 = vmatpush.msra.mxu0 0.0
        %3454 = vmatpush.msra.mxu0 0.0
        %3455 = vmatpush.msra.mxu0 0.0
        %3456 = vmatpush.msra.mxu0 0.0
        %3457 = vmatpush.msra.mxu0 0.0
        %3458 = vmatpush.msra.mxu0 0.0
        %3459 = vmatpush.msra.mxu0 0.0
        %3460 = vmatpush.msra.mxu0 0.0
        %3461 = vmatpush.msra.mxu0 0.0
        %3462 = vmatpush.msra.mxu0 0.0
        %3463 = vmatpush.msra.mxu0 0.0
        %3464 = vmatpush.msra.mxu0 0.0
        %3465 = vmatpush.msra.mxu0 %v3365
        %3466 = vmatpush.msra.mxu0 %v3361
        %3467 = vmatpush.msra.mxu0 %v3357
        %3468 = vmatpush.msra.mxu0 %v3353
        %3469 = vmatmul.f32.gmra.mxu0 %v3379
        %v3470 = vpop.f32.mrf.mxu0
        %v3471 = vadd.f32 %v3371, %v3470
        %3472 = vmatmul.f32.gmra.mxu0 %v3382
        %v3473 = vpop.f32.mrf.mxu0
        %v3474 = vadd.f32 %v3376, %v3473
        %3475 = vdwg.mxu0
        %3476 = vst [vmem:[%s496] sm:$0xff] %v3402
        %3477 = vst [vmem:[%s496 + $0x8] sm:$0xff] %v3425
        %3478 = vst [vmem:[%s496 + $0x10] sm:$0xff] %v3448
        %3479 = vst [vmem:[%s496 + $0x18] sm:$0xff] %v3471
        %3480 = vst [vmem:[%s496 + $0x20] sm:$0xff] %v3405
        %3481 = vst [vmem:[%s496 + $0x28] sm:$0xff] %v3428
        %3482 = vst [vmem:[%s496 + $0x30] sm:$0xff] %v3451
        %3483 = vst [vmem:[%s496 + $0x38] sm:$0xff] %v3474
        %s3484 = sand.u32 %s326, 1
        %s3485 = scalar_lea.sflag [#allocation3], %s3484
        %s3486 = sand.u32 %s326, 1
        %s3487 = smul.addr %s3486, 64
        %s3488 = scalar_lea.vmem [#allocation2], %s3487
        // Predicated region
        $region69: #{_lambda_.1} parent=67 // pred_check
          %p3489 = pneg %p336
        $region70: #{_lambda_.1} parent=67 // pred_check_branch
          %3491 = sbr.rel (%p3489) target = $region72
        $region71: #{_lambda_.1} parent=67 // pred_region
          %s3492 = smul.u32 4, %s31
          %3494 = vsyncadd %s3485, 0
          %s3495 = smul.addr %s30, 8
          %s3496 = sadd.s32 %s3492, %s3495
          %s3497 = smul.addr %s3496, 8
          %s3498 = scalar_lea.hbm %s12, %s3497
          %s3499 = sshll.u32 %s3488, 4
          %s3500 = int_to_ptr.vmem [resolvable:$true] %s3499
          %s3501 = sshll.u32 %s3498, 4
          %s3502 = int_to_ptr.hbm [resolvable:$true] %s3501
          %3507 = dma.vmem_to_hbm [thread:$0]  %s3500, 1024, %s3502, %s3485, 512, 512, 32
        $region72: #{_lambda_.1} parent=67 // pred_fallthru
          _
      $region68: #{_lambda_.1} parent=5 // pred_fallthru
        _
      %p3508 = scmp.le.s32.totalorder 2, %s21
      // Predicated region
      $region73: #{_lambda_.1} parent=5 // pred_check
        %p3509 = pneg %p3508
      $region74: #{_lambda_.1} parent=5 // pred_check_branch
        %3511 = sbr.rel (%p3509) target = $region76
      $region75: #{_lambda_.1} parent=5 // pred_region
        %s3512 = ssub.s32 %s21, 2
        // Predicated region
        $region77: #{_lambda_.1} parent=75 // pred_check
          %p3513 = pneg %p342
        $region78: #{_lambda_.1} parent=75 // pred_check_branch
          %3515 = sbr.rel (%p3513) target = $region80
        $region79: #{_lambda_.1} parent=75 // pred_region
          %s3516 = sand.u32 %s327, 1
          %s3517 = scalar_lea.sflag [#allocation3], %s3516
          %s3518 = sand.u32 %s327, 1
          %s3519 = smul.addr %s3518, 64
          %s3520 = scalar_lea.vmem [#allocation2], %s3519
          %3522 = dma.done %s3517, 1024
        $region80: #{_lambda_.1} parent=75 // pred_fallthru
          _
      $region76: #{_lambda_.1} parent=5 // pred_fallthru
        _
    $region6: #{_lambda_.1} parent=1 // loop_footer
      %s25 = sadd.s32 1, %s21
    $region7: #{_lambda_.1} parent=1 // loop_footer_branch
      %20 = sbr.rel target = $region3
    $region8: #{_lambda_.1} parent=1 // loop_exit
      _
    %3523 = vsyncpa [#allocation3], 1
    %s3524 = scalar_lea.sflag [#allocation3], 1
    %3525 = vsyncpa %s3524, 1

</llo_original>
